<compile_context>
chip_gen: v7x
topology: tpu7x:2x2x1
jax: 0.10.0
libtpu: 0.0.40
codegen_flags: <defaults>
</compile_context>

<pallas_src>
import math
import jax
import jax.numpy as jnp
from jax.experimental import pallas as pl
from jax.experimental.pallas import tpu as pltpu


# ---------------------------------------------------------------------------
# Fused kernel: GCN1 -> LSTM1 -> GCN2 -> LSTM2 (single invocation, all in VMEM)
# ---------------------------------------------------------------------------

def _make_fused_kernel(T, N):
    TN = T * N

    def kernel(abd_ref, x_ref, w0_ref, w1_ref,
               wih1_ref, whh1_ref, b1_ref,
               wih2_ref, whh2_ref, b2_ref,
               o_ref, h1_scr):
        bf = jnp.bfloat16
        H1 = whh1_ref.shape[0]
        H2 = whh2_ref.shape[0]

        A_bd = abd_ref[...]                                    # (TN, TN) bf16

        def lstm_cell(g, c):
            # One sigmoid + one tanh over the packed 4*H gate vector, then slice
            # out the i/f/g/o blocks (torch gate order).
            H = g.shape[-1] // 4
            sg = jax.nn.sigmoid(g)
            tg = jnp.tanh(g)
            i_g = sg[:, 0 * H:1 * H]
            f_g = sg[:, 1 * H:2 * H]
            g_g = tg[:, 2 * H:3 * H]
            o_g = sg[:, 3 * H:4 * H]
            c_new = f_g * c + i_g * g_g
            h_new = o_g * jnp.tanh(c_new)
            return h_new, c_new

        # ---- GCN layer 1: relu( A_bd @ (X @ W0) ) ---------------------------
        xw = jnp.dot(x_ref[...], w0_ref[...],
                     preferred_element_type=jnp.float32)       # (TN, L1) f32
        l1 = jnp.maximum(
            jnp.dot(A_bd, xw.astype(bf), preferred_element_type=jnp.float32),
            0.0)                                               # (TN, L1) f32

        # ---- LSTM-1: input projection hoisted out of the serial recurrence --
        gin1 = jnp.dot(l1.astype(bf), wih1_ref[...],
                       preferred_element_type=jnp.float32) + b1_ref[...]
        whh1 = whh1_ref[...]                                   # (H1, 4H1) bf16
        h = jnp.zeros((N, H1), jnp.float32)
        c = jnp.zeros((N, H1), jnp.float32)
        for t in range(T):                                     # small static unroll
            g = gin1[t * N:(t + 1) * N, :] + jnp.dot(
                h.astype(bf), whh1, preferred_element_type=jnp.float32)
            h, c = lstm_cell(g, c)
            h1_scr[t * N:(t + 1) * N, :] = h                   # bound live range

        # ---- GCN layer 2: relu( (A_bd @ out_l1) @ W1 ) ----------------------
        ah = jnp.dot(A_bd, h1_scr[...].astype(bf),
                     preferred_element_type=jnp.float32)       # (TN, H1) f32
        l2 = jnp.maximum(
            jnp.dot(ah.astype(bf), w1_ref[...],
                    preferred_element_type=jnp.float32),
            0.0)                                               # (TN, L2) f32

        # ---- LSTM-2 (only the final hidden state is returned) ---------------
        gin2 = jnp.dot(l2.astype(bf), wih2_ref[...],
                       preferred_element_type=jnp.float32) + b2_ref[...]
        whh2 = whh2_ref[...]                                   # (H2, 4H2) bf16
        h2 = jnp.zeros((N, H2), jnp.float32)
        c2 = jnp.zeros((N, H2), jnp.float32)
        for t in range(T):
            g = gin2[t * N:(t + 1) * N, :] + jnp.dot(
                h2.astype(bf), whh2, preferred_element_type=jnp.float32)
            h2, c2 = lstm_cell(g, c2)

        o_ref[...] = h2                                        # (N, H2) f32

    return kernel


# ---------------------------------------------------------------------------
# Wrapper: block-diagonal A, bf16 operand casts, pallas_call
# ---------------------------------------------------------------------------

def sp_gcn_lstm_b_forward(params, A, X):
    """A: (T, N, N) f32, X: (T, N, F) f32 -> (N, lstm_l2_feats) f32."""
    T, N, _ = A.shape
    F = X.shape[-1]
    w0, w1 = params["w0"], params["w1"]
    wih1, whh1, b1 = params["rnn_l1"]
    wih2, whh2, b2 = params["rnn_l2"]
    L1, L2 = w0.shape[1], w1.shape[1]
    H1, H2 = whh1.shape[0], whh2.shape[0]
    assert L1 == H1, "Sp_GCN_LSTM_B requires lstm_l1_feats == layer_1_feats"
    TN = T * N

    # Block-diagonal adjacency: one lane-aligned matmul per GCN layer replaces
    # T tiny batched einsums (T*N = 128 at these shapes).
    A_bd = jnp.zeros((TN, TN), jnp.float32)
    for t in range(T):
        A_bd = A_bd.at[t * N:(t + 1) * N, t * N:(t + 1) * N].set(A[t])

    # bf16 MXU operands; f32 accumulation, biases and LSTM states stay f32.
    bf = jnp.bfloat16
    A_bd = A_bd.astype(bf)
    Xf = X.reshape(TN, F).astype(bf)
    w0b, w1b = w0.astype(bf), w1.astype(bf)
    wih1b, whh1b = wih1.astype(bf), whh1.astype(bf)
    wih2b, whh2b = wih2.astype(bf), whh2.astype(bf)

    # TODO(synk): for large N (esp. v7x: 64 MiB VMEM, 2 TensorCores) add a
    # parallel node-row-tile grid so A_bd tiles stream and both cores are used;
    # at N=16 a grid only adds per-step overhead.
    vmem = pltpu.MemorySpace.VMEM
    out = pl.pallas_call(
        _make_fused_kernel(T, N),
        out_shape=jax.ShapeDtypeStruct((N, H2), jnp.float32),
        in_specs=[pl.BlockSpec(memory_space=vmem)] * 10,
        out_specs=pl.BlockSpec(memory_space=vmem),
        scratch_shapes=[pltpu.VMEM((TN, H1), jnp.float32)],
        compiler_params=pltpu.CompilerParams(vmem_limit_bytes=32 * 1024 * 1024),
    )(A_bd, Xf, w0b, w1b, b1, wih2b, whh2b, b2) if False else pl.pallas_call(
        _make_fused_kernel(T, N),
        out_shape=jax.ShapeDtypeStruct((N, H2), jnp.float32),
        in_specs=[pl.BlockSpec(memory_space=vmem)] * 10,
        out_specs=pl.BlockSpec(memory_space=vmem),
        scratch_shapes=[pltpu.VMEM((TN, H1), jnp.float32)],
        compiler_params=pltpu.CompilerParams(vmem_limit_bytes=32 * 1024 * 1024),
    )(A_bd, Xf, w0b, w1b, wih1b, whh1b, b1, wih2b, whh2b, b2)
    return out


# ---------------------------------------------------------------------------
# Pure-JAX f32 reference (HIGHEST precision) for numerical checking
# ---------------------------------------------------------------------------

def reference_forward(params, A, X):
    hp = jax.lax.Precision.HIGHEST

    def lstm(x_seq, wih, whh, b):
        T, N, _ = x_seq.shape
        H = whh.shape[0]
        h = jnp.zeros((N, H), jnp.float32)
        c = jnp.zeros((N, H), jnp.float32)
        hs = []
        for t in range(T):
            g = (jnp.dot(x_seq[t], wih, precision=hp)
                 + jnp.dot(h, whh, precision=hp) + b)
            i_g = jax.nn.sigmoid(g[:, 0 * H:1 * H])
            f_g = jax.nn.sigmoid(g[:, 1 * H:2 * H])
            g_g = jnp.tanh(g[:, 2 * H:3 * H])
            o_g = jax.nn.sigmoid(g[:, 3 * H:4 * H])
            c = f_g * c + i_g * g_g
            h = o_g * jnp.tanh(c)
            hs.append(h)
        return jnp.stack(hs)

    xw = jnp.einsum('tnf,fh->tnh', X, params["w0"], precision=hp)
    l1 = jax.nn.relu(jnp.einsum('tij,tjh->tih', A, xw, precision=hp))
    out_l1 = lstm(l1, *params["rnn_l1"])
    ah = jnp.einsum('tij,tjh->tih', A, out_l1, precision=hp)
    l2 = jax.nn.relu(jnp.einsum('tnh,hk->tnk', ah, params["w1"], precision=hp))
    out = lstm(l2, *params["rnn_l2"])
    return out[-1]


# ---------------------------------------------------------------------------
# Deterministic parameter construction (mirrors torch __init__ shapes)
# ---------------------------------------------------------------------------

def _uniform(key, shape, bound):
    return jax.random.uniform(key, shape, jnp.float32, minval=-bound, maxval=bound)


def make_params(key, feats_per_node, layer_1_feats, layer_2_feats,
                lstm_l1_feats, lstm_l2_feats):
    assert lstm_l1_feats == layer_1_feats
    keys = jax.random.split(key, 12)
    params = {}
    params["w0"] = _uniform(keys[0], (feats_per_node, layer_1_feats),
                            1.0 / math.sqrt(layer_1_feats))
    params["w1"] = _uniform(keys[1], (layer_1_feats, layer_2_feats),
                            1.0 / math.sqrt(layer_2_feats))
    # W2 exists in __init__ but is unused in forward; kept for shape fidelity.
    params["W2_unused"] = _uniform(keys[2], (lstm_l1_feats, layer_2_feats),
                                   1.0 / math.sqrt(layer_2_feats))

    def lstm_layer(k0, k1, k2, k3, din, hid):
        bound = 1.0 / math.sqrt(hid)
        w_ih_t = _uniform(k0, (din, 4 * hid), bound)   # = torch weight_ih_l0.T
        w_hh_t = _uniform(k1, (hid, 4 * hid), bound)   # = torch weight_hh_l0.T
        b = (_uniform(k2, (1, 4 * hid), bound)
             + _uniform(k3, (1, 4 * hid), bound))      # bias_ih + bias_hh
        return (w_ih_t, w_hh_t, b)

    params["rnn_l1"] = lstm_layer(keys[3], keys[4], keys[5], keys[6],
                                  layer_1_feats, lstm_l1_feats)
    params["rnn_l2"] = lstm_layer(keys[7], keys[8], keys[9], keys[10],
                                  layer_2_feats, lstm_l2_feats)
    return params


# ---------------------------------------------------------------------------
# Main
# ---------------------------------------------------------------------------

if __name__ == "__main__":
    T = 8                # number of time steps (len(A_list))
    N = 16               # number of nodes
    feats_per_node = 16
    layer_1_feats = 32
    layer_2_feats = 32
    lstm_l1_feats = 32   # must equal layer_1_feats (see assertion)
    lstm_l2_feats = 32

    root = jax.random.PRNGKey(0)
    k_params, k_A, k_X = jax.random.split(root, 3)

    params = make_params(k_params, feats_per_node, layer_1_feats, layer_2_feats,
                         lstm_l1_feats, lstm_l2_feats)

    # Synthetic (dense) normalized-adjacency-like inputs and node features.
    A = jax.random.uniform(k_A, (T, N, N), jnp.float32) / N
    X = jax.random.normal(k_X, (T, N, feats_per_node), jnp.float32)

    out = jax.block_until_ready(sp_gcn_lstm_b_forward(params, A, X))
    assert out.shape == (N, lstm_l2_feats)
    assert bool(jnp.all(jnp.isfinite(out)))

    ref = jax.block_until_ready(reference_forward(params, A, X))
    max_diff = float(jnp.max(jnp.abs(out - ref)))
    # bf16 MXU operands with f32 accumulation -> loose-but-meaningful tolerance.
    assert bool(jnp.allclose(out, ref, rtol=5e-2, atol=5e-2)), \
        f"max abs diff {max_diff}"

    print("KERNEL_OK")
</pallas_src>

<mosaic_0001>
module attributes {stable_mosaic.version = 11 : i64} {
  func.func @kernel(%arg0: memref<128x128xbf16, #tpu.memory_space<vmem>>, %arg1: memref<128x16xbf16, #tpu.memory_space<vmem>>, %arg2: memref<16x32xbf16, #tpu.memory_space<vmem>>, %arg3: memref<32x32xbf16, #tpu.memory_space<vmem>>, %arg4: memref<32x128xbf16, #tpu.memory_space<vmem>>, %arg5: memref<32x128xbf16, #tpu.memory_space<vmem>>, %arg6: memref<1x128xf32, #tpu.memory_space<vmem>>, %arg7: memref<32x128xbf16, #tpu.memory_space<vmem>>, %arg8: memref<32x128xbf16, #tpu.memory_space<vmem>>, %arg9: memref<1x128xf32, #tpu.memory_space<vmem>>, %arg10: memref<16x32xf32, #tpu.memory_space<vmem>>, %arg11: memref<128x32xf32, #tpu.memory_space<vmem>>) attributes {dimension_semantics = [], scalar_prefetch = 0 : i64, scratch_operands = 1 : i64, tpu.core_type = #tpu.core_type<tc>} {
    %c0 = arith.constant 0 : index
    %c0_0 = arith.constant 0 : index
    %0 = vector.load %arg0[%c0, %c0_0] : memref<128x128xbf16, #tpu.memory_space<vmem>>, vector<128x128xbf16>
    %c0_1 = arith.constant 0 : index
    %c0_2 = arith.constant 0 : index
    %1 = vector.load %arg1[%c0_1, %c0_2] : memref<128x16xbf16, #tpu.memory_space<vmem>>, vector<128x16xbf16>
    %c0_3 = arith.constant 0 : index
    %c0_4 = arith.constant 0 : index
    %2 = vector.load %arg2[%c0_3, %c0_4] : memref<16x32xbf16, #tpu.memory_space<vmem>>, vector<16x32xbf16>
    %cst = arith.constant dense<0.000000e+00> : vector<128x32xf32>
    %3 = tpu.matmul %1, %2, %cst {dimension_numbers = #tpu.dot_dimension_numbers<[1], [0], [0], [1], [0, 0, 1, 1], [], []>} : vector<128x16xbf16>, vector<16x32xbf16>, vector<128x32xf32> -> vector<128x32xf32>
    %4 = arith.truncf %3 : vector<128x32xf32> to vector<128x32xbf16>
    %cst_5 = arith.constant dense<0.000000e+00> : vector<128x32xf32>
    %5 = tpu.matmul %0, %4, %cst_5 {dimension_numbers = #tpu.dot_dimension_numbers<[1], [0], [0], [1], [0, 0, 1, 1], [], []>} : vector<128x128xbf16>, vector<128x32xbf16>, vector<128x32xf32> -> vector<128x32xf32>
    %cst_6 = arith.constant 0.000000e+00 : f32
    %6 = vector.broadcast %cst_6 : f32 to vector<128x32xf32>
    %7 = arith.maximumf %5, %6 : vector<128x32xf32>
    %8 = arith.truncf %7 : vector<128x32xf32> to vector<128x32xbf16>
    %c0_7 = arith.constant 0 : index
    %c0_8 = arith.constant 0 : index
    %9 = vector.load %arg4[%c0_7, %c0_8] : memref<32x128xbf16, #tpu.memory_space<vmem>>, vector<32x128xbf16>
    %cst_9 = arith.constant dense<0.000000e+00> : vector<128x128xf32>
    %10 = tpu.matmul %8, %9, %cst_9 {dimension_numbers = #tpu.dot_dimension_numbers<[1], [0], [0], [1], [0, 0, 1, 1], [], []>} : vector<128x32xbf16>, vector<32x128xbf16>, vector<128x128xf32> -> vector<128x128xf32>
    %c0_10 = arith.constant 0 : index
    %c0_11 = arith.constant 0 : index
    %11 = vector.load %arg6[%c0_10, %c0_11] : memref<1x128xf32, #tpu.memory_space<vmem>>, vector<1x128xf32>
    %12 = vector.broadcast %11 : vector<1x128xf32> to vector<128x128xf32>
    %13 = arith.addf %10, %12 : vector<128x128xf32>
    %c0_12 = arith.constant 0 : index
    %c0_13 = arith.constant 0 : index
    %14 = vector.load %arg5[%c0_12, %c0_13] : memref<32x128xbf16, #tpu.memory_space<vmem>>, vector<32x128xbf16>
    %cst_14 = arith.constant 0.000000e+00 : f32
    %15 = vector.broadcast %cst_14 : f32 to vector<16x32xf32>
    %cst_15 = arith.constant 0.000000e+00 : f32
    %16 = vector.broadcast %cst_15 : f32 to vector<16x32xf32>
    %17 = vector.extract_strided_slice %13 {offsets = [0, 0], sizes = [16, 128], strides = [1, 1]} : vector<128x128xf32> to vector<16x128xf32>
    %18 = arith.truncf %15 : vector<16x32xf32> to vector<16x32xbf16>
    %cst_16 = arith.constant dense<0.000000e+00> : vector<16x128xf32>
    %19 = tpu.matmul %18, %14, %cst_16 {dimension_numbers = #tpu.dot_dimension_numbers<[1], [0], [0], [1], [0, 0, 1, 1], [], []>} : vector<16x32xbf16>, vector<32x128xbf16>, vector<16x128xf32> -> vector<16x128xf32>
    %20 = arith.addf %17, %19 : vector<16x128xf32>
    %21 = arith.negf %20 : vector<16x128xf32>
    %22 = math.exp %21 : vector<16x128xf32>
    %cst_17 = arith.constant 1.000000e+00 : f32
    %23 = vector.broadcast %cst_17 : f32 to vector<16x128xf32>
    %24 = arith.addf %23, %22 : vector<16x128xf32>
    %25 = arith.divf %23, %24 : vector<16x128xf32>
    %26 = math.tanh %20 : vector<16x128xf32>
    %27 = vector.extract_strided_slice %25 {offsets = [0, 0], sizes = [16, 32], strides = [1, 1]} : vector<16x128xf32> to vector<16x32xf32>
    %28 = vector.extract_strided_slice %25 {offsets = [0, 32], sizes = [16, 32], strides = [1, 1]} : vector<16x128xf32> to vector<16x32xf32>
    %29 = vector.extract_strided_slice %26 {offsets = [0, 64], sizes = [16, 32], strides = [1, 1]} : vector<16x128xf32> to vector<16x32xf32>
    %30 = vector.extract_strided_slice %25 {offsets = [0, 96], sizes = [16, 32], strides = [1, 1]} : vector<16x128xf32> to vector<16x32xf32>
    %31 = arith.mulf %28, %16 : vector<16x32xf32>
    %32 = arith.mulf %27, %29 : vector<16x32xf32>
    %33 = arith.addf %31, %32 : vector<16x32xf32>
    %34 = math.tanh %33 : vector<16x32xf32>
    %35 = arith.mulf %30, %34 : vector<16x32xf32>
    %c0_18 = arith.constant 0 : index
    %c0_19 = arith.constant 0 : index
    %36 = vector.load %arg11[%c0_18, %c0_19] : memref<128x32xf32, #tpu.memory_space<vmem>>, vector<16x32xf32>
    tpu.vector_store %arg11[%c0_18, %c0_19], %35 {strides = array<i32>} : memref<128x32xf32, #tpu.memory_space<vmem>>, vector<16x32xf32>,
    %37 = vector.extract_strided_slice %13 {offsets = [16, 0], sizes = [16, 128], strides = [1, 1]} : vector<128x128xf32> to vector<16x128xf32>
    %38 = arith.truncf %35 : vector<16x32xf32> to vector<16x32xbf16>
    %cst_20 = arith.constant dense<0.000000e+00> : vector<16x128xf32>
    %39 = tpu.matmul %38, %14, %cst_20 {dimension_numbers = #tpu.dot_dimension_numbers<[1], [0], [0], [1], [0, 0, 1, 1], [], []>} : vector<16x32xbf16>, vector<32x128xbf16>, vector<16x128xf32> -> vector<16x128xf32>
    %40 = arith.addf %37, %39 : vector<16x128xf32>
    %41 = arith.negf %40 : vector<16x128xf32>
    %42 = math.exp %41 : vector<16x128xf32>
    %cst_21 = arith.constant 1.000000e+00 : f32
    %43 = vector.broadcast %cst_21 : f32 to vector<16x128xf32>
    %44 = arith.addf %43, %42 : vector<16x128xf32>
    %45 = arith.divf %43, %44 : vector<16x128xf32>
    %46 = math.tanh %40 : vector<16x128xf32>
    %47 = vector.extract_strided_slice %45 {offsets = [0, 0], sizes = [16, 32], strides = [1, 1]} : vector<16x128xf32> to vector<16x32xf32>
    %48 = vector.extract_strided_slice %45 {offsets = [0, 32], sizes = [16, 32], strides = [1, 1]} : vector<16x128xf32> to vector<16x32xf32>
    %49 = vector.extract_strided_slice %46 {offsets = [0, 64], sizes = [16, 32], strides = [1, 1]} : vector<16x128xf32> to vector<16x32xf32>
    %50 = vector.extract_strided_slice %45 {offsets = [0, 96], sizes = [16, 32], strides = [1, 1]} : vector<16x128xf32> to vector<16x32xf32>
    %51 = arith.mulf %48, %33 : vector<16x32xf32>
    %52 = arith.mulf %47, %49 : vector<16x32xf32>
    %53 = arith.addf %51, %52 : vector<16x32xf32>
    %54 = math.tanh %53 : vector<16x32xf32>
    %55 = arith.mulf %50, %54 : vector<16x32xf32>
    %c16 = arith.constant 16 : index
    %c0_22 = arith.constant 0 : index
    %56 = vector.load %arg11[%c16, %c0_22] : memref<128x32xf32, #tpu.memory_space<vmem>>, vector<16x32xf32>
    tpu.vector_store %arg11[%c16, %c0_22], %55 {strides = array<i32>} : memref<128x32xf32, #tpu.memory_space<vmem>>, vector<16x32xf32>,
    %57 = vector.extract_strided_slice %13 {offsets = [32, 0], sizes = [16, 128], strides = [1, 1]} : vector<128x128xf32> to vector<16x128xf32>
    %58 = arith.truncf %55 : vector<16x32xf32> to vector<16x32xbf16>
    %cst_23 = arith.constant dense<0.000000e+00> : vector<16x128xf32>
    %59 = tpu.matmul %58, %14, %cst_23 {dimension_numbers = #tpu.dot_dimension_numbers<[1], [0], [0], [1], [0, 0, 1, 1], [], []>} : vector<16x32xbf16>, vector<32x128xbf16>, vector<16x128xf32> -> vector<16x128xf32>
    %60 = arith.addf %57, %59 : vector<16x128xf32>
    %61 = arith.negf %60 : vector<16x128xf32>
    %62 = math.exp %61 : vector<16x128xf32>
    %cst_24 = arith.constant 1.000000e+00 : f32
    %63 = vector.broadcast %cst_24 : f32 to vector<16x128xf32>
    %64 = arith.addf %63, %62 : vector<16x128xf32>
    %65 = arith.divf %63, %64 : vector<16x128xf32>
    %66 = math.tanh %60 : vector<16x128xf32>
    %67 = vector.extract_strided_slice %65 {offsets = [0, 0], sizes = [16, 32], strides = [1, 1]} : vector<16x128xf32> to vector<16x32xf32>
    %68 = vector.extract_strided_slice %65 {offsets = [0, 32], sizes = [16, 32], strides = [1, 1]} : vector<16x128xf32> to vector<16x32xf32>
    %69 = vector.extract_strided_slice %66 {offsets = [0, 64], sizes = [16, 32], strides = [1, 1]} : vector<16x128xf32> to vector<16x32xf32>
    %70 = vector.extract_strided_slice %65 {offsets = [0, 96], sizes = [16, 32], strides = [1, 1]} : vector<16x128xf32> to vector<16x32xf32>
    %71 = arith.mulf %68, %53 : vector<16x32xf32>
    %72 = arith.mulf %67, %69 : vector<16x32xf32>
    %73 = arith.addf %71, %72 : vector<16x32xf32>
    %74 = math.tanh %73 : vector<16x32xf32>
    %75 = arith.mulf %70, %74 : vector<16x32xf32>
    %c32 = arith.constant 32 : index
    %c0_25 = arith.constant 0 : index
    %76 = vector.load %arg11[%c32, %c0_25] : memref<128x32xf32, #tpu.memory_space<vmem>>, vector<16x32xf32>
    tpu.vector_store %arg11[%c32, %c0_25], %75 {strides = array<i32>} : memref<128x32xf32, #tpu.memory_space<vmem>>, vector<16x32xf32>,
    %77 = vector.extract_strided_slice %13 {offsets = [48, 0], sizes = [16, 128], strides = [1, 1]} : vector<128x128xf32> to vector<16x128xf32>
    %78 = arith.truncf %75 : vector<16x32xf32> to vector<16x32xbf16>
    %cst_26 = arith.constant dense<0.000000e+00> : vector<16x128xf32>
    %79 = tpu.matmul %78, %14, %cst_26 {dimension_numbers = #tpu.dot_dimension_numbers<[1], [0], [0], [1], [0, 0, 1, 1], [], []>} : vector<16x32xbf16>, vector<32x128xbf16>, vector<16x128xf32> -> vector<16x128xf32>
    %80 = arith.addf %77, %79 : vector<16x128xf32>
    %81 = arith.negf %80 : vector<16x128xf32>
    %82 = math.exp %81 : vector<16x128xf32>
    %cst_27 = arith.constant 1.000000e+00 : f32
    %83 = vector.broadcast %cst_27 : f32 to vector<16x128xf32>
    %84 = arith.addf %83, %82 : vector<16x128xf32>
    %85 = arith.divf %83, %84 : vector<16x128xf32>
    %86 = math.tanh %80 : vector<16x128xf32>
    %87 = vector.extract_strided_slice %85 {offsets = [0, 0], sizes = [16, 32], strides = [1, 1]} : vector<16x128xf32> to vector<16x32xf32>
    %88 = vector.extract_strided_slice %85 {offsets = [0, 32], sizes = [16, 32], strides = [1, 1]} : vector<16x128xf32> to vector<16x32xf32>
    %89 = vector.extract_strided_slice %86 {offsets = [0, 64], sizes = [16, 32], strides = [1, 1]} : vector<16x128xf32> to vector<16x32xf32>
    %90 = vector.extract_strided_slice %85 {offsets = [0, 96], sizes = [16, 32], strides = [1, 1]} : vector<16x128xf32> to vector<16x32xf32>
    %91 = arith.mulf %88, %73 : vector<16x32xf32>
    %92 = arith.mulf %87, %89 : vector<16x32xf32>
    %93 = arith.addf %91, %92 : vector<16x32xf32>
    %94 = math.tanh %93 : vector<16x32xf32>
    %95 = arith.mulf %90, %94 : vector<16x32xf32>
    %c48 = arith.constant 48 : index
    %c0_28 = arith.constant 0 : index
    %96 = vector.load %arg11[%c48, %c0_28] : memref<128x32xf32, #tpu.memory_space<vmem>>, vector<16x32xf32>
    tpu.vector_store %arg11[%c48, %c0_28], %95 {strides = array<i32>} : memref<128x32xf32, #tpu.memory_space<vmem>>, vector<16x32xf32>,
    %97 = vector.extract_strided_slice %13 {offsets = [64, 0], sizes = [16, 128], strides = [1, 1]} : vector<128x128xf32> to vector<16x128xf32>
    %98 = arith.truncf %95 : vector<16x32xf32> to vector<16x32xbf16>
    %cst_29 = arith.constant dense<0.000000e+00> : vector<16x128xf32>
    %99 = tpu.matmul %98, %14, %cst_29 {dimension_numbers = #tpu.dot_dimension_numbers<[1], [0], [0], [1], [0, 0, 1, 1], [], []>} : vector<16x32xbf16>, vector<32x128xbf16>, vector<16x128xf32> -> vector<16x128xf32>
    %100 = arith.addf %97, %99 : vector<16x128xf32>
    %101 = arith.negf %100 : vector<16x128xf32>
    %102 = math.exp %101 : vector<16x128xf32>
    %cst_30 = arith.constant 1.000000e+00 : f32
    %103 = vector.broadcast %cst_30 : f32 to vector<16x128xf32>
    %104 = arith.addf %103, %102 : vector<16x128xf32>
    %105 = arith.divf %103, %104 : vector<16x128xf32>
    %106 = math.tanh %100 : vector<16x128xf32>
    %107 = vector.extract_strided_slice %105 {offsets = [0, 0], sizes = [16, 32], strides = [1, 1]} : vector<16x128xf32> to vector<16x32xf32>
    %108 = vector.extract_strided_slice %105 {offsets = [0, 32], sizes = [16, 32], strides = [1, 1]} : vector<16x128xf32> to vector<16x32xf32>
    %109 = vector.extract_strided_slice %106 {offsets = [0, 64], sizes = [16, 32], strides = [1, 1]} : vector<16x128xf32> to vector<16x32xf32>
    %110 = vector.extract_strided_slice %105 {offsets = [0, 96], sizes = [16, 32], strides = [1, 1]} : vector<16x128xf32> to vector<16x32xf32>
    %111 = arith.mulf %108, %93 : vector<16x32xf32>
    %112 = arith.mulf %107, %109 : vector<16x32xf32>
    %113 = arith.addf %111, %112 : vector<16x32xf32>
    %114 = math.tanh %113 : vector<16x32xf32>
    %115 = arith.mulf %110, %114 : vector<16x32xf32>
    %c64 = arith.constant 64 : index
    %c0_31 = arith.constant 0 : index
    %116 = vector.load %arg11[%c64, %c0_31] : memref<128x32xf32, #tpu.memory_space<vmem>>, vector<16x32xf32>
    tpu.vector_store %arg11[%c64, %c0_31], %115 {strides = array<i32>} : memref<128x32xf32, #tpu.memory_space<vmem>>, vector<16x32xf32>,
    %117 = vector.extract_strided_slice %13 {offsets = [80, 0], sizes = [16, 128], strides = [1, 1]} : vector<128x128xf32> to vector<16x128xf32>
    %118 = arith.truncf %115 : vector<16x32xf32> to vector<16x32xbf16>
    %cst_32 = arith.constant dense<0.000000e+00> : vector<16x128xf32>
    %119 = tpu.matmul %118, %14, %cst_32 {dimension_numbers = #tpu.dot_dimension_numbers<[1], [0], [0], [1], [0, 0, 1, 1], [], []>} : vector<16x32xbf16>, vector<32x128xbf16>, vector<16x128xf32> -> vector<16x128xf32>
    %120 = arith.addf %117, %119 : vector<16x128xf32>
    %121 = arith.negf %120 : vector<16x128xf32>
    %122 = math.exp %121 : vector<16x128xf32>
    %cst_33 = arith.constant 1.000000e+00 : f32
    %123 = vector.broadcast %cst_33 : f32 to vector<16x128xf32>
    %124 = arith.addf %123, %122 : vector<16x128xf32>
    %125 = arith.divf %123, %124 : vector<16x128xf32>
    %126 = math.tanh %120 : vector<16x128xf32>
    %127 = vector.extract_strided_slice %125 {offsets = [0, 0], sizes = [16, 32], strides = [1, 1]} : vector<16x128xf32> to vector<16x32xf32>
    %128 = vector.extract_strided_slice %125 {offsets = [0, 32], sizes = [16, 32], strides = [1, 1]} : vector<16x128xf32> to vector<16x32xf32>
    %129 = vector.extract_strided_slice %126 {offsets = [0, 64], sizes = [16, 32], strides = [1, 1]} : vector<16x128xf32> to vector<16x32xf32>
    %130 = vector.extract_strided_slice %125 {offsets = [0, 96], sizes = [16, 32], strides = [1, 1]} : vector<16x128xf32> to vector<16x32xf32>
    %131 = arith.mulf %128, %113 : vector<16x32xf32>
    %132 = arith.mulf %127, %129 : vector<16x32xf32>
    %133 = arith.addf %131, %132 : vector<16x32xf32>
    %134 = math.tanh %133 : vector<16x32xf32>
    %135 = arith.mulf %130, %134 : vector<16x32xf32>
    %c80 = arith.constant 80 : index
    %c0_34 = arith.constant 0 : index
    %136 = vector.load %arg11[%c80, %c0_34] : memref<128x32xf32, #tpu.memory_space<vmem>>, vector<16x32xf32>
    tpu.vector_store %arg11[%c80, %c0_34], %135 {strides = array<i32>} : memref<128x32xf32, #tpu.memory_space<vmem>>, vector<16x32xf32>,
    %137 = vector.extract_strided_slice %13 {offsets = [96, 0], sizes = [16, 128], strides = [1, 1]} : vector<128x128xf32> to vector<16x128xf32>
    %138 = arith.truncf %135 : vector<16x32xf32> to vector<16x32xbf16>
    %cst_35 = arith.constant dense<0.000000e+00> : vector<16x128xf32>
    %139 = tpu.matmul %138, %14, %cst_35 {dimension_numbers = #tpu.dot_dimension_numbers<[1], [0], [0], [1], [0, 0, 1, 1], [], []>} : vector<16x32xbf16>, vector<32x128xbf16>, vector<16x128xf32> -> vector<16x128xf32>
    %140 = arith.addf %137, %139 : vector<16x128xf32>
    %141 = arith.negf %140 : vector<16x128xf32>
    %142 = math.exp %141 : vector<16x128xf32>
    %cst_36 = arith.constant 1.000000e+00 : f32
    %143 = vector.broadcast %cst_36 : f32 to vector<16x128xf32>
    %144 = arith.addf %143, %142 : vector<16x128xf32>
    %145 = arith.divf %143, %144 : vector<16x128xf32>
    %146 = math.tanh %140 : vector<16x128xf32>
    %147 = vector.extract_strided_slice %145 {offsets = [0, 0], sizes = [16, 32], strides = [1, 1]} : vector<16x128xf32> to vector<16x32xf32>
    %148 = vector.extract_strided_slice %145 {offsets = [0, 32], sizes = [16, 32], strides = [1, 1]} : vector<16x128xf32> to vector<16x32xf32>
    %149 = vector.extract_strided_slice %146 {offsets = [0, 64], sizes = [16, 32], strides = [1, 1]} : vector<16x128xf32> to vector<16x32xf32>
    %150 = vector.extract_strided_slice %145 {offsets = [0, 96], sizes = [16, 32], strides = [1, 1]} : vector<16x128xf32> to vector<16x32xf32>
    %151 = arith.mulf %148, %133 : vector<16x32xf32>
    %152 = arith.mulf %147, %149 : vector<16x32xf32>
    %153 = arith.addf %151, %152 : vector<16x32xf32>
    %154 = math.tanh %153 : vector<16x32xf32>
    %155 = arith.mulf %150, %154 : vector<16x32xf32>
    %c96 = arith.constant 96 : index
    %c0_37 = arith.constant 0 : index
    %156 = vector.load %arg11[%c96, %c0_37] : memref<128x32xf32, #tpu.memory_space<vmem>>, vector<16x32xf32>
    tpu.vector_store %arg11[%c96, %c0_37], %155 {strides = array<i32>} : memref<128x32xf32, #tpu.memory_space<vmem>>, vector<16x32xf32>,
    %157 = vector.extract_strided_slice %13 {offsets = [112, 0], sizes = [16, 128], strides = [1, 1]} : vector<128x128xf32> to vector<16x128xf32>
    %158 = arith.truncf %155 : vector<16x32xf32> to vector<16x32xbf16>
    %cst_38 = arith.constant dense<0.000000e+00> : vector<16x128xf32>
    %159 = tpu.matmul %158, %14, %cst_38 {dimension_numbers = #tpu.dot_dimension_numbers<[1], [0], [0], [1], [0, 0, 1, 1], [], []>} : vector<16x32xbf16>, vector<32x128xbf16>, vector<16x128xf32> -> vector<16x128xf32>
    %160 = arith.addf %157, %159 : vector<16x128xf32>
    %161 = arith.negf %160 : vector<16x128xf32>
    %162 = math.exp %161 : vector<16x128xf32>
    %cst_39 = arith.constant 1.000000e+00 : f32
    %163 = vector.broadcast %cst_39 : f32 to vector<16x128xf32>
    %164 = arith.addf %163, %162 : vector<16x128xf32>
    %165 = arith.divf %163, %164 : vector<16x128xf32>
    %166 = math.tanh %160 : vector<16x128xf32>
    %167 = vector.extract_strided_slice %165 {offsets = [0, 0], sizes = [16, 32], strides = [1, 1]} : vector<16x128xf32> to vector<16x32xf32>
    %168 = vector.extract_strided_slice %165 {offsets = [0, 32], sizes = [16, 32], strides = [1, 1]} : vector<16x128xf32> to vector<16x32xf32>
    %169 = vector.extract_strided_slice %166 {offsets = [0, 64], sizes = [16, 32], strides = [1, 1]} : vector<16x128xf32> to vector<16x32xf32>
    %170 = vector.extract_strided_slice %165 {offsets = [0, 96], sizes = [16, 32], strides = [1, 1]} : vector<16x128xf32> to vector<16x32xf32>
    %171 = arith.mulf %168, %153 : vector<16x32xf32>
    %172 = arith.mulf %167, %169 : vector<16x32xf32>
    %173 = arith.addf %171, %172 : vector<16x32xf32>
    %174 = math.tanh %173 : vector<16x32xf32>
    %175 = arith.mulf %170, %174 : vector<16x32xf32>
    %c112 = arith.constant 112 : index
    %c0_40 = arith.constant 0 : index
    %176 = vector.load %arg11[%c112, %c0_40] : memref<128x32xf32, #tpu.memory_space<vmem>>, vector<16x32xf32>
    tpu.vector_store %arg11[%c112, %c0_40], %175 {strides = array<i32>} : memref<128x32xf32, #tpu.memory_space<vmem>>, vector<16x32xf32>,
    %c0_41 = arith.constant 0 : index
    %c0_42 = arith.constant 0 : index
    %177 = vector.load %arg11[%c0_41, %c0_42] : memref<128x32xf32, #tpu.memory_space<vmem>>, vector<128x32xf32>
    %178 = arith.truncf %177 : vector<128x32xf32> to vector<128x32xbf16>
    %cst_43 = arith.constant dense<0.000000e+00> : vector<128x32xf32>
    %179 = tpu.matmul %0, %178, %cst_43 {dimension_numbers = #tpu.dot_dimension_numbers<[1], [0], [0], [1], [0, 0, 1, 1], [], []>} : vector<128x128xbf16>, vector<128x32xbf16>, vector<128x32xf32> -> vector<128x32xf32>
    %180 = arith.truncf %179 : vector<128x32xf32> to vector<128x32xbf16>
    %c0_44 = arith.constant 0 : index
    %c0_45 = arith.constant 0 : index
    %181 = vector.load %arg3[%c0_44, %c0_45] : memref<32x32xbf16, #tpu.memory_space<vmem>>, vector<32x32xbf16>
    %cst_46 = arith.constant dense<0.000000e+00> : vector<128x32xf32>
    %182 = tpu.matmul %180, %181, %cst_46 {dimension_numbers = #tpu.dot_dimension_numbers<[1], [0], [0], [1], [0, 0, 1, 1], [], []>} : vector<128x32xbf16>, vector<32x32xbf16>, vector<128x32xf32> -> vector<128x32xf32>
    %cst_47 = arith.constant 0.000000e+00 : f32
    %183 = vector.broadcast %cst_47 : f32 to vector<128x32xf32>
    %184 = arith.maximumf %182, %183 : vector<128x32xf32>
    %185 = arith.truncf %184 : vector<128x32xf32> to vector<128x32xbf16>
    %c0_48 = arith.constant 0 : index
    %c0_49 = arith.constant 0 : index
    %186 = vector.load %arg7[%c0_48, %c0_49] : memref<32x128xbf16, #tpu.memory_space<vmem>>, vector<32x128xbf16>
    %cst_50 = arith.constant dense<0.000000e+00> : vector<128x128xf32>
    %187 = tpu.matmul %185, %186, %cst_50 {dimension_numbers = #tpu.dot_dimension_numbers<[1], [0], [0], [1], [0, 0, 1, 1], [], []>} : vector<128x32xbf16>, vector<32x128xbf16>, vector<128x128xf32> -> vector<128x128xf32>
    %c0_51 = arith.constant 0 : index
    %c0_52 = arith.constant 0 : index
    %188 = vector.load %arg9[%c0_51, %c0_52] : memref<1x128xf32, #tpu.memory_space<vmem>>, vector<1x128xf32>
    %189 = vector.broadcast %188 : vector<1x128xf32> to vector<128x128xf32>
    %190 = arith.addf %187, %189 : vector<128x128xf32>
    %c0_53 = arith.constant 0 : index
    %c0_54 = arith.constant 0 : index
    %191 = vector.load %arg8[%c0_53, %c0_54] : memref<32x128xbf16, #tpu.memory_space<vmem>>, vector<32x128xbf16>
    %cst_55 = arith.constant 0.000000e+00 : f32
    %192 = vector.broadcast %cst_55 : f32 to vector<16x32xf32>
    %cst_56 = arith.constant 0.000000e+00 : f32
    %193 = vector.broadcast %cst_56 : f32 to vector<16x32xf32>
    %194 = vector.extract_strided_slice %190 {offsets = [0, 0], sizes = [16, 128], strides = [1, 1]} : vector<128x128xf32> to vector<16x128xf32>
    %195 = arith.truncf %192 : vector<16x32xf32> to vector<16x32xbf16>
    %cst_57 = arith.constant dense<0.000000e+00> : vector<16x128xf32>
    %196 = tpu.matmul %195, %191, %cst_57 {dimension_numbers = #tpu.dot_dimension_numbers<[1], [0], [0], [1], [0, 0, 1, 1], [], []>} : vector<16x32xbf16>, vector<32x128xbf16>, vector<16x128xf32> -> vector<16x128xf32>
    %197 = arith.addf %194, %196 : vector<16x128xf32>
    %198 = arith.negf %197 : vector<16x128xf32>
    %199 = math.exp %198 : vector<16x128xf32>
    %cst_58 = arith.constant 1.000000e+00 : f32
    %200 = vector.broadcast %cst_58 : f32 to vector<16x128xf32>
    %201 = arith.addf %200, %199 : vector<16x128xf32>
    %202 = arith.divf %200, %201 : vector<16x128xf32>
    %203 = math.tanh %197 : vector<16x128xf32>
    %204 = vector.extract_strided_slice %202 {offsets = [0, 0], sizes = [16, 32], strides = [1, 1]} : vector<16x128xf32> to vector<16x32xf32>
    %205 = vector.extract_strided_slice %202 {offsets = [0, 32], sizes = [16, 32], strides = [1, 1]} : vector<16x128xf32> to vector<16x32xf32>
    %206 = vector.extract_strided_slice %203 {offsets = [0, 64], sizes = [16, 32], strides = [1, 1]} : vector<16x128xf32> to vector<16x32xf32>
    %207 = vector.extract_strided_slice %202 {offsets = [0, 96], sizes = [16, 32], strides = [1, 1]} : vector<16x128xf32> to vector<16x32xf32>
    %208 = arith.mulf %205, %193 : vector<16x32xf32>
    %209 = arith.mulf %204, %206 : vector<16x32xf32>
    %210 = arith.addf %208, %209 : vector<16x32xf32>
    %211 = math.tanh %210 : vector<16x32xf32>
    %212 = arith.mulf %207, %211 : vector<16x32xf32>
    %213 = vector.extract_strided_slice %190 {offsets = [16, 0], sizes = [16, 128], strides = [1, 1]} : vector<128x128xf32> to vector<16x128xf32>
    %214 = arith.truncf %212 : vector<16x32xf32> to vector<16x32xbf16>
    %cst_59 = arith.constant dense<0.000000e+00> : vector<16x128xf32>
    %215 = tpu.matmul %214, %191, %cst_59 {dimension_numbers = #tpu.dot_dimension_numbers<[1], [0], [0], [1], [0, 0, 1, 1], [], []>} : vector<16x32xbf16>, vector<32x128xbf16>, vector<16x128xf32> -> vector<16x128xf32>
    %216 = arith.addf %213, %215 : vector<16x128xf32>
    %217 = arith.negf %216 : vector<16x128xf32>
    %218 = math.exp %217 : vector<16x128xf32>
    %cst_60 = arith.constant 1.000000e+00 : f32
    %219 = vector.broadcast %cst_60 : f32 to vector<16x128xf32>
    %220 = arith.addf %219, %218 : vector<16x128xf32>
    %221 = arith.divf %219, %220 : vector<16x128xf32>
    %222 = math.tanh %216 : vector<16x128xf32>
    %223 = vector.extract_strided_slice %221 {offsets = [0, 0], sizes = [16, 32], strides = [1, 1]} : vector<16x128xf32> to vector<16x32xf32>
    %224 = vector.extract_strided_slice %221 {offsets = [0, 32], sizes = [16, 32], strides = [1, 1]} : vector<16x128xf32> to vector<16x32xf32>
    %225 = vector.extract_strided_slice %222 {offsets = [0, 64], sizes = [16, 32], strides = [1, 1]} : vector<16x128xf32> to vector<16x32xf32>
    %226 = vector.extract_strided_slice %221 {offsets = [0, 96], sizes = [16, 32], strides = [1, 1]} : vector<16x128xf32> to vector<16x32xf32>
    %227 = arith.mulf %224, %210 : vector<16x32xf32>
    %228 = arith.mulf %223, %225 : vector<16x32xf32>
    %229 = arith.addf %227, %228 : vector<16x32xf32>
    %230 = math.tanh %229 : vector<16x32xf32>
    %231 = arith.mulf %226, %230 : vector<16x32xf32>
    %232 = vector.extract_strided_slice %190 {offsets = [32, 0], sizes = [16, 128], strides = [1, 1]} : vector<128x128xf32> to vector<16x128xf32>
    %233 = arith.truncf %231 : vector<16x32xf32> to vector<16x32xbf16>
    %cst_61 = arith.constant dense<0.000000e+00> : vector<16x128xf32>
    %234 = tpu.matmul %233, %191, %cst_61 {dimension_numbers = #tpu.dot_dimension_numbers<[1], [0], [0], [1], [0, 0, 1, 1], [], []>} : vector<16x32xbf16>, vector<32x128xbf16>, vector<16x128xf32> -> vector<16x128xf32>
    %235 = arith.addf %232, %234 : vector<16x128xf32>
    %236 = arith.negf %235 : vector<16x128xf32>
    %237 = math.exp %236 : vector<16x128xf32>
    %cst_62 = arith.constant 1.000000e+00 : f32
    %238 = vector.broadcast %cst_62 : f32 to vector<16x128xf32>
    %239 = arith.addf %238, %237 : vector<16x128xf32>
    %240 = arith.divf %238, %239 : vector<16x128xf32>
    %241 = math.tanh %235 : vector<16x128xf32>
    %242 = vector.extract_strided_slice %240 {offsets = [0, 0], sizes = [16, 32], strides = [1, 1]} : vector<16x128xf32> to vector<16x32xf32>
    %243 = vector.extract_strided_slice %240 {offsets = [0, 32], sizes = [16, 32], strides = [1, 1]} : vector<16x128xf32> to vector<16x32xf32>
    %244 = vector.extract_strided_slice %241 {offsets = [0, 64], sizes = [16, 32], strides = [1, 1]} : vector<16x128xf32> to vector<16x32xf32>
    %245 = vector.extract_strided_slice %240 {offsets = [0, 96], sizes = [16, 32], strides = [1, 1]} : vector<16x128xf32> to vector<16x32xf32>
    %246 = arith.mulf %243, %229 : vector<16x32xf32>
    %247 = arith.mulf %242, %244 : vector<16x32xf32>
    %248 = arith.addf %246, %247 : vector<16x32xf32>
    %249 = math.tanh %248 : vector<16x32xf32>
    %250 = arith.mulf %245, %249 : vector<16x32xf32>
    %251 = vector.extract_strided_slice %190 {offsets = [48, 0], sizes = [16, 128], strides = [1, 1]} : vector<128x128xf32> to vector<16x128xf32>
    %252 = arith.truncf %250 : vector<16x32xf32> to vector<16x32xbf16>
    %cst_63 = arith.constant dense<0.000000e+00> : vector<16x128xf32>
    %253 = tpu.matmul %252, %191, %cst_63 {dimension_numbers = #tpu.dot_dimension_numbers<[1], [0], [0], [1], [0, 0, 1, 1], [], []>} : vector<16x32xbf16>, vector<32x128xbf16>, vector<16x128xf32> -> vector<16x128xf32>
    %254 = arith.addf %251, %253 : vector<16x128xf32>
    %255 = arith.negf %254 : vector<16x128xf32>
    %256 = math.exp %255 : vector<16x128xf32>
    %cst_64 = arith.constant 1.000000e+00 : f32
    %257 = vector.broadcast %cst_64 : f32 to vector<16x128xf32>
    %258 = arith.addf %257, %256 : vector<16x128xf32>
    %259 = arith.divf %257, %258 : vector<16x128xf32>
    %260 = math.tanh %254 : vector<16x128xf32>
    %261 = vector.extract_strided_slice %259 {offsets = [0, 0], sizes = [16, 32], strides = [1, 1]} : vector<16x128xf32> to vector<16x32xf32>
    %262 = vector.extract_strided_slice %259 {offsets = [0, 32], sizes = [16, 32], strides = [1, 1]} : vector<16x128xf32> to vector<16x32xf32>
    %263 = vector.extract_strided_slice %260 {offsets = [0, 64], sizes = [16, 32], strides = [1, 1]} : vector<16x128xf32> to vector<16x32xf32>
    %264 = vector.extract_strided_slice %259 {offsets = [0, 96], sizes = [16, 32], strides = [1, 1]} : vector<16x128xf32> to vector<16x32xf32>
    %265 = arith.mulf %262, %248 : vector<16x32xf32>
    %266 = arith.mulf %261, %263 : vector<16x32xf32>
    %267 = arith.addf %265, %266 : vector<16x32xf32>
    %268 = math.tanh %267 : vector<16x32xf32>
    %269 = arith.mulf %264, %268 : vector<16x32xf32>
    %270 = vector.extract_strided_slice %190 {offsets = [64, 0], sizes = [16, 128], strides = [1, 1]} : vector<128x128xf32> to vector<16x128xf32>
    %271 = arith.truncf %269 : vector<16x32xf32> to vector<16x32xbf16>
    %cst_65 = arith.constant dense<0.000000e+00> : vector<16x128xf32>
    %272 = tpu.matmul %271, %191, %cst_65 {dimension_numbers = #tpu.dot_dimension_numbers<[1], [0], [0], [1], [0, 0, 1, 1], [], []>} : vector<16x32xbf16>, vector<32x128xbf16>, vector<16x128xf32> -> vector<16x128xf32>
    %273 = arith.addf %270, %272 : vector<16x128xf32>
    %274 = arith.negf %273 : vector<16x128xf32>
    %275 = math.exp %274 : vector<16x128xf32>
    %cst_66 = arith.constant 1.000000e+00 : f32
    %276 = vector.broadcast %cst_66 : f32 to vector<16x128xf32>
    %277 = arith.addf %276, %275 : vector<16x128xf32>
    %278 = arith.divf %276, %277 : vector<16x128xf32>
    %279 = math.tanh %273 : vector<16x128xf32>
    %280 = vector.extract_strided_slice %278 {offsets = [0, 0], sizes = [16, 32], strides = [1, 1]} : vector<16x128xf32> to vector<16x32xf32>
    %281 = vector.extract_strided_slice %278 {offsets = [0, 32], sizes = [16, 32], strides = [1, 1]} : vector<16x128xf32> to vector<16x32xf32>
    %282 = vector.extract_strided_slice %279 {offsets = [0, 64], sizes = [16, 32], strides = [1, 1]} : vector<16x128xf32> to vector<16x32xf32>
    %283 = vector.extract_strided_slice %278 {offsets = [0, 96], sizes = [16, 32], strides = [1, 1]} : vector<16x128xf32> to vector<16x32xf32>
    %284 = arith.mulf %281, %267 : vector<16x32xf32>
    %285 = arith.mulf %280, %282 : vector<16x32xf32>
    %286 = arith.addf %284, %285 : vector<16x32xf32>
    %287 = math.tanh %286 : vector<16x32xf32>
    %288 = arith.mulf %283, %287 : vector<16x32xf32>
    %289 = vector.extract_strided_slice %190 {offsets = [80, 0], sizes = [16, 128], strides = [1, 1]} : vector<128x128xf32> to vector<16x128xf32>
    %290 = arith.truncf %288 : vector<16x32xf32> to vector<16x32xbf16>
    %cst_67 = arith.constant dense<0.000000e+00> : vector<16x128xf32>
    %291 = tpu.matmul %290, %191, %cst_67 {dimension_numbers = #tpu.dot_dimension_numbers<[1], [0], [0], [1], [0, 0, 1, 1], [], []>} : vector<16x32xbf16>, vector<32x128xbf16>, vector<16x128xf32> -> vector<16x128xf32>
    %292 = arith.addf %289, %291 : vector<16x128xf32>
    %293 = arith.negf %292 : vector<16x128xf32>
    %294 = math.exp %293 : vector<16x128xf32>
    %cst_68 = arith.constant 1.000000e+00 : f32
    %295 = vector.broadcast %cst_68 : f32 to vector<16x128xf32>
    %296 = arith.addf %295, %294 : vector<16x128xf32>
    %297 = arith.divf %295, %296 : vector<16x128xf32>
    %298 = math.tanh %292 : vector<16x128xf32>
    %299 = vector.extract_strided_slice %297 {offsets = [0, 0], sizes = [16, 32], strides = [1, 1]} : vector<16x128xf32> to vector<16x32xf32>
    %300 = vector.extract_strided_slice %297 {offsets = [0, 32], sizes = [16, 32], strides = [1, 1]} : vector<16x128xf32> to vector<16x32xf32>
    %301 = vector.extract_strided_slice %298 {offsets = [0, 64], sizes = [16, 32], strides = [1, 1]} : vector<16x128xf32> to vector<16x32xf32>
    %302 = vector.extract_strided_slice %297 {offsets = [0, 96], sizes = [16, 32], strides = [1, 1]} : vector<16x128xf32> to vector<16x32xf32>
    %303 = arith.mulf %300, %286 : vector<16x32xf32>
    %304 = arith.mulf %299, %301 : vector<16x32xf32>
    %305 = arith.addf %303, %304 : vector<16x32xf32>
    %306 = math.tanh %305 : vector<16x32xf32>
    %307 = arith.mulf %302, %306 : vector<16x32xf32>
    %308 = vector.extract_strided_slice %190 {offsets = [96, 0], sizes = [16, 128], strides = [1, 1]} : vector<128x128xf32> to vector<16x128xf32>
    %309 = arith.truncf %307 : vector<16x32xf32> to vector<16x32xbf16>
    %cst_69 = arith.constant dense<0.000000e+00> : vector<16x128xf32>
    %310 = tpu.matmul %309, %191, %cst_69 {dimension_numbers = #tpu.dot_dimension_numbers<[1], [0], [0], [1], [0, 0, 1, 1], [], []>} : vector<16x32xbf16>, vector<32x128xbf16>, vector<16x128xf32> -> vector<16x128xf32>
    %311 = arith.addf %308, %310 : vector<16x128xf32>
    %312 = arith.negf %311 : vector<16x128xf32>
    %313 = math.exp %312 : vector<16x128xf32>
    %cst_70 = arith.constant 1.000000e+00 : f32
    %314 = vector.broadcast %cst_70 : f32 to vector<16x128xf32>
    %315 = arith.addf %314, %313 : vector<16x128xf32>
    %316 = arith.divf %314, %315 : vector<16x128xf32>
    %317 = math.tanh %311 : vector<16x128xf32>
    %318 = vector.extract_strided_slice %316 {offsets = [0, 0], sizes = [16, 32], strides = [1, 1]} : vector<16x128xf32> to vector<16x32xf32>
    %319 = vector.extract_strided_slice %316 {offsets = [0, 32], sizes = [16, 32], strides = [1, 1]} : vector<16x128xf32> to vector<16x32xf32>
    %320 = vector.extract_strided_slice %317 {offsets = [0, 64], sizes = [16, 32], strides = [1, 1]} : vector<16x128xf32> to vector<16x32xf32>
    %321 = vector.extract_strided_slice %316 {offsets = [0, 96], sizes = [16, 32], strides = [1, 1]} : vector<16x128xf32> to vector<16x32xf32>
    %322 = arith.mulf %319, %305 : vector<16x32xf32>
    %323 = arith.mulf %318, %320 : vector<16x32xf32>
    %324 = arith.addf %322, %323 : vector<16x32xf32>
    %325 = math.tanh %324 : vector<16x32xf32>
    %326 = arith.mulf %321, %325 : vector<16x32xf32>
    %327 = vector.extract_strided_slice %190 {offsets = [112, 0], sizes = [16, 128], strides = [1, 1]} : vector<128x128xf32> to vector<16x128xf32>
    %328 = arith.truncf %326 : vector<16x32xf32> to vector<16x32xbf16>
    %cst_71 = arith.constant dense<0.000000e+00> : vector<16x128xf32>
    %329 = tpu.matmul %328, %191, %cst_71 {dimension_numbers = #tpu.dot_dimension_numbers<[1], [0], [0], [1], [0, 0, 1, 1], [], []>} : vector<16x32xbf16>, vector<32x128xbf16>, vector<16x128xf32> -> vector<16x128xf32>
    %330 = arith.addf %327, %329 : vector<16x128xf32>
    %331 = arith.negf %330 : vector<16x128xf32>
    %332 = math.exp %331 : vector<16x128xf32>
    %cst_72 = arith.constant 1.000000e+00 : f32
    %333 = vector.broadcast %cst_72 : f32 to vector<16x128xf32>
    %334 = arith.addf %333, %332 : vector<16x128xf32>
    %335 = arith.divf %333, %334 : vector<16x128xf32>
    %336 = math.tanh %330 : vector<16x128xf32>
    %337 = vector.extract_strided_slice %335 {offsets = [0, 0], sizes = [16, 32], strides = [1, 1]} : vector<16x128xf32> to vector<16x32xf32>
    %338 = vector.extract_strided_slice %335 {offsets = [0, 32], sizes = [16, 32], strides = [1, 1]} : vector<16x128xf32> to vector<16x32xf32>
    %339 = vector.extract_strided_slice %336 {offsets = [0, 64], sizes = [16, 32], strides = [1, 1]} : vector<16x128xf32> to vector<16x32xf32>
    %340 = vector.extract_strided_slice %335 {offsets = [0, 96], sizes = [16, 32], strides = [1, 1]} : vector<16x128xf32> to vector<16x32xf32>
    %341 = arith.mulf %338, %324 : vector<16x32xf32>
    %342 = arith.mulf %337, %339 : vector<16x32xf32>
    %343 = arith.addf %341, %342 : vector<16x32xf32>
    %344 = math.tanh %343 : vector<16x32xf32>
    %345 = arith.mulf %340, %344 : vector<16x32xf32>
    %c0_73 = arith.constant 0 : index
    %c0_74 = arith.constant 0 : index
    %346 = vector.load %arg10[%c0_73, %c0_74] : memref<16x32xf32, #tpu.memory_space<vmem>>, vector<16x32xf32>
    tpu.vector_store %arg10[%c0_73, %c0_74], %345 {strides = array<i32>} : memref<16x32xf32, #tpu.memory_space<vmem>>, vector<16x32xf32>,
    return
  }
}

</mosaic_0001>

<llo_original>
// kernel: tpu_custom_call.1
$region0: #{tpu_custom_call.1}
  #allocation0 [shape = 'u32[]', space=smem, size = 0x4, offset = 0x4, fixed_abs, tag = 'smem constant byte address 0x4 - core index']
  #allocation1 [shape = 'u32[144,128]{1,0:T(1,128)}', space=vmem, size = 0x12000, scoped, tag = 'internal scratch']
  #allocation2 [shape = 'f32[128,32]{1,0:T(8,128)}', space=vmem, size = 0x10000, scoped, tag = 'scratch operand']
  %s0 = inlined_call_operand.vmem [shape: bf16[128,128], index: 0, kind: input, shape index: {}]
  %s1 = inlined_call_operand.vmem [shape: bf16[128,16], index: 1, kind: input, shape index: {}]
  %s2 = inlined_call_operand.hbm [shape: bf16[16,32], index: 2, kind: input, shape index: {}]
  %s3 = inlined_call_operand.vmem [shape: bf16[32,32], index: 3, kind: input, shape index: {}]
  %s4 = inlined_call_operand.hbm [shape: bf16[32,128], index: 4, kind: input, shape index: {}]
  %s5 = inlined_call_operand.hbm [shape: bf16[32,128], index: 5, kind: input, shape index: {}]
  %s6 = inlined_call_operand.vmem [shape: f32[1,128], index: 6, kind: input, shape index: {}]
  %s7 = inlined_call_operand.vmem [shape: bf16[32,128], index: 7, kind: input, shape index: {}]
  %s8 = inlined_call_operand.hbm [shape: bf16[32,128], index: 8, kind: input, shape index: {}]
  %s9 = inlined_call_operand.vmem [shape: f32[1,128], index: 9, kind: input, shape index: {}]
  %s10 = inlined_call_operand.hbm [shape: f32[16,32], index: 10, kind: output, shape index: {}]
  %s11 = sld [smem:[#allocation0]]
  $region66: #{tpu_custom_call.1} parent=0
    _
  %s13 = ssub.s32 1, %s11
  %s14 = scalar_select 0, %s13, %s11
  $region1: #{tpu_custom_call.1} parent=0
    #allocation3 [shape = 'u8[4096]{0}', space=vmem, size = 0x1000, scoped, tag = 'input window, operand 2, single buffered']
    #allocation4 [shape = 's32[1]{0}', space=sflag, size = 0x4, scoped, tag = 'scoped memory for tpu_custom_call.1']
    #allocation5 [shape = 's32[1]{0}', space=sflag, size = 0x4, scoped, tag = 'scoped memory for tpu_custom_call.1']
    #allocation6 [shape = 'u8[8192]{0}', space=vmem, size = 0x2000, scoped, tag = 'input window, operand 4, single buffered']
    #allocation7 [shape = 's32[1]{0}', space=sflag, size = 0x4, scoped, tag = 'scoped memory for tpu_custom_call.1']
    #allocation8 [shape = 'u8[8192]{0}', space=vmem, size = 0x2000, scoped, tag = 'input window, operand 5, single buffered']
    #allocation9 [shape = 'u8[8192]{0}', space=vmem, size = 0x2000, scoped, tag = 'input window, operand 8, single buffered']
    #allocation10 [shape = 's32[1]{0}', space=sflag, size = 0x4, scoped, tag = 'scoped memory for tpu_custom_call.1']
    #allocation11 [shape = 'u8[8192]{0}', space=vmem, size = 0x2000, scoped, tag = 'output window, operand 0, single buffered']
    %15 = vsyncpa [#allocation4], 0
    %16 = vsyncpa [#allocation7], 0
    %17 = vsyncpa [#allocation10], 0
    %18 = vsyncpa [#allocation5], 0
    // Predicated region
    $region2: #{tpu_custom_call.1} parent=1 // pred_check
      _
    $region3: #{tpu_custom_call.1} parent=1 // pred_check_branch
      %20 = sbr.rel (0) target = $region5
    $region4: #{tpu_custom_call.1} parent=1 // pred_region
      _
    $region5: #{tpu_custom_call.1} parent=1 // pred_fallthru
      _
    // Predicated region
    $region6: #{tpu_custom_call.1} parent=1 // pred_check
      _
    $region7: #{tpu_custom_call.1} parent=1 // pred_check_branch
      %22 = sbr.rel (0) target = $region9
    $region8: #{tpu_custom_call.1} parent=1 // pred_region
      _
    $region9: #{tpu_custom_call.1} parent=1 // pred_fallthru
      _
    // Predicated region
    $region10: #{tpu_custom_call.1} parent=1 // pred_check
      _
    $region11: #{tpu_custom_call.1} parent=1 // pred_check_branch
      %24 = sbr.rel (0) target = $region13
    $region12: #{tpu_custom_call.1} parent=1 // pred_region
      %s26 = ssub.s32 128, 128
      %27 = vsyncadd [#allocation4], %s26
      %s28 = sshll.u32 [#allocation3], 4
      %s29 = int_to_ptr.vmem [resolvable:$true] %s28
      %34 = dma.hbm_to_vmem [thread:$0]  %s2, 128, %s29, [#allocation4], 64, 64, 4
    $region13: #{tpu_custom_call.1} parent=1 // pred_fallthru
      _
    // Predicated region
    $region14: #{tpu_custom_call.1} parent=1 // pred_check
      _
    $region15: #{tpu_custom_call.1} parent=1 // pred_check_branch
      %36 = sbr.rel (0) target = $region17
    $region16: #{tpu_custom_call.1} parent=1 // pred_region
      _
    $region17: #{tpu_custom_call.1} parent=1 // pred_fallthru
      _
    // Predicated region
    $region18: #{tpu_custom_call.1} parent=1 // pred_check
      _
    $region19: #{tpu_custom_call.1} parent=1 // pred_check_branch
      %38 = sbr.rel (0) target = $region21
    $region20: #{tpu_custom_call.1} parent=1 // pred_region
      %s40 = ssub.s32 256, 256
      %41 = vsyncadd [#allocation7], %s40
      %s42 = sshll.u32 [#allocation6], 4
      %s43 = int_to_ptr.vmem [resolvable:$true] %s42
      %48 = dma.hbm_to_vmem [thread:$0]  %s4, 256, %s43, [#allocation7], 64, 64, 4
    $region21: #{tpu_custom_call.1} parent=1 // pred_fallthru
      _
    // Predicated region
    $region22: #{tpu_custom_call.1} parent=1 // pred_check
      _
    $region23: #{tpu_custom_call.1} parent=1 // pred_check_branch
      %50 = sbr.rel (0) target = $region25
    $region24: #{tpu_custom_call.1} parent=1 // pred_region
      %s52 = ssub.s32 256, 256
      %53 = vsyncadd [#allocation7], %s52
      %s54 = sshll.u32 [#allocation8], 4
      %s55 = int_to_ptr.vmem [resolvable:$true] %s54
      %60 = dma.hbm_to_vmem [thread:$0]  %s5, 256, %s55, [#allocation7], 64, 64, 4
    $region25: #{tpu_custom_call.1} parent=1 // pred_fallthru
      _
    // Predicated region
    $region26: #{tpu_custom_call.1} parent=1 // pred_check
      _
    $region27: #{tpu_custom_call.1} parent=1 // pred_check_branch
      %62 = sbr.rel (0) target = $region29
    $region28: #{tpu_custom_call.1} parent=1 // pred_region
      _
    $region29: #{tpu_custom_call.1} parent=1 // pred_fallthru
      _
    // Predicated region
    $region30: #{tpu_custom_call.1} parent=1 // pred_check
      _
    $region31: #{tpu_custom_call.1} parent=1 // pred_check_branch
      %64 = sbr.rel (0) target = $region33
    $region32: #{tpu_custom_call.1} parent=1 // pred_region
      _
    $region33: #{tpu_custom_call.1} parent=1 // pred_fallthru
      _
    // Predicated region
    $region34: #{tpu_custom_call.1} parent=1 // pred_check
      _
    $region35: #{tpu_custom_call.1} parent=1 // pred_check_branch
      %66 = sbr.rel (0) target = $region37
    $region36: #{tpu_custom_call.1} parent=1 // pred_region
      %s68 = ssub.s32 256, 256
      %69 = vsyncadd [#allocation10], %s68
      %s70 = sshll.u32 [#allocation9], 4
      %s71 = int_to_ptr.vmem [resolvable:$true] %s70
      %76 = dma.hbm_to_vmem [thread:$0]  %s8, 256, %s71, [#allocation10], 64, 64, 4
    $region37: #{tpu_custom_call.1} parent=1 // pred_fallthru
      _
    // Predicated region
    $region38: #{tpu_custom_call.1} parent=1 // pred_check
      _
    $region39: #{tpu_custom_call.1} parent=1 // pred_check_branch
      %78 = sbr.rel (0) target = $region41
    $region40: #{tpu_custom_call.1} parent=1 // pred_region
      _
    $region41: #{tpu_custom_call.1} parent=1 // pred_fallthru
      _
    // Predicated region
    $region42: #{tpu_custom_call.1} parent=1 // pred_check
      _
    $region43: #{tpu_custom_call.1} parent=1 // pred_check_branch
      %80 = sbr.rel (0) target = $region45
    $region44: #{tpu_custom_call.1} parent=1 // pred_region
      %81 = dma.done [#allocation4], 128
    $region45: #{tpu_custom_call.1} parent=1 // pred_fallthru
      _
    // Predicated region
    $region46: #{tpu_custom_call.1} parent=1 // pred_check
      _
    $region47: #{tpu_custom_call.1} parent=1 // pred_check_branch
      %83 = sbr.rel (0) target = $region49
    $region48: #{tpu_custom_call.1} parent=1 // pred_region
      %84 = dma.done [#allocation7], 256
    $region49: #{tpu_custom_call.1} parent=1 // pred_fallthru
      _
    // Predicated region
    $region50: #{tpu_custom_call.1} parent=1 // pred_check
      _
    $region51: #{tpu_custom_call.1} parent=1 // pred_check_branch
      %86 = sbr.rel (0) target = $region53
    $region52: #{tpu_custom_call.1} parent=1 // pred_region
      %87 = dma.done [#allocation7], 256
    $region53: #{tpu_custom_call.1} parent=1 // pred_fallthru
      _
    // Predicated region
    $region54: #{tpu_custom_call.1} parent=1 // pred_check
      _
    $region55: #{tpu_custom_call.1} parent=1 // pred_check_branch
      %89 = sbr.rel (0) target = $region57
    $region56: #{tpu_custom_call.1} parent=1 // pred_region
      %90 = dma.done [#allocation10], 256
    $region57: #{tpu_custom_call.1} parent=1 // pred_fallthru
      _
    %v92 = vld [vmem:[%s0] sm:$0xf]
    %v93 = vld [vmem:[%s0 + $0x4] sm:$0xf]
    %v94 = vld [vmem:[%s0 + $0x8] sm:$0xf]
    %v95 = vld [vmem:[%s0 + $0xc] sm:$0xf]
    %v96 = vld [vmem:[%s0 + $0x10] sm:$0xf]
    %v97 = vld [vmem:[%s0 + $0x14] sm:$0xf]
    %v98 = vld [vmem:[%s0 + $0x18] sm:$0xf]
    %v99 = vld [vmem:[%s0 + $0x1c] sm:$0xf]
    %v100 = vld [vmem:[%s0 + $0x20] sm:$0xf]
    %v101 = vld [vmem:[%s0 + $0x24] sm:$0xf]
    %v102 = vld [vmem:[%s0 + $0x28] sm:$0xf]
    %v103 = vld [vmem:[%s0 + $0x2c] sm:$0xf]
    %v104 = vld [vmem:[%s0 + $0x30] sm:$0xf]
    %v105 = vld [vmem:[%s0 + $0x34] sm:$0xf]
    %v106 = vld [vmem:[%s0 + $0x38] sm:$0xf]
    %v107 = vld [vmem:[%s0 + $0x3c] sm:$0xf]
    %v108 = vld [vmem:[%s1] sm:$0xf]
    %v109 = vld [vmem:[%s1 + $0x4] sm:$0xf]
    %v110 = vld [vmem:[%s1 + $0x8] sm:$0xf]
    %v111 = vld [vmem:[%s1 + $0xc] sm:$0xf]
    %v112 = vld [vmem:[%s1 + $0x10] sm:$0xf]
    %v113 = vld [vmem:[%s1 + $0x14] sm:$0xf]
    %v114 = vld [vmem:[%s1 + $0x18] sm:$0xf]
    %v115 = vld [vmem:[%s1 + $0x1c] sm:$0xf]
    %v116 = vld [vmem:[%s1 + $0x20] sm:$0xf]
    %v117 = vld [vmem:[%s1 + $0x24] sm:$0xf]
    %v118 = vld [vmem:[%s1 + $0x28] sm:$0xf]
    %v119 = vld [vmem:[%s1 + $0x2c] sm:$0xf]
    %v120 = vld [vmem:[%s1 + $0x30] sm:$0xf]
    %v121 = vld [vmem:[%s1 + $0x34] sm:$0xf]
    %v122 = vld [vmem:[%s1 + $0x38] sm:$0xf]
    %v123 = vld [vmem:[%s1 + $0x3c] sm:$0xf]
    %v124 = vld [vmem:[#allocation3] sm:$0xf]
    %v125 = vld [vmem:[#allocation3 + $0x4] sm:$0xf]
    %v142 = vunpack.c.l.b16 %v108
    %v143 = vunpack.c.l.b16 %v109
    %v144 = vunpack.c.l.b16 %v110
    %v145 = vunpack.c.l.b16 %v111
    %v146 = vunpack.c.l.b16 %v112
    %v147 = vunpack.c.l.b16 %v113
    %v148 = vunpack.c.l.b16 %v114
    %v149 = vunpack.c.l.b16 %v115
    %v150 = vunpack.c.l.b16 %v116
    %v151 = vunpack.c.l.b16 %v117
    %v152 = vunpack.c.l.b16 %v118
    %v153 = vunpack.c.l.b16 %v119
    %v154 = vunpack.c.l.b16 %v120
    %v155 = vunpack.c.l.b16 %v121
    %v156 = vunpack.c.l.b16 %v122
    %v157 = vunpack.c.l.b16 %v123
    %v158 = vpack.c.b16 %v143, %v142
    %v159 = vpack.c.b16 %v145, %v144
    %v160 = vpack.c.b16 %v147, %v146
    %v161 = vpack.c.b16 %v149, %v148
    %v162 = vpack.c.b16 %v151, %v150
    %v163 = vpack.c.b16 %v153, %v152
    %v164 = vpack.c.b16 %v155, %v154
    %v165 = vpack.c.b16 %v157, %v156
    %v168 = vunpack.c.l.b16 %v124
    %v169 = vunpack.c.l.b16 %v125
    %v170 = vpack.c.b16 %v169, %v168
    %vm172 = vcmask 130048
    %v174 = vsel %vm172, %v158, 0
    %v177 = vsel %vm172, %v159, 0
    %v180 = vsel %vm172, %v160, 0
    %v183 = vsel %vm172, %v161, 0
    %v186 = vsel %vm172, %v162, 0
    %v189 = vsel %vm172, %v163, 0
    %v192 = vsel %vm172, %v164, 0
    %v195 = vsel %vm172, %v165, 0
    %197 = vmatprep.subr.bf16.mxu0 0
    %198 = vmatpush1.bf16.msra.mxu0 %v170
    %199 = vmatprep.subr.bf16.mxu0 0
    %200 = vmatpush1.bf16.msra.mxu0 0
    %201 = vmatprep.subr.bf16.mxu0 0
    %202 = vmatpush1.bf16.msra.mxu0 0
    %203 = vmatprep.subr.bf16.mxu0 0
    %204 = vmatpush1.bf16.msra.mxu0 0
    %205 = vmatprep.subr.bf16.mxu0 0
    %206 = vmatpush1.bf16.msra.mxu0 0
    %207 = vmatprep.subr.bf16.mxu0 0
    %208 = vmatpush1.bf16.msra.mxu0 0
    %209 = vmatprep.subr.bf16.mxu0 0
    %210 = vmatpush1.bf16.msra.mxu0 0
    %211 = vmatprep.subr.bf16.mxu0 0
    %212 = vmatpush1.bf16.msra.mxu0 0
    %213 = vmatprep.subr.bf16.mxu0 0
    %214 = vmatpush1.bf16.msra.mxu0 0
    %215 = vmatprep.subr.bf16.mxu0 0
    %216 = vmatpush1.bf16.msra.mxu0 0
    %217 = vmatprep.subr.bf16.mxu0 0
    %218 = vmatpush1.bf16.msra.mxu0 0
    %219 = vmatprep.subr.bf16.mxu0 0
    %220 = vmatpush1.bf16.msra.mxu0 0
    %221 = vmatprep.subr.bf16.mxu0 0
    %222 = vmatpush1.bf16.msra.mxu0 0
    %223 = vmatprep.subr.bf16.mxu0 0
    %224 = vmatpush1.bf16.msra.mxu0 0
    %225 = vmatprep.subr.bf16.mxu0 0
    %226 = vmatpush1.bf16.msra.mxu0 0
    %227 = vmatprep.subr.bf16.mxu0 0
    %228 = vmatpush1.bf16.msra.mxu0 0
    %229 = vmatprep.mubr.bf16.mxu0 0
    %230 = vmatmul.mubr.bf16.gmra.mrb[0].mxu0 %v174
    %v231 = vpop.f32.mrb[0].mxu0
    %v232 = vadd.f32 0.0, %v231
    %v233 = vpop.f32.mrb[0].mxu0
    %v234 = vpop.f32.mrb[0].mxu0
    %v235 = vadd.f32 0.0, %v234
    %v236 = vpop.f32.mrb[0].mxu0
    %237 = vmatprep.mubr.bf16.mxu0 0
    %238 = vmatmul.mubr.bf16.gmra.mrb[0].mxu0 %v177
    %v239 = vpop.f32.mrb[0].mxu0
    %v240 = vadd.f32 0.0, %v239
    %v241 = vpop.f32.mrb[0].mxu0
    %v242 = vpop.f32.mrb[0].mxu0
    %v243 = vadd.f32 0.0, %v242
    %v244 = vpop.f32.mrb[0].mxu0
    %245 = vmatprep.mubr.bf16.mxu0 0
    %246 = vmatmul.mubr.bf16.gmra.mrb[0].mxu0 %v180
    %v247 = vpop.f32.mrb[0].mxu0
    %v248 = vadd.f32 0.0, %v247
    %v249 = vpop.f32.mrb[0].mxu0
    %v250 = vpop.f32.mrb[0].mxu0
    %v251 = vadd.f32 0.0, %v250
    %v252 = vpop.f32.mrb[0].mxu0
    %253 = vmatprep.mubr.bf16.mxu0 0
    %254 = vmatmul.mubr.bf16.gmra.mrb[0].mxu0 %v183
    %v255 = vpop.f32.mrb[0].mxu0
    %v256 = vadd.f32 0.0, %v255
    %v257 = vpop.f32.mrb[0].mxu0
    %v258 = vpop.f32.mrb[0].mxu0
    %v259 = vadd.f32 0.0, %v258
    %v260 = vpop.f32.mrb[0].mxu0
    %261 = vmatprep.mubr.bf16.mxu0 0
    %262 = vmatmul.mubr.bf16.gmra.mrb[0].mxu0 %v186
    %v263 = vpop.f32.mrb[0].mxu0
    %v264 = vadd.f32 0.0, %v263
    %v265 = vpop.f32.mrb[0].mxu0
    %v266 = vpop.f32.mrb[0].mxu0
    %v267 = vadd.f32 0.0, %v266
    %v268 = vpop.f32.mrb[0].mxu0
    %269 = vmatprep.mubr.bf16.mxu0 0
    %270 = vmatmul.mubr.bf16.gmra.mrb[0].mxu0 %v189
    %v271 = vpop.f32.mrb[0].mxu0
    %v272 = vadd.f32 0.0, %v271
    %v273 = vpop.f32.mrb[0].mxu0
    %v274 = vpop.f32.mrb[0].mxu0
    %v275 = vadd.f32 0.0, %v274
    %v276 = vpop.f32.mrb[0].mxu0
    %277 = vmatprep.mubr.bf16.mxu0 0
    %278 = vmatmul.mubr.bf16.gmra.mrb[0].mxu0 %v192
    %v279 = vpop.f32.mrb[0].mxu0
    %v280 = vadd.f32 0.0, %v279
    %v281 = vpop.f32.mrb[0].mxu0
    %v282 = vpop.f32.mrb[0].mxu0
    %v283 = vadd.f32 0.0, %v282
    %v284 = vpop.f32.mrb[0].mxu0
    %285 = vmatprep.mubr.bf16.mxu0 0
    %286 = vmatmul.mubr.bf16.gmra.mrb[0].mxu0 %v195
    %v287 = vpop.f32.mrb[0].mxu0
    %v288 = vadd.f32 0.0, %v287
    %v289 = vpop.f32.mrb[0].mxu0
    %v290 = vpop.f32.mrb[0].mxu0
    %v291 = vadd.f32 0.0, %v290
    %v292 = vpop.f32.mrb[0].mxu0
    %293 = vdwg.mxu0
    %v294 = vpack.c.bf16 %v235, %v232
    %v295 = vpack.c.bf16 %v243, %v240
    %v296 = vpack.c.bf16 %v251, %v248
    %v297 = vpack.c.bf16 %v259, %v256
    %v298 = vpack.c.bf16 %v267, %v264
    %v299 = vpack.c.bf16 %v275, %v272
    %v300 = vpack.c.bf16 %v283, %v280
    %v301 = vpack.c.bf16 %v291, %v288
    %v318 = vunpack.c.l.b16 %v92
    %v319 = vunpack.c.l.b16 %v93
    %v320 = vunpack.c.l.b16 %v94
    %v321 = vunpack.c.l.b16 %v95
    %v322 = vunpack.c.l.b16 %v96
    %v323 = vunpack.c.l.b16 %v97
    %v324 = vunpack.c.l.b16 %v98
    %v325 = vunpack.c.l.b16 %v99
    %v326 = vunpack.c.l.b16 %v100
    %v327 = vunpack.c.l.b16 %v101
    %v328 = vunpack.c.l.b16 %v102
    %v329 = vunpack.c.l.b16 %v103
    %v330 = vunpack.c.l.b16 %v104
    %v331 = vunpack.c.l.b16 %v105
    %v332 = vunpack.c.l.b16 %v106
    %v333 = vunpack.c.l.b16 %v107
    %v334 = vpack.c.b16 %v319, %v318
    %v335 = vpack.c.b16 %v321, %v320
    %v336 = vpack.c.b16 %v323, %v322
    %v337 = vpack.c.b16 %v325, %v324
    %v338 = vpack.c.b16 %v327, %v326
    %v339 = vpack.c.b16 %v329, %v328
    %v340 = vpack.c.b16 %v331, %v330
    %v341 = vpack.c.b16 %v333, %v332
    %350 = vmatprep.subr.bf16.mxu0 0
    %351 = vmatpush1.bf16.msra.mxu0 %v294
    %352 = vmatprep.subr.bf16.mxu0 0
    %353 = vmatpush1.bf16.msra.mxu0 %v295
    %354 = vmatprep.subr.bf16.mxu0 0
    %355 = vmatpush1.bf16.msra.mxu0 %v296
    %356 = vmatprep.subr.bf16.mxu0 0
    %357 = vmatpush1.bf16.msra.mxu0 %v297
    %358 = vmatprep.subr.bf16.mxu0 0
    %359 = vmatpush1.bf16.msra.mxu0 %v298
    %360 = vmatprep.subr.bf16.mxu0 0
    %361 = vmatpush1.bf16.msra.mxu0 %v299
    %362 = vmatprep.subr.bf16.mxu0 0
    %363 = vmatpush1.bf16.msra.mxu0 %v300
    %364 = vmatprep.subr.bf16.mxu0 0
    %365 = vmatpush1.bf16.msra.mxu0 %v301
    %366 = vmatprep.subr.bf16.mxu0 0
    %367 = vmatpush1.bf16.msra.mxu0 0
    %368 = vmatprep.subr.bf16.mxu0 0
    %369 = vmatpush1.bf16.msra.mxu0 0
    %370 = vmatprep.subr.bf16.mxu0 0
    %371 = vmatpush1.bf16.msra.mxu0 0
    %372 = vmatprep.subr.bf16.mxu0 0
    %373 = vmatpush1.bf16.msra.mxu0 0
    %374 = vmatprep.subr.bf16.mxu0 0
    %375 = vmatpush1.bf16.msra.mxu0 0
    %376 = vmatprep.subr.bf16.mxu0 0
    %377 = vmatpush1.bf16.msra.mxu0 0
    %378 = vmatprep.subr.bf16.mxu0 0
    %379 = vmatpush1.bf16.msra.mxu0 0
    %380 = vmatprep.subr.bf16.mxu0 0
    %381 = vmatpush1.bf16.msra.mxu0 0
    %382 = vmatprep.mubr.bf16.mxu0 0
    %383 = vmatmul.mubr.bf16.gmra.mrb[0].mxu0 %v334
    %v384 = vpop.f32.mrb[0].mxu0
    %v385 = vadd.f32 0.0, %v384
    %v386 = vpop.f32.mrb[0].mxu0
    %v387 = vpop.f32.mrb[0].mxu0
    %v388 = vadd.f32 0.0, %v387
    %v389 = vpop.f32.mrb[0].mxu0
    %390 = vmatprep.mubr.bf16.mxu0 0
    %391 = vmatmul.mubr.bf16.gmra.mrb[0].mxu0 %v335
    %v392 = vpop.f32.mrb[0].mxu0
    %v393 = vadd.f32 0.0, %v392
    %v394 = vpop.f32.mrb[0].mxu0
    %v395 = vpop.f32.mrb[0].mxu0
    %v396 = vadd.f32 0.0, %v395
    %v397 = vpop.f32.mrb[0].mxu0
    %398 = vmatprep.mubr.bf16.mxu0 0
    %399 = vmatmul.mubr.bf16.gmra.mrb[0].mxu0 %v336
    %v400 = vpop.f32.mrb[0].mxu0
    %v401 = vadd.f32 0.0, %v400
    %v402 = vpop.f32.mrb[0].mxu0
    %v403 = vpop.f32.mrb[0].mxu0
    %v404 = vadd.f32 0.0, %v403
    %v405 = vpop.f32.mrb[0].mxu0
    %406 = vmatprep.mubr.bf16.mxu0 0
    %407 = vmatmul.mubr.bf16.gmra.mrb[0].mxu0 %v337
    %v408 = vpop.f32.mrb[0].mxu0
    %v409 = vadd.f32 0.0, %v408
    %v410 = vpop.f32.mrb[0].mxu0
    %v411 = vpop.f32.mrb[0].mxu0
    %v412 = vadd.f32 0.0, %v411
    %v413 = vpop.f32.mrb[0].mxu0
    %414 = vmatprep.mubr.bf16.mxu0 0
    %415 = vmatmul.mubr.bf16.gmra.mrb[0].mxu0 %v338
    %v416 = vpop.f32.mrb[0].mxu0
    %v417 = vadd.f32 0.0, %v416
    %v418 = vpop.f32.mrb[0].mxu0
    %v419 = vpop.f32.mrb[0].mxu0
    %v420 = vadd.f32 0.0, %v419
    %v421 = vpop.f32.mrb[0].mxu0
    %422 = vmatprep.mubr.bf16.mxu0 0
    %423 = vmatmul.mubr.bf16.gmra.mrb[0].mxu0 %v339
    %v424 = vpop.f32.mrb[0].mxu0
    %v425 = vadd.f32 0.0, %v424
    %v426 = vpop.f32.mrb[0].mxu0
    %v427 = vpop.f32.mrb[0].mxu0
    %v428 = vadd.f32 0.0, %v427
    %v429 = vpop.f32.mrb[0].mxu0
    %430 = vmatprep.mubr.bf16.mxu0 0
    %431 = vmatmul.mubr.bf16.gmra.mrb[0].mxu0 %v340
    %v432 = vpop.f32.mrb[0].mxu0
    %v433 = vadd.f32 0.0, %v432
    %v434 = vpop.f32.mrb[0].mxu0
    %v435 = vpop.f32.mrb[0].mxu0
    %v436 = vadd.f32 0.0, %v435
    %v437 = vpop.f32.mrb[0].mxu0
    %438 = vmatprep.mubr.bf16.mxu0 0
    %439 = vmatmul.mubr.bf16.gmra.mrb[0].mxu0 %v341
    %v440 = vpop.f32.mrb[0].mxu0
    %v441 = vadd.f32 0.0, %v440
    %v442 = vpop.f32.mrb[0].mxu0
    %v443 = vpop.f32.mrb[0].mxu0
    %v444 = vadd.f32 0.0, %v443
    %v445 = vpop.f32.mrb[0].mxu0
    %446 = vdwg.mxu0
    %v447 = vmax.f32 %v385, 0.0
    %v448 = vmax.f32 %v388, 0.0
    %v449 = vmax.f32 %v393, 0.0
    %v450 = vmax.f32 %v396, 0.0
    %v451 = vmax.f32 %v401, 0.0
    %v452 = vmax.f32 %v404, 0.0
    %v453 = vmax.f32 %v409, 0.0
    %v454 = vmax.f32 %v412, 0.0
    %v455 = vmax.f32 %v417, 0.0
    %v456 = vmax.f32 %v420, 0.0
    %v457 = vmax.f32 %v425, 0.0
    %v458 = vmax.f32 %v428, 0.0
    %v459 = vmax.f32 %v433, 0.0
    %v460 = vmax.f32 %v436, 0.0
    %v461 = vmax.f32 %v441, 0.0
    %v462 = vmax.f32 %v444, 0.0
    %v463 = vpack.c.bf16 %v448, %v447
    %v464 = vpack.c.bf16 %v450, %v449
    %v465 = vpack.c.bf16 %v452, %v451
    %v466 = vpack.c.bf16 %v454, %v453
    %v467 = vpack.c.bf16 %v456, %v455
    %v468 = vpack.c.bf16 %v458, %v457
    %v469 = vpack.c.bf16 %v460, %v459
    %v470 = vpack.c.bf16 %v462, %v461
    %v471 = vld [vmem:[#allocation6] sm:$0xf]
    %v472 = vld [vmem:[#allocation6 + $0x4] sm:$0xf]
    %v473 = vld [vmem:[#allocation6 + $0x8] sm:$0xf]
    %v474 = vld [vmem:[#allocation6 + $0xc] sm:$0xf]
    %v475 = vld [vmem:[%s6] sm:$0x1]
    %v477 = vlaneseq
    %v478 = vshrl.u32 %v477, 7
    %v479 = vsub.s32 0, %v478
    %v480 = vrot.slane %v475, %v479
    %v486 = vunpack.c.l.b16 %v471
    %v487 = vunpack.c.l.b16 %v472
    %v488 = vunpack.c.l.b16 %v473
    %v489 = vunpack.c.l.b16 %v474
    %v490 = vpack.c.b16 %v487, %v486
    %v491 = vpack.c.b16 %v489, %v488
    %vm494 = vcmask 261120
    %v496 = vsel %vm494, %v463, 0
    %v499 = vsel %vm494, %v464, 0
    %v502 = vsel %vm494, %v465, 0
    %v505 = vsel %vm494, %v466, 0
    %v508 = vsel %vm494, %v467, 0
    %v511 = vsel %vm494, %v468, 0
    %v514 = vsel %vm494, %v469, 0
    %v517 = vsel %vm494, %v470, 0
    %519 = vmatprep.subr.bf16.mxu0 0
    %520 = vmatpush1.bf16.msra.mxu0 %v490
    %521 = vmatprep.subr.bf16.mxu0 0
    %522 = vmatpush1.bf16.msra.mxu0 %v491
    %523 = vmatprep.subr.bf16.mxu0 0
    %524 = vmatpush1.bf16.msra.mxu0 0
    %525 = vmatprep.subr.bf16.mxu0 0
    %526 = vmatpush1.bf16.msra.mxu0 0
    %527 = vmatprep.subr.bf16.mxu0 0
    %528 = vmatpush1.bf16.msra.mxu0 0
    %529 = vmatprep.subr.bf16.mxu0 0
    %530 = vmatpush1.bf16.msra.mxu0 0
    %531 = vmatprep.subr.bf16.mxu0 0
    %532 = vmatpush1.bf16.msra.mxu0 0
    %533 = vmatprep.subr.bf16.mxu0 0
    %534 = vmatpush1.bf16.msra.mxu0 0
    %535 = vmatprep.subr.bf16.mxu0 0
    %536 = vmatpush1.bf16.msra.mxu0 0
    %537 = vmatprep.subr.bf16.mxu0 0
    %538 = vmatpush1.bf16.msra.mxu0 0
    %539 = vmatprep.subr.bf16.mxu0 0
    %540 = vmatpush1.bf16.msra.mxu0 0
    %541 = vmatprep.subr.bf16.mxu0 0
    %542 = vmatpush1.bf16.msra.mxu0 0
    %543 = vmatprep.subr.bf16.mxu0 0
    %544 = vmatpush1.bf16.msra.mxu0 0
    %545 = vmatprep.subr.bf16.mxu0 0
    %546 = vmatpush1.bf16.msra.mxu0 0
    %547 = vmatprep.subr.bf16.mxu0 0
    %548 = vmatpush1.bf16.msra.mxu0 0
    %549 = vmatprep.subr.bf16.mxu0 0
    %550 = vmatpush1.bf16.msra.mxu0 0
    %551 = vmatprep.mubr.bf16.mxu0 0
    %552 = vmatmul.mubr.bf16.gmra.mrb[0].mxu0 %v496
    %v553 = vpop.f32.mrb[0].mxu0
    %v554 = vadd.f32 %v480, %v553
    %v555 = vpop.f32.mrb[0].mxu0
    %v556 = vpop.f32.mrb[0].mxu0
    %v557 = vadd.f32 %v480, %v556
    %v558 = vpop.f32.mrb[0].mxu0
    %559 = vmatprep.mubr.bf16.mxu0 0
    %560 = vmatmul.mubr.bf16.gmra.mrb[0].mxu0 %v499
    %v561 = vpop.f32.mrb[0].mxu0
    %v562 = vadd.f32 %v480, %v561
    %v563 = vpop.f32.mrb[0].mxu0
    %v564 = vpop.f32.mrb[0].mxu0
    %v565 = vadd.f32 %v480, %v564
    %v566 = vpop.f32.mrb[0].mxu0
    %567 = vmatprep.mubr.bf16.mxu0 0
    %568 = vmatmul.mubr.bf16.gmra.mrb[0].mxu0 %v502
    %v569 = vpop.f32.mrb[0].mxu0
    %v570 = vadd.f32 %v480, %v569
    %v571 = vpop.f32.mrb[0].mxu0
    %v572 = vpop.f32.mrb[0].mxu0
    %v573 = vadd.f32 %v480, %v572
    %v574 = vpop.f32.mrb[0].mxu0
    %575 = vmatprep.mubr.bf16.mxu0 0
    %576 = vmatmul.mubr.bf16.gmra.mrb[0].mxu0 %v505
    %v577 = vpop.f32.mrb[0].mxu0
    %v578 = vadd.f32 %v480, %v577
    %v579 = vpop.f32.mrb[0].mxu0
    %v580 = vpop.f32.mrb[0].mxu0
    %v581 = vadd.f32 %v480, %v580
    %v582 = vpop.f32.mrb[0].mxu0
    %583 = vmatprep.mubr.bf16.mxu0 0
    %584 = vmatmul.mubr.bf16.gmra.mrb[0].mxu0 %v508
    %v585 = vpop.f32.mrb[0].mxu0
    %v586 = vadd.f32 %v480, %v585
    %v587 = vpop.f32.mrb[0].mxu0
    %v588 = vpop.f32.mrb[0].mxu0
    %v589 = vadd.f32 %v480, %v588
    %v590 = vpop.f32.mrb[0].mxu0
    %591 = vmatprep.mubr.bf16.mxu0 0
    %592 = vmatmul.mubr.bf16.gmra.mrb[0].mxu0 %v511
    %v593 = vpop.f32.mrb[0].mxu0
    %v594 = vadd.f32 %v480, %v593
    %v595 = vpop.f32.mrb[0].mxu0
    %v596 = vpop.f32.mrb[0].mxu0
    %v597 = vadd.f32 %v480, %v596
    %v598 = vpop.f32.mrb[0].mxu0
    %599 = vmatprep.mubr.bf16.mxu0 0
    %600 = vmatmul.mubr.bf16.gmra.mrb[0].mxu0 %v514
    %v601 = vpop.f32.mrb[0].mxu0
    %v602 = vadd.f32 %v480, %v601
    %v603 = vpop.f32.mrb[0].mxu0
    %v604 = vpop.f32.mrb[0].mxu0
    %v605 = vadd.f32 %v480, %v604
    %v606 = vpop.f32.mrb[0].mxu0
    %607 = vmatprep.mubr.bf16.mxu0 0
    %608 = vmatmul.mubr.bf16.gmra.mrb[0].mxu0 %v517
    %v609 = vpop.f32.mrb[0].mxu0
    %v610 = vadd.f32 %v480, %v609
    %v611 = vpop.f32.mrb[0].mxu0
    %v612 = vpop.f32.mrb[0].mxu0
    %v613 = vadd.f32 %v480, %v612
    %v614 = vpop.f32.mrb[0].mxu0
    %615 = vdwg.mxu0
    %v616 = vld [vmem:[#allocation8] sm:$0xf]
    %v617 = vld [vmem:[#allocation8 + $0x4] sm:$0xf]
    %v618 = vld [vmem:[#allocation8 + $0x8] sm:$0xf]
    %v619 = vld [vmem:[#allocation8 + $0xc] sm:$0xf]
    %v624 = vunpack.c.l.b16 %v616
    %v625 = vunpack.c.l.b16 %v617
    %v626 = vunpack.c.l.b16 %v618
    %v627 = vunpack.c.l.b16 %v619
    %v628 = vpack.c.b16 %v625, %v624
    %v629 = vpack.c.b16 %v627, %v626
    %v633 = vsel %vm494, 0, 0
    %635 = vmatprep.subr.bf16.mxu0 0
    %636 = vmatpush1.bf16.msra.mxu0 %v628
    %637 = vmatprep.subr.bf16.mxu0 0
    %638 = vmatpush1.bf16.msra.mxu0 %v629
    %639 = vmatprep.subr.bf16.mxu0 0
    %640 = vmatpush1.bf16.msra.mxu0 0
    %641 = vmatprep.subr.bf16.mxu0 0
    %642 = vmatpush1.bf16.msra.mxu0 0
    %643 = vmatprep.subr.bf16.mxu0 0
    %644 = vmatpush1.bf16.msra.mxu0 0
    %645 = vmatprep.subr.bf16.mxu0 0
    %646 = vmatpush1.bf16.msra.mxu0 0
    %647 = vmatprep.subr.bf16.mxu0 0
    %648 = vmatpush1.bf16.msra.mxu0 0
    %649 = vmatprep.subr.bf16.mxu0 0
    %650 = vmatpush1.bf16.msra.mxu0 0
    %651 = vmatprep.subr.bf16.mxu0 0
    %652 = vmatpush1.bf16.msra.mxu0 0
    %653 = vmatprep.subr.bf16.mxu0 0
    %654 = vmatpush1.bf16.msra.mxu0 0
    %655 = vmatprep.subr.bf16.mxu0 0
    %656 = vmatpush1.bf16.msra.mxu0 0
    %657 = vmatprep.subr.bf16.mxu0 0
    %658 = vmatpush1.bf16.msra.mxu0 0
    %659 = vmatprep.subr.bf16.mxu0 0
    %660 = vmatpush1.bf16.msra.mxu0 0
    %661 = vmatprep.subr.bf16.mxu0 0
    %662 = vmatpush1.bf16.msra.mxu0 0
    %663 = vmatprep.subr.bf16.mxu0 0
    %664 = vmatpush1.bf16.msra.mxu0 0
    %665 = vmatprep.subr.bf16.mxu0 0
    %666 = vmatpush1.bf16.msra.mxu0 0
    %667 = vmatprep.mubr.bf16.mxu0 0
    %668 = vmatmul.mubr.bf16.gmra.mrb[0].mxu0 %v633
    %v669 = vpop.f32.mrb[0].mxu0
    %v670 = vadd.f32 0.0, %v669
    %v671 = vpop.f32.mrb[0].mxu0
    %v672 = vpop.f32.mrb[0].mxu0
    %v673 = vadd.f32 0.0, %v672
    %v674 = vpop.f32.mrb[0].mxu0
    %675 = vdwg.mxu0
    %v676 = vadd.f32 %v554, %v670
    %v677 = vadd.f32 %v557, %v673
    %v678 = vxor.u32 %v676, 2147483648
    %v679 = vxor.u32 %v677, 2147483648
    %v680 = vmul.f32 %v678, 1.442695
    %v681 = vpow.pop %v680
    %v682 = vmul.f32 %v679, 1.442695
    %v683 = vpow.pop %v682
    %v684 = vadd.f32 %v681, 1.0
    %v685 = vadd.f32 %v683, 1.0
    %v686 = vrcp.pop %v684
    %v687 = vmul.f32 1.0, %v686
    %v688 = vrcp.pop %v685
    %v689 = vmul.f32 1.0, %v688
    %v690 = vtanh.pop %v676
    %v691 = vtanh.pop %v677
    %v692 = vmul.f32 %v687, 0.0
    %v693 = vmul.f32 %v689, 0.0
    %696 = vrot.lane.b32.xlu0 %v690, 64
    %v697 = vpop.permute.xlu0 %696
    %698 = vrot.lane.b32.xlu0 %v691, 64
    %v699 = vpop.permute.xlu0 %698
    %v702 = vmul.f32 %v687, %v697
    %v703 = vmul.f32 %v689, %v699
    %706 = vrot.lane.b32.xlu0 %v702, 32
    %v707 = vpop.permute.xlu0 %706
    %708 = vrot.lane.b32.xlu0 %v703, 32
    %v709 = vpop.permute.xlu0 %708
    %v712 = vadd.f32 %v692, %v707
    %v713 = vadd.f32 %v693, %v709
    %v714 = vtanh.pop %v712
    %v715 = vtanh.pop %v713
    %718 = vrot.lane.b32.xlu0 %v714, 64
    %v719 = vpop.permute.xlu0 %718
    %720 = vrot.lane.b32.xlu0 %v715, 64
    %v721 = vpop.permute.xlu0 %720
    %v724 = vmul.f32 %v687, %v719
    %v725 = vmul.f32 %v689, %v721
    %728 = vrot.lane.b32.xlu0 %v724, 32
    %v729 = vpop.permute.xlu0 %728
    %730 = vrot.lane.b32.xlu0 %v725, 32
    %v731 = vpop.permute.xlu0 %730
    %734 = vst.msk [vmem:[#allocation2] sm:$0xff] %vm494, %v729
    %735 = vst.msk [vmem:[#allocation2 + $0x8] sm:$0xff] %vm494, %v731
    %v736 = vpack.c.bf16 %v725, %v724
    %738 = vrot.lane.b32.xlu0 %v736, 32
    %v739 = vpop.permute.xlu0 %738
    %v741 = vsel %vm494, %v739, 0
    %743 = vmatprep.subr.bf16.mxu0 0
    %744 = vmatpush1.bf16.msra.mxu0 %v628
    %745 = vmatprep.subr.bf16.mxu0 0
    %746 = vmatpush1.bf16.msra.mxu0 %v629
    %747 = vmatprep.subr.bf16.mxu0 0
    %748 = vmatpush1.bf16.msra.mxu0 0
    %749 = vmatprep.subr.bf16.mxu0 0
    %750 = vmatpush1.bf16.msra.mxu0 0
    %751 = vmatprep.subr.bf16.mxu0 0
    %752 = vmatpush1.bf16.msra.mxu0 0
    %753 = vmatprep.subr.bf16.mxu0 0
    %754 = vmatpush1.bf16.msra.mxu0 0
    %755 = vmatprep.subr.bf16.mxu0 0
    %756 = vmatpush1.bf16.msra.mxu0 0
    %757 = vmatprep.subr.bf16.mxu0 0
    %758 = vmatpush1.bf16.msra.mxu0 0
    %759 = vmatprep.subr.bf16.mxu0 0
    %760 = vmatpush1.bf16.msra.mxu0 0
    %761 = vmatprep.subr.bf16.mxu0 0
    %762 = vmatpush1.bf16.msra.mxu0 0
    %763 = vmatprep.subr.bf16.mxu0 0
    %764 = vmatpush1.bf16.msra.mxu0 0
    %765 = vmatprep.subr.bf16.mxu0 0
    %766 = vmatpush1.bf16.msra.mxu0 0
    %767 = vmatprep.subr.bf16.mxu0 0
    %768 = vmatpush1.bf16.msra.mxu0 0
    %769 = vmatprep.subr.bf16.mxu0 0
    %770 = vmatpush1.bf16.msra.mxu0 0
    %771 = vmatprep.subr.bf16.mxu0 0
    %772 = vmatpush1.bf16.msra.mxu0 0
    %773 = vmatprep.subr.bf16.mxu0 0
    %774 = vmatpush1.bf16.msra.mxu0 0
    %775 = vmatprep.mubr.bf16.mxu0 0
    %776 = vmatmul.mubr.bf16.gmra.mrb[0].mxu0 %v741
    %v777 = vpop.f32.mrb[0].mxu0
    %v778 = vadd.f32 0.0, %v777
    %v779 = vpop.f32.mrb[0].mxu0
    %v780 = vpop.f32.mrb[0].mxu0
    %v781 = vadd.f32 0.0, %v780
    %v782 = vpop.f32.mrb[0].mxu0
    %783 = vdwg.mxu0
    %v784 = vadd.f32 %v562, %v778
    %v785 = vadd.f32 %v565, %v781
    %v786 = vxor.u32 %v784, 2147483648
    %v787 = vxor.u32 %v785, 2147483648
    %v788 = vmul.f32 %v786, 1.442695
    %v789 = vpow.pop %v788
    %v790 = vmul.f32 %v787, 1.442695
    %v791 = vpow.pop %v790
    %v792 = vadd.f32 %v789, 1.0
    %v793 = vadd.f32 %v791, 1.0
    %v794 = vrcp.pop %v792
    %v795 = vmul.f32 1.0, %v794
    %v796 = vrcp.pop %v793
    %v797 = vmul.f32 1.0, %v796
    %v798 = vtanh.pop %v784
    %v799 = vtanh.pop %v785
    %v800 = vmul.f32 %v795, %v712
    %v801 = vmul.f32 %v797, %v713
    %804 = vrot.lane.b32.xlu0 %v798, 64
    %v805 = vpop.permute.xlu0 %804
    %806 = vrot.lane.b32.xlu0 %v799, 64
    %v807 = vpop.permute.xlu0 %806
    %v810 = vmul.f32 %v795, %v805
    %v811 = vmul.f32 %v797, %v807
    %814 = vrot.lane.b32.xlu0 %v810, 32
    %v815 = vpop.permute.xlu0 %814
    %816 = vrot.lane.b32.xlu0 %v811, 32
    %v817 = vpop.permute.xlu0 %816
    %v820 = vadd.f32 %v800, %v815
    %v821 = vadd.f32 %v801, %v817
    %v822 = vtanh.pop %v820
    %v823 = vtanh.pop %v821
    %826 = vrot.lane.b32.xlu0 %v822, 64
    %v827 = vpop.permute.xlu0 %826
    %828 = vrot.lane.b32.xlu0 %v823, 64
    %v829 = vpop.permute.xlu0 %828
    %v832 = vmul.f32 %v795, %v827
    %v833 = vmul.f32 %v797, %v829
    %836 = vrot.lane.b32.xlu0 %v832, 32
    %v837 = vpop.permute.xlu0 %836
    %838 = vrot.lane.b32.xlu0 %v833, 32
    %v839 = vpop.permute.xlu0 %838
    %842 = vst.msk [vmem:[#allocation2 + $0x10] sm:$0xff] %vm494, %v837
    %843 = vst.msk [vmem:[#allocation2 + $0x18] sm:$0xff] %vm494, %v839
    %v844 = vpack.c.bf16 %v833, %v832
    %846 = vrot.lane.b32.xlu0 %v844, 32
    %v847 = vpop.permute.xlu0 %846
    %v849 = vsel %vm494, %v847, 0
    %851 = vmatprep.subr.bf16.mxu0 0
    %852 = vmatpush1.bf16.msra.mxu0 %v628
    %853 = vmatprep.subr.bf16.mxu0 0
    %854 = vmatpush1.bf16.msra.mxu0 %v629
    %855 = vmatprep.subr.bf16.mxu0 0
    %856 = vmatpush1.bf16.msra.mxu0 0
    %857 = vmatprep.subr.bf16.mxu0 0
    %858 = vmatpush1.bf16.msra.mxu0 0
    %859 = vmatprep.subr.bf16.mxu0 0
    %860 = vmatpush1.bf16.msra.mxu0 0
    %861 = vmatprep.subr.bf16.mxu0 0
    %862 = vmatpush1.bf16.msra.mxu0 0
    %863 = vmatprep.subr.bf16.mxu0 0
    %864 = vmatpush1.bf16.msra.mxu0 0
    %865 = vmatprep.subr.bf16.mxu0 0
    %866 = vmatpush1.bf16.msra.mxu0 0
    %867 = vmatprep.subr.bf16.mxu0 0
    %868 = vmatpush1.bf16.msra.mxu0 0
    %869 = vmatprep.subr.bf16.mxu0 0
    %870 = vmatpush1.bf16.msra.mxu0 0
    %871 = vmatprep.subr.bf16.mxu0 0
    %872 = vmatpush1.bf16.msra.mxu0 0
    %873 = vmatprep.subr.bf16.mxu0 0
    %874 = vmatpush1.bf16.msra.mxu0 0
    %875 = vmatprep.subr.bf16.mxu0 0
    %876 = vmatpush1.bf16.msra.mxu0 0
    %877 = vmatprep.subr.bf16.mxu0 0
    %878 = vmatpush1.bf16.msra.mxu0 0
    %879 = vmatprep.subr.bf16.mxu0 0
    %880 = vmatpush1.bf16.msra.mxu0 0
    %881 = vmatprep.subr.bf16.mxu0 0
    %882 = vmatpush1.bf16.msra.mxu0 0
    %883 = vmatprep.mubr.bf16.mxu0 0
    %884 = vmatmul.mubr.bf16.gmra.mrb[0].mxu0 %v849
    %v885 = vpop.f32.mrb[0].mxu0
    %v886 = vadd.f32 0.0, %v885
    %v887 = vpop.f32.mrb[0].mxu0
    %v888 = vpop.f32.mrb[0].mxu0
    %v889 = vadd.f32 0.0, %v888
    %v890 = vpop.f32.mrb[0].mxu0
    %891 = vdwg.mxu0
    %v892 = vadd.f32 %v570, %v886
    %v893 = vadd.f32 %v573, %v889
    %v894 = vxor.u32 %v892, 2147483648
    %v895 = vxor.u32 %v893, 2147483648
    %v896 = vmul.f32 %v894, 1.442695
    %v897 = vpow.pop %v896
    %v898 = vmul.f32 %v895, 1.442695
    %v899 = vpow.pop %v898
    %v900 = vadd.f32 %v897, 1.0
    %v901 = vadd.f32 %v899, 1.0
    %v902 = vrcp.pop %v900
    %v903 = vmul.f32 1.0, %v902
    %v904 = vrcp.pop %v901
    %v905 = vmul.f32 1.0, %v904
    %v906 = vtanh.pop %v892
    %v907 = vtanh.pop %v893
    %v908 = vmul.f32 %v903, %v820
    %v909 = vmul.f32 %v905, %v821
    %912 = vrot.lane.b32.xlu0 %v906, 64
    %v913 = vpop.permute.xlu0 %912
    %914 = vrot.lane.b32.xlu0 %v907, 64
    %v915 = vpop.permute.xlu0 %914
    %v918 = vmul.f32 %v903, %v913
    %v919 = vmul.f32 %v905, %v915
    %922 = vrot.lane.b32.xlu0 %v918, 32
    %v923 = vpop.permute.xlu0 %922
    %924 = vrot.lane.b32.xlu0 %v919, 32
    %v925 = vpop.permute.xlu0 %924
    %v928 = vadd.f32 %v908, %v923
    %v929 = vadd.f32 %v909, %v925
    %v930 = vtanh.pop %v928
    %v931 = vtanh.pop %v929
    %934 = vrot.lane.b32.xlu0 %v930, 64
    %v935 = vpop.permute.xlu0 %934
    %936 = vrot.lane.b32.xlu0 %v931, 64
    %v937 = vpop.permute.xlu0 %936
    %v940 = vmul.f32 %v903, %v935
    %v941 = vmul.f32 %v905, %v937
    %944 = vrot.lane.b32.xlu0 %v940, 32
    %v945 = vpop.permute.xlu0 %944
    %946 = vrot.lane.b32.xlu0 %v941, 32
    %v947 = vpop.permute.xlu0 %946
    %950 = vst.msk [vmem:[#allocation2 + $0x20] sm:$0xff] %vm494, %v945
    %951 = vst.msk [vmem:[#allocation2 + $0x28] sm:$0xff] %vm494, %v947
    %v952 = vpack.c.bf16 %v941, %v940
    %954 = vrot.lane.b32.xlu0 %v952, 32
    %v955 = vpop.permute.xlu0 %954
    %v957 = vsel %vm494, %v955, 0
    %959 = vmatprep.subr.bf16.mxu0 0
    %960 = vmatpush1.bf16.msra.mxu0 %v628
    %961 = vmatprep.subr.bf16.mxu0 0
    %962 = vmatpush1.bf16.msra.mxu0 %v629
    %963 = vmatprep.subr.bf16.mxu0 0
    %964 = vmatpush1.bf16.msra.mxu0 0
    %965 = vmatprep.subr.bf16.mxu0 0
    %966 = vmatpush1.bf16.msra.mxu0 0
    %967 = vmatprep.subr.bf16.mxu0 0
    %968 = vmatpush1.bf16.msra.mxu0 0
    %969 = vmatprep.subr.bf16.mxu0 0
    %970 = vmatpush1.bf16.msra.mxu0 0
    %971 = vmatprep.subr.bf16.mxu0 0
    %972 = vmatpush1.bf16.msra.mxu0 0
    %973 = vmatprep.subr.bf16.mxu0 0
    %974 = vmatpush1.bf16.msra.mxu0 0
    %975 = vmatprep.subr.bf16.mxu0 0
    %976 = vmatpush1.bf16.msra.mxu0 0
    %977 = vmatprep.subr.bf16.mxu0 0
    %978 = vmatpush1.bf16.msra.mxu0 0
    %979 = vmatprep.subr.bf16.mxu0 0
    %980 = vmatpush1.bf16.msra.mxu0 0
    %981 = vmatprep.subr.bf16.mxu0 0
    %982 = vmatpush1.bf16.msra.mxu0 0
    %983 = vmatprep.subr.bf16.mxu0 0
    %984 = vmatpush1.bf16.msra.mxu0 0
    %985 = vmatprep.subr.bf16.mxu0 0
    %986 = vmatpush1.bf16.msra.mxu0 0
    %987 = vmatprep.subr.bf16.mxu0 0
    %988 = vmatpush1.bf16.msra.mxu0 0
    %989 = vmatprep.subr.bf16.mxu0 0
    %990 = vmatpush1.bf16.msra.mxu0 0
    %991 = vmatprep.mubr.bf16.mxu0 0
    %992 = vmatmul.mubr.bf16.gmra.mrb[0].mxu0 %v957
    %v993 = vpop.f32.mrb[0].mxu0
    %v994 = vadd.f32 0.0, %v993
    %v995 = vpop.f32.mrb[0].mxu0
    %v996 = vpop.f32.mrb[0].mxu0
    %v997 = vadd.f32 0.0, %v996
    %v998 = vpop.f32.mrb[0].mxu0
    %999 = vdwg.mxu0
    %v1000 = vadd.f32 %v578, %v994
    %v1001 = vadd.f32 %v581, %v997
    %v1002 = vxor.u32 %v1000, 2147483648
    %v1003 = vxor.u32 %v1001, 2147483648
    %v1004 = vmul.f32 %v1002, 1.442695
    %v1005 = vpow.pop %v1004
    %v1006 = vmul.f32 %v1003, 1.442695
    %v1007 = vpow.pop %v1006
    %v1008 = vadd.f32 %v1005, 1.0
    %v1009 = vadd.f32 %v1007, 1.0
    %v1010 = vrcp.pop %v1008
    %v1011 = vmul.f32 1.0, %v1010
    %v1012 = vrcp.pop %v1009
    %v1013 = vmul.f32 1.0, %v1012
    %v1014 = vtanh.pop %v1000
    %v1015 = vtanh.pop %v1001
    %v1016 = vmul.f32 %v1011, %v928
    %v1017 = vmul.f32 %v1013, %v929
    %1020 = vrot.lane.b32.xlu0 %v1014, 64
    %v1021 = vpop.permute.xlu0 %1020
    %1022 = vrot.lane.b32.xlu0 %v1015, 64
    %v1023 = vpop.permute.xlu0 %1022
    %v1026 = vmul.f32 %v1011, %v1021
    %v1027 = vmul.f32 %v1013, %v1023
    %1030 = vrot.lane.b32.xlu0 %v1026, 32
    %v1031 = vpop.permute.xlu0 %1030
    %1032 = vrot.lane.b32.xlu0 %v1027, 32
    %v1033 = vpop.permute.xlu0 %1032
    %v1036 = vadd.f32 %v1016, %v1031
    %v1037 = vadd.f32 %v1017, %v1033
    %v1038 = vtanh.pop %v1036
    %v1039 = vtanh.pop %v1037
    %1042 = vrot.lane.b32.xlu0 %v1038, 64
    %v1043 = vpop.permute.xlu0 %1042
    %1044 = vrot.lane.b32.xlu0 %v1039, 64
    %v1045 = vpop.permute.xlu0 %1044
    %v1048 = vmul.f32 %v1011, %v1043
    %v1049 = vmul.f32 %v1013, %v1045
    %1052 = vrot.lane.b32.xlu0 %v1048, 32
    %v1053 = vpop.permute.xlu0 %1052
    %1054 = vrot.lane.b32.xlu0 %v1049, 32
    %v1055 = vpop.permute.xlu0 %1054
    %1058 = vst.msk [vmem:[#allocation2 + $0x30] sm:$0xff] %vm494, %v1053
    %1059 = vst.msk [vmem:[#allocation2 + $0x38] sm:$0xff] %vm494, %v1055
    %v1060 = vpack.c.bf16 %v1049, %v1048
    %1062 = vrot.lane.b32.xlu0 %v1060, 32
    %v1063 = vpop.permute.xlu0 %1062
    %v1065 = vsel %vm494, %v1063, 0
    %1067 = vmatprep.subr.bf16.mxu0 0
    %1068 = vmatpush1.bf16.msra.mxu0 %v628
    %1069 = vmatprep.subr.bf16.mxu0 0
    %1070 = vmatpush1.bf16.msra.mxu0 %v629
    %1071 = vmatprep.subr.bf16.mxu0 0
    %1072 = vmatpush1.bf16.msra.mxu0 0
    %1073 = vmatprep.subr.bf16.mxu0 0
    %1074 = vmatpush1.bf16.msra.mxu0 0
    %1075 = vmatprep.subr.bf16.mxu0 0
    %1076 = vmatpush1.bf16.msra.mxu0 0
    %1077 = vmatprep.subr.bf16.mxu0 0
    %1078 = vmatpush1.bf16.msra.mxu0 0
    %1079 = vmatprep.subr.bf16.mxu0 0
    %1080 = vmatpush1.bf16.msra.mxu0 0
    %1081 = vmatprep.subr.bf16.mxu0 0
    %1082 = vmatpush1.bf16.msra.mxu0 0
    %1083 = vmatprep.subr.bf16.mxu0 0
    %1084 = vmatpush1.bf16.msra.mxu0 0
    %1085 = vmatprep.subr.bf16.mxu0 0
    %1086 = vmatpush1.bf16.msra.mxu0 0
    %1087 = vmatprep.subr.bf16.mxu0 0
    %1088 = vmatpush1.bf16.msra.mxu0 0
    %1089 = vmatprep.subr.bf16.mxu0 0
    %1090 = vmatpush1.bf16.msra.mxu0 0
    %1091 = vmatprep.subr.bf16.mxu0 0
    %1092 = vmatpush1.bf16.msra.mxu0 0
    %1093 = vmatprep.subr.bf16.mxu0 0
    %1094 = vmatpush1.bf16.msra.mxu0 0
    %1095 = vmatprep.subr.bf16.mxu0 0
    %1096 = vmatpush1.bf16.msra.mxu0 0
    %1097 = vmatprep.subr.bf16.mxu0 0
    %1098 = vmatpush1.bf16.msra.mxu0 0
    %1099 = vmatprep.mubr.bf16.mxu0 0
    %1100 = vmatmul.mubr.bf16.gmra.mrb[0].mxu0 %v1065
    %v1101 = vpop.f32.mrb[0].mxu0
    %v1102 = vadd.f32 0.0, %v1101
    %v1103 = vpop.f32.mrb[0].mxu0
    %v1104 = vpop.f32.mrb[0].mxu0
    %v1105 = vadd.f32 0.0, %v1104
    %v1106 = vpop.f32.mrb[0].mxu0
    %1107 = vdwg.mxu0
    %v1108 = vadd.f32 %v586, %v1102
    %v1109 = vadd.f32 %v589, %v1105
    %v1110 = vxor.u32 %v1108, 2147483648
    %v1111 = vxor.u32 %v1109, 2147483648
    %v1112 = vmul.f32 %v1110, 1.442695
    %v1113 = vpow.pop %v1112
    %v1114 = vmul.f32 %v1111, 1.442695
    %v1115 = vpow.pop %v1114
    %v1116 = vadd.f32 %v1113, 1.0
    %v1117 = vadd.f32 %v1115, 1.0
    %v1118 = vrcp.pop %v1116
    %v1119 = vmul.f32 1.0, %v1118
    %v1120 = vrcp.pop %v1117
    %v1121 = vmul.f32 1.0, %v1120
    %v1122 = vtanh.pop %v1108
    %v1123 = vtanh.pop %v1109
    %v1124 = vmul.f32 %v1119, %v1036
    %v1125 = vmul.f32 %v1121, %v1037
    %1128 = vrot.lane.b32.xlu0 %v1122, 64
    %v1129 = vpop.permute.xlu0 %1128
    %1130 = vrot.lane.b32.xlu0 %v1123, 64
    %v1131 = vpop.permute.xlu0 %1130
    %v1134 = vmul.f32 %v1119, %v1129
    %v1135 = vmul.f32 %v1121, %v1131
    %1138 = vrot.lane.b32.xlu0 %v1134, 32
    %v1139 = vpop.permute.xlu0 %1138
    %1140 = vrot.lane.b32.xlu0 %v1135, 32
    %v1141 = vpop.permute.xlu0 %1140
    %v1144 = vadd.f32 %v1124, %v1139
    %v1145 = vadd.f32 %v1125, %v1141
    %v1146 = vtanh.pop %v1144
    %v1147 = vtanh.pop %v1145
    %1150 = vrot.lane.b32.xlu0 %v1146, 64
    %v1151 = vpop.permute.xlu0 %1150
    %1152 = vrot.lane.b32.xlu0 %v1147, 64
    %v1153 = vpop.permute.xlu0 %1152
    %v1156 = vmul.f32 %v1119, %v1151
    %v1157 = vmul.f32 %v1121, %v1153
    %1160 = vrot.lane.b32.xlu0 %v1156, 32
    %v1161 = vpop.permute.xlu0 %1160
    %1162 = vrot.lane.b32.xlu0 %v1157, 32
    %v1163 = vpop.permute.xlu0 %1162
    %1166 = vst.msk [vmem:[#allocation2 + $0x40] sm:$0xff] %vm494, %v1161
    %1167 = vst.msk [vmem:[#allocation2 + $0x48] sm:$0xff] %vm494, %v1163
    %v1168 = vpack.c.bf16 %v1157, %v1156
    %1170 = vrot.lane.b32.xlu0 %v1168, 32
    %v1171 = vpop.permute.xlu0 %1170
    %v1173 = vsel %vm494, %v1171, 0
    %1175 = vmatprep.subr.bf16.mxu0 0
    %1176 = vmatpush1.bf16.msra.mxu0 %v628
    %1177 = vmatprep.subr.bf16.mxu0 0
    %1178 = vmatpush1.bf16.msra.mxu0 %v629
    %1179 = vmatprep.subr.bf16.mxu0 0
    %1180 = vmatpush1.bf16.msra.mxu0 0
    %1181 = vmatprep.subr.bf16.mxu0 0
    %1182 = vmatpush1.bf16.msra.mxu0 0
    %1183 = vmatprep.subr.bf16.mxu0 0
    %1184 = vmatpush1.bf16.msra.mxu0 0
    %1185 = vmatprep.subr.bf16.mxu0 0
    %1186 = vmatpush1.bf16.msra.mxu0 0
    %1187 = vmatprep.subr.bf16.mxu0 0
    %1188 = vmatpush1.bf16.msra.mxu0 0
    %1189 = vmatprep.subr.bf16.mxu0 0
    %1190 = vmatpush1.bf16.msra.mxu0 0
    %1191 = vmatprep.subr.bf16.mxu0 0
    %1192 = vmatpush1.bf16.msra.mxu0 0
    %1193 = vmatprep.subr.bf16.mxu0 0
    %1194 = vmatpush1.bf16.msra.mxu0 0
    %1195 = vmatprep.subr.bf16.mxu0 0
    %1196 = vmatpush1.bf16.msra.mxu0 0
    %1197 = vmatprep.subr.bf16.mxu0 0
    %1198 = vmatpush1.bf16.msra.mxu0 0
    %1199 = vmatprep.subr.bf16.mxu0 0
    %1200 = vmatpush1.bf16.msra.mxu0 0
    %1201 = vmatprep.subr.bf16.mxu0 0
    %1202 = vmatpush1.bf16.msra.mxu0 0
    %1203 = vmatprep.subr.bf16.mxu0 0
    %1204 = vmatpush1.bf16.msra.mxu0 0
    %1205 = vmatprep.subr.bf16.mxu0 0
    %1206 = vmatpush1.bf16.msra.mxu0 0
    %1207 = vmatprep.mubr.bf16.mxu0 0
    %1208 = vmatmul.mubr.bf16.gmra.mrb[0].mxu0 %v1173
    %v1209 = vpop.f32.mrb[0].mxu0
    %v1210 = vadd.f32 0.0, %v1209
    %v1211 = vpop.f32.mrb[0].mxu0
    %v1212 = vpop.f32.mrb[0].mxu0
    %v1213 = vadd.f32 0.0, %v1212
    %v1214 = vpop.f32.mrb[0].mxu0
    %1215 = vdwg.mxu0
    %v1216 = vadd.f32 %v594, %v1210
    %v1217 = vadd.f32 %v597, %v1213
    %v1218 = vxor.u32 %v1216, 2147483648
    %v1219 = vxor.u32 %v1217, 2147483648
    %v1220 = vmul.f32 %v1218, 1.442695
    %v1221 = vpow.pop %v1220
    %v1222 = vmul.f32 %v1219, 1.442695
    %v1223 = vpow.pop %v1222
    %v1224 = vadd.f32 %v1221, 1.0
    %v1225 = vadd.f32 %v1223, 1.0
    %v1226 = vrcp.pop %v1224
    %v1227 = vmul.f32 1.0, %v1226
    %v1228 = vrcp.pop %v1225
    %v1229 = vmul.f32 1.0, %v1228
    %v1230 = vtanh.pop %v1216
    %v1231 = vtanh.pop %v1217
    %v1232 = vmul.f32 %v1227, %v1144
    %v1233 = vmul.f32 %v1229, %v1145
    %1236 = vrot.lane.b32.xlu0 %v1230, 64
    %v1237 = vpop.permute.xlu0 %1236
    %1238 = vrot.lane.b32.xlu0 %v1231, 64
    %v1239 = vpop.permute.xlu0 %1238
    %v1242 = vmul.f32 %v1227, %v1237
    %v1243 = vmul.f32 %v1229, %v1239
    %1246 = vrot.lane.b32.xlu0 %v1242, 32
    %v1247 = vpop.permute.xlu0 %1246
    %1248 = vrot.lane.b32.xlu0 %v1243, 32
    %v1249 = vpop.permute.xlu0 %1248
    %v1252 = vadd.f32 %v1232, %v1247
    %v1253 = vadd.f32 %v1233, %v1249
    %v1254 = vtanh.pop %v1252
    %v1255 = vtanh.pop %v1253
    %1258 = vrot.lane.b32.xlu0 %v1254, 64
    %v1259 = vpop.permute.xlu0 %1258
    %1260 = vrot.lane.b32.xlu0 %v1255, 64
    %v1261 = vpop.permute.xlu0 %1260
    %v1264 = vmul.f32 %v1227, %v1259
    %v1265 = vmul.f32 %v1229, %v1261
    %1268 = vrot.lane.b32.xlu0 %v1264, 32
    %v1269 = vpop.permute.xlu0 %1268
    %1270 = vrot.lane.b32.xlu0 %v1265, 32
    %v1271 = vpop.permute.xlu0 %1270
    %1274 = vst.msk [vmem:[#allocation2 + $0x50] sm:$0xff] %vm494, %v1269
    %1275 = vst.msk [vmem:[#allocation2 + $0x58] sm:$0xff] %vm494, %v1271
    %v1276 = vpack.c.bf16 %v1265, %v1264
    %1278 = vrot.lane.b32.xlu0 %v1276, 32
    %v1279 = vpop.permute.xlu0 %1278
    %v1281 = vsel %vm494, %v1279, 0
    %1283 = vmatprep.subr.bf16.mxu0 0
    %1284 = vmatpush1.bf16.msra.mxu0 %v628
    %1285 = vmatprep.subr.bf16.mxu0 0
    %1286 = vmatpush1.bf16.msra.mxu0 %v629
    %1287 = vmatprep.subr.bf16.mxu0 0
    %1288 = vmatpush1.bf16.msra.mxu0 0
    %1289 = vmatprep.subr.bf16.mxu0 0
    %1290 = vmatpush1.bf16.msra.mxu0 0
    %1291 = vmatprep.subr.bf16.mxu0 0
    %1292 = vmatpush1.bf16.msra.mxu0 0
    %1293 = vmatprep.subr.bf16.mxu0 0
    %1294 = vmatpush1.bf16.msra.mxu0 0
    %1295 = vmatprep.subr.bf16.mxu0 0
    %1296 = vmatpush1.bf16.msra.mxu0 0
    %1297 = vmatprep.subr.bf16.mxu0 0
    %1298 = vmatpush1.bf16.msra.mxu0 0
    %1299 = vmatprep.subr.bf16.mxu0 0
    %1300 = vmatpush1.bf16.msra.mxu0 0
    %1301 = vmatprep.subr.bf16.mxu0 0
    %1302 = vmatpush1.bf16.msra.mxu0 0
    %1303 = vmatprep.subr.bf16.mxu0 0
    %1304 = vmatpush1.bf16.msra.mxu0 0
    %1305 = vmatprep.subr.bf16.mxu0 0
    %1306 = vmatpush1.bf16.msra.mxu0 0
    %1307 = vmatprep.subr.bf16.mxu0 0
    %1308 = vmatpush1.bf16.msra.mxu0 0
    %1309 = vmatprep.subr.bf16.mxu0 0
    %1310 = vmatpush1.bf16.msra.mxu0 0
    %1311 = vmatprep.subr.bf16.mxu0 0
    %1312 = vmatpush1.bf16.msra.mxu0 0
    %1313 = vmatprep.subr.bf16.mxu0 0
    %1314 = vmatpush1.bf16.msra.mxu0 0
    %1315 = vmatprep.mubr.bf16.mxu0 0
    %1316 = vmatmul.mubr.bf16.gmra.mrb[0].mxu0 %v1281
    %v1317 = vpop.f32.mrb[0].mxu0
    %v1318 = vadd.f32 0.0, %v1317
    %v1319 = vpop.f32.mrb[0].mxu0
    %v1320 = vpop.f32.mrb[0].mxu0
    %v1321 = vadd.f32 0.0, %v1320
    %v1322 = vpop.f32.mrb[0].mxu0
    %1323 = vdwg.mxu0
    %v1324 = vadd.f32 %v602, %v1318
    %v1325 = vadd.f32 %v605, %v1321
    %v1326 = vxor.u32 %v1324, 2147483648
    %v1327 = vxor.u32 %v1325, 2147483648
    %v1328 = vmul.f32 %v1326, 1.442695
    %v1329 = vpow.pop %v1328
    %v1330 = vmul.f32 %v1327, 1.442695
    %v1331 = vpow.pop %v1330
    %v1332 = vadd.f32 %v1329, 1.0
    %v1333 = vadd.f32 %v1331, 1.0
    %v1334 = vrcp.pop %v1332
    %v1335 = vmul.f32 1.0, %v1334
    %v1336 = vrcp.pop %v1333
    %v1337 = vmul.f32 1.0, %v1336
    %v1338 = vtanh.pop %v1324
    %v1339 = vtanh.pop %v1325
    %v1340 = vmul.f32 %v1335, %v1252
    %v1341 = vmul.f32 %v1337, %v1253
    %1344 = vrot.lane.b32.xlu0 %v1338, 64
    %v1345 = vpop.permute.xlu0 %1344
    %1346 = vrot.lane.b32.xlu0 %v1339, 64
    %v1347 = vpop.permute.xlu0 %1346
    %v1350 = vmul.f32 %v1335, %v1345
    %v1351 = vmul.f32 %v1337, %v1347
    %1354 = vrot.lane.b32.xlu0 %v1350, 32
    %v1355 = vpop.permute.xlu0 %1354
    %1356 = vrot.lane.b32.xlu0 %v1351, 32
    %v1357 = vpop.permute.xlu0 %1356
    %v1360 = vadd.f32 %v1340, %v1355
    %v1361 = vadd.f32 %v1341, %v1357
    %v1362 = vtanh.pop %v1360
    %v1363 = vtanh.pop %v1361
    %1366 = vrot.lane.b32.xlu0 %v1362, 64
    %v1367 = vpop.permute.xlu0 %1366
    %1368 = vrot.lane.b32.xlu0 %v1363, 64
    %v1369 = vpop.permute.xlu0 %1368
    %v1372 = vmul.f32 %v1335, %v1367
    %v1373 = vmul.f32 %v1337, %v1369
    %1376 = vrot.lane.b32.xlu0 %v1372, 32
    %v1377 = vpop.permute.xlu0 %1376
    %1378 = vrot.lane.b32.xlu0 %v1373, 32
    %v1379 = vpop.permute.xlu0 %1378
    %1382 = vst.msk [vmem:[#allocation2 + $0x60] sm:$0xff] %vm494, %v1377
    %1383 = vst.msk [vmem:[#allocation2 + $0x68] sm:$0xff] %vm494, %v1379
    %v1384 = vpack.c.bf16 %v1373, %v1372
    %1386 = vrot.lane.b32.xlu0 %v1384, 32
    %v1387 = vpop.permute.xlu0 %1386
    %v1389 = vsel %vm494, %v1387, 0
    %1391 = vmatprep.subr.bf16.mxu0 0
    %1392 = vmatpush1.bf16.msra.mxu0 %v628
    %1393 = vmatprep.subr.bf16.mxu0 0
    %1394 = vmatpush1.bf16.msra.mxu0 %v629
    %1395 = vmatprep.subr.bf16.mxu0 0
    %1396 = vmatpush1.bf16.msra.mxu0 0
    %1397 = vmatprep.subr.bf16.mxu0 0
    %1398 = vmatpush1.bf16.msra.mxu0 0
    %1399 = vmatprep.subr.bf16.mxu0 0
    %1400 = vmatpush1.bf16.msra.mxu0 0
    %1401 = vmatprep.subr.bf16.mxu0 0
    %1402 = vmatpush1.bf16.msra.mxu0 0
    %1403 = vmatprep.subr.bf16.mxu0 0
    %1404 = vmatpush1.bf16.msra.mxu0 0
    %1405 = vmatprep.subr.bf16.mxu0 0
    %1406 = vmatpush1.bf16.msra.mxu0 0
    %1407 = vmatprep.subr.bf16.mxu0 0
    %1408 = vmatpush1.bf16.msra.mxu0 0
    %1409 = vmatprep.subr.bf16.mxu0 0
    %1410 = vmatpush1.bf16.msra.mxu0 0
    %1411 = vmatprep.subr.bf16.mxu0 0
    %1412 = vmatpush1.bf16.msra.mxu0 0
    %1413 = vmatprep.subr.bf16.mxu0 0
    %1414 = vmatpush1.bf16.msra.mxu0 0
    %1415 = vmatprep.subr.bf16.mxu0 0
    %1416 = vmatpush1.bf16.msra.mxu0 0
    %1417 = vmatprep.subr.bf16.mxu0 0
    %1418 = vmatpush1.bf16.msra.mxu0 0
    %1419 = vmatprep.subr.bf16.mxu0 0
    %1420 = vmatpush1.bf16.msra.mxu0 0
    %1421 = vmatprep.subr.bf16.mxu0 0
    %1422 = vmatpush1.bf16.msra.mxu0 0
    %1423 = vmatprep.mubr.bf16.mxu0 0
    %1424 = vmatmul.mubr.bf16.gmra.mrb[0].mxu0 %v1389
    %v1425 = vpop.f32.mrb[0].mxu0
    %v1426 = vadd.f32 0.0, %v1425
    %v1427 = vpop.f32.mrb[0].mxu0
    %v1428 = vpop.f32.mrb[0].mxu0
    %v1429 = vadd.f32 0.0, %v1428
    %v1430 = vpop.f32.mrb[0].mxu0
    %1431 = vdwg.mxu0
    %v1432 = vadd.f32 %v610, %v1426
    %v1433 = vadd.f32 %v613, %v1429
    %v1434 = vxor.u32 %v1432, 2147483648
    %v1435 = vxor.u32 %v1433, 2147483648
    %v1436 = vmul.f32 %v1434, 1.442695
    %v1437 = vpow.pop %v1436
    %v1438 = vmul.f32 %v1435, 1.442695
    %v1439 = vpow.pop %v1438
    %v1440 = vadd.f32 %v1437, 1.0
    %v1441 = vadd.f32 %v1439, 1.0
    %v1442 = vrcp.pop %v1440
    %v1443 = vmul.f32 1.0, %v1442
    %v1444 = vrcp.pop %v1441
    %v1445 = vmul.f32 1.0, %v1444
    %v1446 = vtanh.pop %v1432
    %v1447 = vtanh.pop %v1433
    %v1448 = vmul.f32 %v1443, %v1360
    %v1449 = vmul.f32 %v1445, %v1361
    %1452 = vrot.lane.b32.xlu0 %v1446, 64
    %v1453 = vpop.permute.xlu0 %1452
    %1454 = vrot.lane.b32.xlu0 %v1447, 64
    %v1455 = vpop.permute.xlu0 %1454
    %v1458 = vmul.f32 %v1443, %v1453
    %v1459 = vmul.f32 %v1445, %v1455
    %1462 = vrot.lane.b32.xlu0 %v1458, 32
    %v1463 = vpop.permute.xlu0 %1462
    %1464 = vrot.lane.b32.xlu0 %v1459, 32
    %v1465 = vpop.permute.xlu0 %1464
    %v1468 = vadd.f32 %v1448, %v1463
    %v1469 = vadd.f32 %v1449, %v1465
    %v1470 = vtanh.pop %v1468
    %v1471 = vtanh.pop %v1469
    %1474 = vrot.lane.b32.xlu0 %v1470, 64
    %v1475 = vpop.permute.xlu0 %1474
    %1476 = vrot.lane.b32.xlu0 %v1471, 64
    %v1477 = vpop.permute.xlu0 %1476
    %v1480 = vmul.f32 %v1443, %v1475
    %v1481 = vmul.f32 %v1445, %v1477
    %1484 = vrot.lane.b32.xlu0 %v1480, 32
    %v1485 = vpop.permute.xlu0 %1484
    %1486 = vrot.lane.b32.xlu0 %v1481, 32
    %v1487 = vpop.permute.xlu0 %1486
    %1490 = vst.msk [vmem:[#allocation2 + $0x70] sm:$0xff] %vm494, %v1485
    %1491 = vst.msk [vmem:[#allocation2 + $0x78] sm:$0xff] %vm494, %v1487
    %v1492 = vld [vmem:[#allocation2] sm:$0xff]
    %v1493 = vld [vmem:[#allocation2 + $0x8] sm:$0xff]
    %v1494 = vld [vmem:[#allocation2 + $0x10] sm:$0xff]
    %v1495 = vld [vmem:[#allocation2 + $0x18] sm:$0xff]
    %v1496 = vld [vmem:[#allocation2 + $0x20] sm:$0xff]
    %v1497 = vld [vmem:[#allocation2 + $0x28] sm:$0xff]
    %v1498 = vld [vmem:[#allocation2 + $0x30] sm:$0xff]
    %v1499 = vld [vmem:[#allocation2 + $0x38] sm:$0xff]
    %v1500 = vld [vmem:[#allocation2 + $0x40] sm:$0xff]
    %v1501 = vld [vmem:[#allocation2 + $0x48] sm:$0xff]
    %v1502 = vld [vmem:[#allocation2 + $0x50] sm:$0xff]
    %v1503 = vld [vmem:[#allocation2 + $0x58] sm:$0xff]
    %v1504 = vld [vmem:[#allocation2 + $0x60] sm:$0xff]
    %v1505 = vld [vmem:[#allocation2 + $0x68] sm:$0xff]
    %v1506 = vld [vmem:[#allocation2 + $0x70] sm:$0xff]
    %v1507 = vld [vmem:[#allocation2 + $0x78] sm:$0xff]
    %v1508 = vpack.c.bf16 %v1493, %v1492
    %v1509 = vpack.c.bf16 %v1495, %v1494
    %v1510 = vpack.c.bf16 %v1497, %v1496
    %v1511 = vpack.c.bf16 %v1499, %v1498
    %v1512 = vpack.c.bf16 %v1501, %v1500
    %v1513 = vpack.c.bf16 %v1503, %v1502
    %v1514 = vpack.c.bf16 %v1505, %v1504
    %v1515 = vpack.c.bf16 %v1507, %v1506
    %1516 = vmatprep.subr.bf16.mxu0 0
    %1517 = vmatpush1.bf16.msra.mxu0 %v1508
    %1518 = vmatprep.subr.bf16.mxu0 0
    %1519 = vmatpush1.bf16.msra.mxu0 %v1509
    %1520 = vmatprep.subr.bf16.mxu0 0
    %1521 = vmatpush1.bf16.msra.mxu0 %v1510
    %1522 = vmatprep.subr.bf16.mxu0 0
    %1523 = vmatpush1.bf16.msra.mxu0 %v1511
    %1524 = vmatprep.subr.bf16.mxu0 0
    %1525 = vmatpush1.bf16.msra.mxu0 %v1512
    %1526 = vmatprep.subr.bf16.mxu0 0
    %1527 = vmatpush1.bf16.msra.mxu0 %v1513
    %1528 = vmatprep.subr.bf16.mxu0 0
    %1529 = vmatpush1.bf16.msra.mxu0 %v1514
    %1530 = vmatprep.subr.bf16.mxu0 0
    %1531 = vmatpush1.bf16.msra.mxu0 %v1515
    %1532 = vmatprep.subr.bf16.mxu0 0
    %1533 = vmatpush1.bf16.msra.mxu0 0
    %1534 = vmatprep.subr.bf16.mxu0 0
    %1535 = vmatpush1.bf16.msra.mxu0 0
    %1536 = vmatprep.subr.bf16.mxu0 0
    %1537 = vmatpush1.bf16.msra.mxu0 0
    %1538 = vmatprep.subr.bf16.mxu0 0
    %1539 = vmatpush1.bf16.msra.mxu0 0
    %1540 = vmatprep.subr.bf16.mxu0 0
    %1541 = vmatpush1.bf16.msra.mxu0 0
    %1542 = vmatprep.subr.bf16.mxu0 0
    %1543 = vmatpush1.bf16.msra.mxu0 0
    %1544 = vmatprep.subr.bf16.mxu0 0
    %1545 = vmatpush1.bf16.msra.mxu0 0
    %1546 = vmatprep.subr.bf16.mxu0 0
    %1547 = vmatpush1.bf16.msra.mxu0 0
    %1548 = vmatprep.mubr.bf16.mxu0 0
    %1549 = vmatmul.mubr.bf16.gmra.mrb[0].mxu0 %v334
    %v1550 = vpop.f32.mrb[0].mxu0
    %v1551 = vadd.f32 0.0, %v1550
    %v1552 = vpop.f32.mrb[0].mxu0
    %v1553 = vpop.f32.mrb[0].mxu0
    %v1554 = vadd.f32 0.0, %v1553
    %v1555 = vpop.f32.mrb[0].mxu0
    %1556 = vmatprep.mubr.bf16.mxu0 0
    %1557 = vmatmul.mubr.bf16.gmra.mrb[0].mxu0 %v335
    %v1558 = vpop.f32.mrb[0].mxu0
    %v1559 = vadd.f32 0.0, %v1558
    %v1560 = vpop.f32.mrb[0].mxu0
    %v1561 = vpop.f32.mrb[0].mxu0
    %v1562 = vadd.f32 0.0, %v1561
    %v1563 = vpop.f32.mrb[0].mxu0
    %1564 = vmatprep.mubr.bf16.mxu0 0
    %1565 = vmatmul.mubr.bf16.gmra.mrb[0].mxu0 %v336
    %v1566 = vpop.f32.mrb[0].mxu0
    %v1567 = vadd.f32 0.0, %v1566
    %v1568 = vpop.f32.mrb[0].mxu0
    %v1569 = vpop.f32.mrb[0].mxu0
    %v1570 = vadd.f32 0.0, %v1569
    %v1571 = vpop.f32.mrb[0].mxu0
    %1572 = vmatprep.mubr.bf16.mxu0 0
    %1573 = vmatmul.mubr.bf16.gmra.mrb[0].mxu0 %v337
    %v1574 = vpop.f32.mrb[0].mxu0
    %v1575 = vadd.f32 0.0, %v1574
    %v1576 = vpop.f32.mrb[0].mxu0
    %v1577 = vpop.f32.mrb[0].mxu0
    %v1578 = vadd.f32 0.0, %v1577
    %v1579 = vpop.f32.mrb[0].mxu0
    %1580 = vmatprep.mubr.bf16.mxu0 0
    %1581 = vmatmul.mubr.bf16.gmra.mrb[0].mxu0 %v338
    %v1582 = vpop.f32.mrb[0].mxu0
    %v1583 = vadd.f32 0.0, %v1582
    %v1584 = vpop.f32.mrb[0].mxu0
    %v1585 = vpop.f32.mrb[0].mxu0
    %v1586 = vadd.f32 0.0, %v1585
    %v1587 = vpop.f32.mrb[0].mxu0
    %1588 = vmatprep.mubr.bf16.mxu0 0
    %1589 = vmatmul.mubr.bf16.gmra.mrb[0].mxu0 %v339
    %v1590 = vpop.f32.mrb[0].mxu0
    %v1591 = vadd.f32 0.0, %v1590
    %v1592 = vpop.f32.mrb[0].mxu0
    %v1593 = vpop.f32.mrb[0].mxu0
    %v1594 = vadd.f32 0.0, %v1593
    %v1595 = vpop.f32.mrb[0].mxu0
    %1596 = vmatprep.mubr.bf16.mxu0 0
    %1597 = vmatmul.mubr.bf16.gmra.mrb[0].mxu0 %v340
    %v1598 = vpop.f32.mrb[0].mxu0
    %v1599 = vadd.f32 0.0, %v1598
    %v1600 = vpop.f32.mrb[0].mxu0
    %v1601 = vpop.f32.mrb[0].mxu0
    %v1602 = vadd.f32 0.0, %v1601
    %v1603 = vpop.f32.mrb[0].mxu0
    %1604 = vmatprep.mubr.bf16.mxu0 0
    %1605 = vmatmul.mubr.bf16.gmra.mrb[0].mxu0 %v341
    %v1606 = vpop.f32.mrb[0].mxu0
    %v1607 = vadd.f32 0.0, %v1606
    %v1608 = vpop.f32.mrb[0].mxu0
    %v1609 = vpop.f32.mrb[0].mxu0
    %v1610 = vadd.f32 0.0, %v1609
    %v1611 = vpop.f32.mrb[0].mxu0
    %1612 = vdwg.mxu0
    %v1613 = vpack.c.bf16 %v1554, %v1551
    %v1614 = vpack.c.bf16 %v1562, %v1559
    %v1615 = vpack.c.bf16 %v1570, %v1567
    %v1616 = vpack.c.bf16 %v1578, %v1575
    %v1617 = vpack.c.bf16 %v1586, %v1583
    %v1618 = vpack.c.bf16 %v1594, %v1591
    %v1619 = vpack.c.bf16 %v1602, %v1599
    %v1620 = vpack.c.bf16 %v1610, %v1607
    %v1621 = vld [vmem:[%s3] sm:$0xf]
    %v1622 = vld [vmem:[%s3 + $0x4] sm:$0xf]
    %v1623 = vld [vmem:[%s3 + $0x8] sm:$0xf]
    %v1624 = vld [vmem:[%s3 + $0xc] sm:$0xf]
    %v1629 = vunpack.c.l.b16 %v1621
    %v1630 = vunpack.c.l.b16 %v1622
    %v1631 = vunpack.c.l.b16 %v1623
    %v1632 = vunpack.c.l.b16 %v1624
    %v1633 = vpack.c.b16 %v1630, %v1629
    %v1634 = vpack.c.b16 %v1632, %v1631
    %v1638 = vsel %vm494, %v1613, 0
    %v1641 = vsel %vm494, %v1614, 0
    %v1644 = vsel %vm494, %v1615, 0
    %v1647 = vsel %vm494, %v1616, 0
    %v1650 = vsel %vm494, %v1617, 0
    %v1653 = vsel %vm494, %v1618, 0
    %v1656 = vsel %vm494, %v1619, 0
    %v1659 = vsel %vm494, %v1620, 0
    %1661 = vmatprep.subr.bf16.mxu0 0
    %1662 = vmatpush1.bf16.msra.mxu0 %v1633
    %1663 = vmatprep.subr.bf16.mxu0 0
    %1664 = vmatpush1.bf16.msra.mxu0 %v1634
    %1665 = vmatprep.subr.bf16.mxu0 0
    %1666 = vmatpush1.bf16.msra.mxu0 0
    %1667 = vmatprep.subr.bf16.mxu0 0
    %1668 = vmatpush1.bf16.msra.mxu0 0
    %1669 = vmatprep.subr.bf16.mxu0 0
    %1670 = vmatpush1.bf16.msra.mxu0 0
    %1671 = vmatprep.subr.bf16.mxu0 0
    %1672 = vmatpush1.bf16.msra.mxu0 0
    %1673 = vmatprep.subr.bf16.mxu0 0
    %1674 = vmatpush1.bf16.msra.mxu0 0
    %1675 = vmatprep.subr.bf16.mxu0 0
    %1676 = vmatpush1.bf16.msra.mxu0 0
    %1677 = vmatprep.subr.bf16.mxu0 0
    %1678 = vmatpush1.bf16.msra.mxu0 0
    %1679 = vmatprep.subr.bf16.mxu0 0
    %1680 = vmatpush1.bf16.msra.mxu0 0
    %1681 = vmatprep.subr.bf16.mxu0 0
    %1682 = vmatpush1.bf16.msra.mxu0 0
    %1683 = vmatprep.subr.bf16.mxu0 0
    %1684 = vmatpush1.bf16.msra.mxu0 0
    %1685 = vmatprep.subr.bf16.mxu0 0
    %1686 = vmatpush1.bf16.msra.mxu0 0
    %1687 = vmatprep.subr.bf16.mxu0 0
    %1688 = vmatpush1.bf16.msra.mxu0 0
    %1689 = vmatprep.subr.bf16.mxu0 0
    %1690 = vmatpush1.bf16.msra.mxu0 0
    %1691 = vmatprep.subr.bf16.mxu0 0
    %1692 = vmatpush1.bf16.msra.mxu0 0
    %1693 = vmatprep.mubr.bf16.mxu0 0
    %1694 = vmatmul.mubr.bf16.gmra.mrb[0].mxu0 %v1638
    %v1695 = vpop.f32.mrb[0].mxu0
    %v1696 = vadd.f32 0.0, %v1695
    %v1697 = vpop.f32.mrb[0].mxu0
    %v1698 = vpop.f32.mrb[0].mxu0
    %v1699 = vadd.f32 0.0, %v1698
    %v1700 = vpop.f32.mrb[0].mxu0
    %1701 = vmatprep.mubr.bf16.mxu0 0
    %1702 = vmatmul.mubr.bf16.gmra.mrb[0].mxu0 %v1641
    %v1703 = vpop.f32.mrb[0].mxu0
    %v1704 = vadd.f32 0.0, %v1703
    %v1705 = vpop.f32.mrb[0].mxu0
    %v1706 = vpop.f32.mrb[0].mxu0
    %v1707 = vadd.f32 0.0, %v1706
    %v1708 = vpop.f32.mrb[0].mxu0
    %1709 = vmatprep.mubr.bf16.mxu0 0
    %1710 = vmatmul.mubr.bf16.gmra.mrb[0].mxu0 %v1644
    %v1711 = vpop.f32.mrb[0].mxu0
    %v1712 = vadd.f32 0.0, %v1711
    %v1713 = vpop.f32.mrb[0].mxu0
    %v1714 = vpop.f32.mrb[0].mxu0
    %v1715 = vadd.f32 0.0, %v1714
    %v1716 = vpop.f32.mrb[0].mxu0
    %1717 = vmatprep.mubr.bf16.mxu0 0
    %1718 = vmatmul.mubr.bf16.gmra.mrb[0].mxu0 %v1647
    %v1719 = vpop.f32.mrb[0].mxu0
    %v1720 = vadd.f32 0.0, %v1719
    %v1721 = vpop.f32.mrb[0].mxu0
    %v1722 = vpop.f32.mrb[0].mxu0
    %v1723 = vadd.f32 0.0, %v1722
    %v1724 = vpop.f32.mrb[0].mxu0
    %1725 = vmatprep.mubr.bf16.mxu0 0
    %1726 = vmatmul.mubr.bf16.gmra.mrb[0].mxu0 %v1650
    %v1727 = vpop.f32.mrb[0].mxu0
    %v1728 = vadd.f32 0.0, %v1727
    %v1729 = vpop.f32.mrb[0].mxu0
    %v1730 = vpop.f32.mrb[0].mxu0
    %v1731 = vadd.f32 0.0, %v1730
    %v1732 = vpop.f32.mrb[0].mxu0
    %1733 = vmatprep.mubr.bf16.mxu0 0
    %1734 = vmatmul.mubr.bf16.gmra.mrb[0].mxu0 %v1653
    %v1735 = vpop.f32.mrb[0].mxu0
    %v1736 = vadd.f32 0.0, %v1735
    %v1737 = vpop.f32.mrb[0].mxu0
    %v1738 = vpop.f32.mrb[0].mxu0
    %v1739 = vadd.f32 0.0, %v1738
    %v1740 = vpop.f32.mrb[0].mxu0
    %1741 = vmatprep.mubr.bf16.mxu0 0
    %1742 = vmatmul.mubr.bf16.gmra.mrb[0].mxu0 %v1656
    %v1743 = vpop.f32.mrb[0].mxu0
    %v1744 = vadd.f32 0.0, %v1743
    %v1745 = vpop.f32.mrb[0].mxu0
    %v1746 = vpop.f32.mrb[0].mxu0
    %v1747 = vadd.f32 0.0, %v1746
    %v1748 = vpop.f32.mrb[0].mxu0
    %1749 = vmatprep.mubr.bf16.mxu0 0
    %1750 = vmatmul.mubr.bf16.gmra.mrb[0].mxu0 %v1659
    %v1751 = vpop.f32.mrb[0].mxu0
    %v1752 = vadd.f32 0.0, %v1751
    %v1753 = vpop.f32.mrb[0].mxu0
    %v1754 = vpop.f32.mrb[0].mxu0
    %v1755 = vadd.f32 0.0, %v1754
    %v1756 = vpop.f32.mrb[0].mxu0
    %1757 = vdwg.mxu0
    %v1758 = vmax.f32 %v1696, 0.0
    %v1759 = vmax.f32 %v1699, 0.0
    %v1760 = vmax.f32 %v1704, 0.0
    %v1761 = vmax.f32 %v1707, 0.0
    %v1762 = vmax.f32 %v1712, 0.0
    %v1763 = vmax.f32 %v1715, 0.0
    %v1764 = vmax.f32 %v1720, 0.0
    %v1765 = vmax.f32 %v1723, 0.0
    %v1766 = vmax.f32 %v1728, 0.0
    %v1767 = vmax.f32 %v1731, 0.0
    %v1768 = vmax.f32 %v1736, 0.0
    %v1769 = vmax.f32 %v1739, 0.0
    %v1770 = vmax.f32 %v1744, 0.0
    %v1771 = vmax.f32 %v1747, 0.0
    %v1772 = vmax.f32 %v1752, 0.0
    %v1773 = vmax.f32 %v1755, 0.0
    %v1774 = vpack.c.bf16 %v1759, %v1758
    %v1775 = vpack.c.bf16 %v1761, %v1760
    %v1776 = vpack.c.bf16 %v1763, %v1762
    %v1777 = vpack.c.bf16 %v1765, %v1764
    %v1778 = vpack.c.bf16 %v1767, %v1766
    %v1779 = vpack.c.bf16 %v1769, %v1768
    %v1780 = vpack.c.bf16 %v1771, %v1770
    %v1781 = vpack.c.bf16 %v1773, %v1772
    %v1782 = vld [vmem:[%s7] sm:$0xf]
    %v1783 = vld [vmem:[%s7 + $0x4] sm:$0xf]
    %v1784 = vld [vmem:[%s7 + $0x8] sm:$0xf]
    %v1785 = vld [vmem:[%s7 + $0xc] sm:$0xf]
    %v1786 = vld [vmem:[%s9] sm:$0x1]
    %v1788 = vlaneseq
    %v1789 = vshrl.u32 %v1788, 7
    %v1790 = vsub.s32 0, %v1789
    %v1791 = vrot.slane %v1786, %v1790
    %v1797 = vunpack.c.l.b16 %v1782
    %v1798 = vunpack.c.l.b16 %v1783
    %v1799 = vunpack.c.l.b16 %v1784
    %v1800 = vunpack.c.l.b16 %v1785
    %v1801 = vpack.c.b16 %v1798, %v1797
    %v1802 = vpack.c.b16 %v1800, %v1799
    %v1806 = vsel %vm494, %v1774, 0
    %v1809 = vsel %vm494, %v1775, 0
    %v1812 = vsel %vm494, %v1776, 0
    %v1815 = vsel %vm494, %v1777, 0
    %v1818 = vsel %vm494, %v1778, 0
    %v1821 = vsel %vm494, %v1779, 0
    %v1824 = vsel %vm494, %v1780, 0
    %v1827 = vsel %vm494, %v1781, 0
    %1829 = vmatprep.subr.bf16.mxu0 0
    %1830 = vmatpush1.bf16.msra.mxu0 %v1801
    %1831 = vmatprep.subr.bf16.mxu0 0
    %1832 = vmatpush1.bf16.msra.mxu0 %v1802
    %1833 = vmatprep.subr.bf16.mxu0 0
    %1834 = vmatpush1.bf16.msra.mxu0 0
    %1835 = vmatprep.subr.bf16.mxu0 0
    %1836 = vmatpush1.bf16.msra.mxu0 0
    %1837 = vmatprep.subr.bf16.mxu0 0
    %1838 = vmatpush1.bf16.msra.mxu0 0
    %1839 = vmatprep.subr.bf16.mxu0 0
    %1840 = vmatpush1.bf16.msra.mxu0 0
    %1841 = vmatprep.subr.bf16.mxu0 0
    %1842 = vmatpush1.bf16.msra.mxu0 0
    %1843 = vmatprep.subr.bf16.mxu0 0
    %1844 = vmatpush1.bf16.msra.mxu0 0
    %1845 = vmatprep.subr.bf16.mxu0 0
    %1846 = vmatpush1.bf16.msra.mxu0 0
    %1847 = vmatprep.subr.bf16.mxu0 0
    %1848 = vmatpush1.bf16.msra.mxu0 0
    %1849 = vmatprep.subr.bf16.mxu0 0
    %1850 = vmatpush1.bf16.msra.mxu0 0
    %1851 = vmatprep.subr.bf16.mxu0 0
    %1852 = vmatpush1.bf16.msra.mxu0 0
    %1853 = vmatprep.subr.bf16.mxu0 0
    %1854 = vmatpush1.bf16.msra.mxu0 0
    %1855 = vmatprep.subr.bf16.mxu0 0
    %1856 = vmatpush1.bf16.msra.mxu0 0
    %1857 = vmatprep.subr.bf16.mxu0 0
    %1858 = vmatpush1.bf16.msra.mxu0 0
    %1859 = vmatprep.subr.bf16.mxu0 0
    %1860 = vmatpush1.bf16.msra.mxu0 0
    %1861 = vmatprep.mubr.bf16.mxu0 0
    %1862 = vmatmul.mubr.bf16.gmra.mrb[0].mxu0 %v1806
    %v1863 = vpop.f32.mrb[0].mxu0
    %v1864 = vadd.f32 %v1791, %v1863
    %v1865 = vpop.f32.mrb[0].mxu0
    %v1866 = vpop.f32.mrb[0].mxu0
    %v1867 = vadd.f32 %v1791, %v1866
    %v1868 = vpop.f32.mrb[0].mxu0
    %1869 = vmatprep.mubr.bf16.mxu0 0
    %1870 = vmatmul.mubr.bf16.gmra.mrb[0].mxu0 %v1809
    %v1871 = vpop.f32.mrb[0].mxu0
    %v1872 = vadd.f32 %v1791, %v1871
    %v1873 = vpop.f32.mrb[0].mxu0
    %v1874 = vpop.f32.mrb[0].mxu0
    %v1875 = vadd.f32 %v1791, %v1874
    %v1876 = vpop.f32.mrb[0].mxu0
    %1877 = vmatprep.mubr.bf16.mxu0 0
    %1878 = vmatmul.mubr.bf16.gmra.mrb[0].mxu0 %v1812
    %v1879 = vpop.f32.mrb[0].mxu0
    %v1880 = vadd.f32 %v1791, %v1879
    %v1881 = vpop.f32.mrb[0].mxu0
    %v1882 = vpop.f32.mrb[0].mxu0
    %v1883 = vadd.f32 %v1791, %v1882
    %v1884 = vpop.f32.mrb[0].mxu0
    %1885 = vmatprep.mubr.bf16.mxu0 0
    %1886 = vmatmul.mubr.bf16.gmra.mrb[0].mxu0 %v1815
    %v1887 = vpop.f32.mrb[0].mxu0
    %v1888 = vadd.f32 %v1791, %v1887
    %v1889 = vpop.f32.mrb[0].mxu0
    %v1890 = vpop.f32.mrb[0].mxu0
    %v1891 = vadd.f32 %v1791, %v1890
    %v1892 = vpop.f32.mrb[0].mxu0
    %1893 = vmatprep.mubr.bf16.mxu0 0
    %1894 = vmatmul.mubr.bf16.gmra.mrb[0].mxu0 %v1818
    %v1895 = vpop.f32.mrb[0].mxu0
    %v1896 = vadd.f32 %v1791, %v1895
    %v1897 = vpop.f32.mrb[0].mxu0
    %v1898 = vpop.f32.mrb[0].mxu0
    %v1899 = vadd.f32 %v1791, %v1898
    %v1900 = vpop.f32.mrb[0].mxu0
    %1901 = vmatprep.mubr.bf16.mxu0 0
    %1902 = vmatmul.mubr.bf16.gmra.mrb[0].mxu0 %v1821
    %v1903 = vpop.f32.mrb[0].mxu0
    %v1904 = vadd.f32 %v1791, %v1903
    %v1905 = vpop.f32.mrb[0].mxu0
    %v1906 = vpop.f32.mrb[0].mxu0
    %v1907 = vadd.f32 %v1791, %v1906
    %v1908 = vpop.f32.mrb[0].mxu0
    %1909 = vmatprep.mubr.bf16.mxu0 0
    %1910 = vmatmul.mubr.bf16.gmra.mrb[0].mxu0 %v1824
    %v1911 = vpop.f32.mrb[0].mxu0
    %v1912 = vadd.f32 %v1791, %v1911
    %v1913 = vpop.f32.mrb[0].mxu0
    %v1914 = vpop.f32.mrb[0].mxu0
    %v1915 = vadd.f32 %v1791, %v1914
    %v1916 = vpop.f32.mrb[0].mxu0
    %1917 = vmatprep.mubr.bf16.mxu0 0
    %1918 = vmatmul.mubr.bf16.gmra.mrb[0].mxu0 %v1827
    %v1919 = vpop.f32.mrb[0].mxu0
    %v1920 = vadd.f32 %v1791, %v1919
    %v1921 = vpop.f32.mrb[0].mxu0
    %v1922 = vpop.f32.mrb[0].mxu0
    %v1923 = vadd.f32 %v1791, %v1922
    %v1924 = vpop.f32.mrb[0].mxu0
    %1925 = vdwg.mxu0
    %v1926 = vld [vmem:[#allocation9] sm:$0xf]
    %v1927 = vld [vmem:[#allocation9 + $0x4] sm:$0xf]
    %v1928 = vld [vmem:[#allocation9 + $0x8] sm:$0xf]
    %v1929 = vld [vmem:[#allocation9 + $0xc] sm:$0xf]
    %v1934 = vunpack.c.l.b16 %v1926
    %v1935 = vunpack.c.l.b16 %v1927
    %v1936 = vunpack.c.l.b16 %v1928
    %v1937 = vunpack.c.l.b16 %v1929
    %v1938 = vpack.c.b16 %v1935, %v1934
    %v1939 = vpack.c.b16 %v1937, %v1936
    %1942 = vmatprep.subr.bf16.mxu0 0
    %1943 = vmatpush1.bf16.msra.mxu0 %v1938
    %1944 = vmatprep.subr.bf16.mxu0 0
    %1945 = vmatpush1.bf16.msra.mxu0 %v1939
    %1946 = vmatprep.subr.bf16.mxu0 0
    %1947 = vmatpush1.bf16.msra.mxu0 0
    %1948 = vmatprep.subr.bf16.mxu0 0
    %1949 = vmatpush1.bf16.msra.mxu0 0
    %1950 = vmatprep.subr.bf16.mxu0 0
    %1951 = vmatpush1.bf16.msra.mxu0 0
    %1952 = vmatprep.subr.bf16.mxu0 0
    %1953 = vmatpush1.bf16.msra.mxu0 0
    %1954 = vmatprep.subr.bf16.mxu0 0
    %1955 = vmatpush1.bf16.msra.mxu0 0
    %1956 = vmatprep.subr.bf16.mxu0 0
    %1957 = vmatpush1.bf16.msra.mxu0 0
    %1958 = vmatprep.subr.bf16.mxu0 0
    %1959 = vmatpush1.bf16.msra.mxu0 0
    %1960 = vmatprep.subr.bf16.mxu0 0
    %1961 = vmatpush1.bf16.msra.mxu0 0
    %1962 = vmatprep.subr.bf16.mxu0 0
    %1963 = vmatpush1.bf16.msra.mxu0 0
    %1964 = vmatprep.subr.bf16.mxu0 0
    %1965 = vmatpush1.bf16.msra.mxu0 0
    %1966 = vmatprep.subr.bf16.mxu0 0
    %1967 = vmatpush1.bf16.msra.mxu0 0
    %1968 = vmatprep.subr.bf16.mxu0 0
    %1969 = vmatpush1.bf16.msra.mxu0 0
    %1970 = vmatprep.subr.bf16.mxu0 0
    %1971 = vmatpush1.bf16.msra.mxu0 0
    %1972 = vmatprep.subr.bf16.mxu0 0
    %1973 = vmatpush1.bf16.msra.mxu0 0
    %1974 = vmatprep.mubr.bf16.mxu0 0
    %1975 = vmatmul.mubr.bf16.gmra.mrb[0].mxu0 %v633
    %v1976 = vpop.f32.mrb[0].mxu0
    %v1977 = vadd.f32 0.0, %v1976
    %v1978 = vpop.f32.mrb[0].mxu0
    %v1979 = vpop.f32.mrb[0].mxu0
    %v1980 = vadd.f32 0.0, %v1979
    %v1981 = vpop.f32.mrb[0].mxu0
    %1982 = vdwg.mxu0
    %v1983 = vadd.f32 %v1864, %v1977
    %v1984 = vadd.f32 %v1867, %v1980
    %v1985 = vxor.u32 %v1983, 2147483648
    %v1986 = vxor.u32 %v1984, 2147483648
    %v1987 = vmul.f32 %v1985, 1.442695
    %v1988 = vpow.pop %v1987
    %v1989 = vmul.f32 %v1986, 1.442695
    %v1990 = vpow.pop %v1989
    %v1991 = vadd.f32 %v1988, 1.0
    %v1992 = vadd.f32 %v1990, 1.0
    %v1993 = vrcp.pop %v1991
    %v1994 = vmul.f32 1.0, %v1993
    %v1995 = vrcp.pop %v1992
    %v1996 = vmul.f32 1.0, %v1995
    %v1997 = vtanh.pop %v1983
    %v1998 = vtanh.pop %v1984
    %v1999 = vmul.f32 %v1994, 0.0
    %v2000 = vmul.f32 %v1996, 0.0
    %2003 = vrot.lane.b32.xlu0 %v1997, 64
    %v2004 = vpop.permute.xlu0 %2003
    %2005 = vrot.lane.b32.xlu0 %v1998, 64
    %v2006 = vpop.permute.xlu0 %2005
    %v2009 = vmul.f32 %v1994, %v2004
    %v2010 = vmul.f32 %v1996, %v2006
    %2013 = vrot.lane.b32.xlu0 %v2009, 32
    %v2014 = vpop.permute.xlu0 %2013
    %2015 = vrot.lane.b32.xlu0 %v2010, 32
    %v2016 = vpop.permute.xlu0 %2015
    %v2019 = vadd.f32 %v1999, %v2014
    %v2020 = vadd.f32 %v2000, %v2016
    %v2021 = vtanh.pop %v2019
    %v2022 = vtanh.pop %v2020
    %2025 = vrot.lane.b32.xlu0 %v2021, 64
    %v2026 = vpop.permute.xlu0 %2025
    %2027 = vrot.lane.b32.xlu0 %v2022, 64
    %v2028 = vpop.permute.xlu0 %2027
    %v2031 = vmul.f32 %v1994, %v2026
    %v2032 = vmul.f32 %v1996, %v2028
    %v2033 = vpack.c.bf16 %v2032, %v2031
    %2035 = vrot.lane.b32.xlu0 %v2033, 32
    %v2036 = vpop.permute.xlu0 %2035
    %v2038 = vsel %vm494, %v2036, 0
    %2040 = vmatprep.subr.bf16.mxu0 0
    %2041 = vmatpush1.bf16.msra.mxu0 %v1938
    %2042 = vmatprep.subr.bf16.mxu0 0
    %2043 = vmatpush1.bf16.msra.mxu0 %v1939
    %2044 = vmatprep.subr.bf16.mxu0 0
    %2045 = vmatpush1.bf16.msra.mxu0 0
    %2046 = vmatprep.subr.bf16.mxu0 0
    %2047 = vmatpush1.bf16.msra.mxu0 0
    %2048 = vmatprep.subr.bf16.mxu0 0
    %2049 = vmatpush1.bf16.msra.mxu0 0
    %2050 = vmatprep.subr.bf16.mxu0 0
    %2051 = vmatpush1.bf16.msra.mxu0 0
    %2052 = vmatprep.subr.bf16.mxu0 0
    %2053 = vmatpush1.bf16.msra.mxu0 0
    %2054 = vmatprep.subr.bf16.mxu0 0
    %2055 = vmatpush1.bf16.msra.mxu0 0
    %2056 = vmatprep.subr.bf16.mxu0 0
    %2057 = vmatpush1.bf16.msra.mxu0 0
    %2058 = vmatprep.subr.bf16.mxu0 0
    %2059 = vmatpush1.bf16.msra.mxu0 0
    %2060 = vmatprep.subr.bf16.mxu0 0
    %2061 = vmatpush1.bf16.msra.mxu0 0
    %2062 = vmatprep.subr.bf16.mxu0 0
    %2063 = vmatpush1.bf16.msra.mxu0 0
    %2064 = vmatprep.subr.bf16.mxu0 0
    %2065 = vmatpush1.bf16.msra.mxu0 0
    %2066 = vmatprep.subr.bf16.mxu0 0
    %2067 = vmatpush1.bf16.msra.mxu0 0
    %2068 = vmatprep.subr.bf16.mxu0 0
    %2069 = vmatpush1.bf16.msra.mxu0 0
    %2070 = vmatprep.subr.bf16.mxu0 0
    %2071 = vmatpush1.bf16.msra.mxu0 0
    %2072 = vmatprep.mubr.bf16.mxu0 0
    %2073 = vmatmul.mubr.bf16.gmra.mrb[0].mxu0 %v2038
    %v2074 = vpop.f32.mrb[0].mxu0
    %v2075 = vadd.f32 0.0, %v2074
    %v2076 = vpop.f32.mrb[0].mxu0
    %v2077 = vpop.f32.mrb[0].mxu0
    %v2078 = vadd.f32 0.0, %v2077
    %v2079 = vpop.f32.mrb[0].mxu0
    %2080 = vdwg.mxu0
    %v2081 = vadd.f32 %v1872, %v2075
    %v2082 = vadd.f32 %v1875, %v2078
    %v2083 = vxor.u32 %v2081, 2147483648
    %v2084 = vxor.u32 %v2082, 2147483648
    %v2085 = vmul.f32 %v2083, 1.442695
    %v2086 = vpow.pop %v2085
    %v2087 = vmul.f32 %v2084, 1.442695
    %v2088 = vpow.pop %v2087
    %v2089 = vadd.f32 %v2086, 1.0
    %v2090 = vadd.f32 %v2088, 1.0
    %v2091 = vrcp.pop %v2089
    %v2092 = vmul.f32 1.0, %v2091
    %v2093 = vrcp.pop %v2090
    %v2094 = vmul.f32 1.0, %v2093
    %v2095 = vtanh.pop %v2081
    %v2096 = vtanh.pop %v2082
    %v2097 = vmul.f32 %v2092, %v2019
    %v2098 = vmul.f32 %v2094, %v2020
    %2101 = vrot.lane.b32.xlu0 %v2095, 64
    %v2102 = vpop.permute.xlu0 %2101
    %2103 = vrot.lane.b32.xlu0 %v2096, 64
    %v2104 = vpop.permute.xlu0 %2103
    %v2107 = vmul.f32 %v2092, %v2102
    %v2108 = vmul.f32 %v2094, %v2104
    %2111 = vrot.lane.b32.xlu0 %v2107, 32
    %v2112 = vpop.permute.xlu0 %2111
    %2113 = vrot.lane.b32.xlu0 %v2108, 32
    %v2114 = vpop.permute.xlu0 %2113
    %v2117 = vadd.f32 %v2097, %v2112
    %v2118 = vadd.f32 %v2098, %v2114
    %v2119 = vtanh.pop %v2117
    %v2120 = vtanh.pop %v2118
    %2123 = vrot.lane.b32.xlu0 %v2119, 64
    %v2124 = vpop.permute.xlu0 %2123
    %2125 = vrot.lane.b32.xlu0 %v2120, 64
    %v2126 = vpop.permute.xlu0 %2125
    %v2129 = vmul.f32 %v2092, %v2124
    %v2130 = vmul.f32 %v2094, %v2126
    %v2131 = vpack.c.bf16 %v2130, %v2129
    %2133 = vrot.lane.b32.xlu0 %v2131, 32
    %v2134 = vpop.permute.xlu0 %2133
    %v2136 = vsel %vm494, %v2134, 0
    %2138 = vmatprep.subr.bf16.mxu0 0
    %2139 = vmatpush1.bf16.msra.mxu0 %v1938
    %2140 = vmatprep.subr.bf16.mxu0 0
    %2141 = vmatpush1.bf16.msra.mxu0 %v1939
    %2142 = vmatprep.subr.bf16.mxu0 0
    %2143 = vmatpush1.bf16.msra.mxu0 0
    %2144 = vmatprep.subr.bf16.mxu0 0
    %2145 = vmatpush1.bf16.msra.mxu0 0
    %2146 = vmatprep.subr.bf16.mxu0 0
    %2147 = vmatpush1.bf16.msra.mxu0 0
    %2148 = vmatprep.subr.bf16.mxu0 0
    %2149 = vmatpush1.bf16.msra.mxu0 0
    %2150 = vmatprep.subr.bf16.mxu0 0
    %2151 = vmatpush1.bf16.msra.mxu0 0
    %2152 = vmatprep.subr.bf16.mxu0 0
    %2153 = vmatpush1.bf16.msra.mxu0 0
    %2154 = vmatprep.subr.bf16.mxu0 0
    %2155 = vmatpush1.bf16.msra.mxu0 0
    %2156 = vmatprep.subr.bf16.mxu0 0
    %2157 = vmatpush1.bf16.msra.mxu0 0
    %2158 = vmatprep.subr.bf16.mxu0 0
    %2159 = vmatpush1.bf16.msra.mxu0 0
    %2160 = vmatprep.subr.bf16.mxu0 0
    %2161 = vmatpush1.bf16.msra.mxu0 0
    %2162 = vmatprep.subr.bf16.mxu0 0
    %2163 = vmatpush1.bf16.msra.mxu0 0
    %2164 = vmatprep.subr.bf16.mxu0 0
    %2165 = vmatpush1.bf16.msra.mxu0 0
    %2166 = vmatprep.subr.bf16.mxu0 0
    %2167 = vmatpush1.bf16.msra.mxu0 0
    %2168 = vmatprep.subr.bf16.mxu0 0
    %2169 = vmatpush1.bf16.msra.mxu0 0
    %2170 = vmatprep.mubr.bf16.mxu0 0
    %2171 = vmatmul.mubr.bf16.gmra.mrb[0].mxu0 %v2136
    %v2172 = vpop.f32.mrb[0].mxu0
    %v2173 = vadd.f32 0.0, %v2172
    %v2174 = vpop.f32.mrb[0].mxu0
    %v2175 = vpop.f32.mrb[0].mxu0
    %v2176 = vadd.f32 0.0, %v2175
    %v2177 = vpop.f32.mrb[0].mxu0
    %2178 = vdwg.mxu0
    %v2179 = vadd.f32 %v1880, %v2173
    %v2180 = vadd.f32 %v1883, %v2176
    %v2181 = vxor.u32 %v2179, 2147483648
    %v2182 = vxor.u32 %v2180, 2147483648
    %v2183 = vmul.f32 %v2181, 1.442695
    %v2184 = vpow.pop %v2183
    %v2185 = vmul.f32 %v2182, 1.442695
    %v2186 = vpow.pop %v2185
    %v2187 = vadd.f32 %v2184, 1.0
    %v2188 = vadd.f32 %v2186, 1.0
    %v2189 = vrcp.pop %v2187
    %v2190 = vmul.f32 1.0, %v2189
    %v2191 = vrcp.pop %v2188
    %v2192 = vmul.f32 1.0, %v2191
    %v2193 = vtanh.pop %v2179
    %v2194 = vtanh.pop %v2180
    %v2195 = vmul.f32 %v2190, %v2117
    %v2196 = vmul.f32 %v2192, %v2118
    %2199 = vrot.lane.b32.xlu0 %v2193, 64
    %v2200 = vpop.permute.xlu0 %2199
    %2201 = vrot.lane.b32.xlu0 %v2194, 64
    %v2202 = vpop.permute.xlu0 %2201
    %v2205 = vmul.f32 %v2190, %v2200
    %v2206 = vmul.f32 %v2192, %v2202
    %2209 = vrot.lane.b32.xlu0 %v2205, 32
    %v2210 = vpop.permute.xlu0 %2209
    %2211 = vrot.lane.b32.xlu0 %v2206, 32
    %v2212 = vpop.permute.xlu0 %2211
    %v2215 = vadd.f32 %v2195, %v2210
    %v2216 = vadd.f32 %v2196, %v2212
    %v2217 = vtanh.pop %v2215
    %v2218 = vtanh.pop %v2216
    %2221 = vrot.lane.b32.xlu0 %v2217, 64
    %v2222 = vpop.permute.xlu0 %2221
    %2223 = vrot.lane.b32.xlu0 %v2218, 64
    %v2224 = vpop.permute.xlu0 %2223
    %v2227 = vmul.f32 %v2190, %v2222
    %v2228 = vmul.f32 %v2192, %v2224
    %v2229 = vpack.c.bf16 %v2228, %v2227
    %2231 = vrot.lane.b32.xlu0 %v2229, 32
    %v2232 = vpop.permute.xlu0 %2231
    %v2234 = vsel %vm494, %v2232, 0
    %2236 = vmatprep.subr.bf16.mxu0 0
    %2237 = vmatpush1.bf16.msra.mxu0 %v1938
    %2238 = vmatprep.subr.bf16.mxu0 0
    %2239 = vmatpush1.bf16.msra.mxu0 %v1939
    %2240 = vmatprep.subr.bf16.mxu0 0
    %2241 = vmatpush1.bf16.msra.mxu0 0
    %2242 = vmatprep.subr.bf16.mxu0 0
    %2243 = vmatpush1.bf16.msra.mxu0 0
    %2244 = vmatprep.subr.bf16.mxu0 0
    %2245 = vmatpush1.bf16.msra.mxu0 0
    %2246 = vmatprep.subr.bf16.mxu0 0
    %2247 = vmatpush1.bf16.msra.mxu0 0
    %2248 = vmatprep.subr.bf16.mxu0 0
    %2249 = vmatpush1.bf16.msra.mxu0 0
    %2250 = vmatprep.subr.bf16.mxu0 0
    %2251 = vmatpush1.bf16.msra.mxu0 0
    %2252 = vmatprep.subr.bf16.mxu0 0
    %2253 = vmatpush1.bf16.msra.mxu0 0
    %2254 = vmatprep.subr.bf16.mxu0 0
    %2255 = vmatpush1.bf16.msra.mxu0 0
    %2256 = vmatprep.subr.bf16.mxu0 0
    %2257 = vmatpush1.bf16.msra.mxu0 0
    %2258 = vmatprep.subr.bf16.mxu0 0
    %2259 = vmatpush1.bf16.msra.mxu0 0
    %2260 = vmatprep.subr.bf16.mxu0 0
    %2261 = vmatpush1.bf16.msra.mxu0 0
    %2262 = vmatprep.subr.bf16.mxu0 0
    %2263 = vmatpush1.bf16.msra.mxu0 0
    %2264 = vmatprep.subr.bf16.mxu0 0
    %2265 = vmatpush1.bf16.msra.mxu0 0
    %2266 = vmatprep.subr.bf16.mxu0 0
    %2267 = vmatpush1.bf16.msra.mxu0 0
    %2268 = vmatprep.mubr.bf16.mxu0 0
    %2269 = vmatmul.mubr.bf16.gmra.mrb[0].mxu0 %v2234
    %v2270 = vpop.f32.mrb[0].mxu0
    %v2271 = vadd.f32 0.0, %v2270
    %v2272 = vpop.f32.mrb[0].mxu0
    %v2273 = vpop.f32.mrb[0].mxu0
    %v2274 = vadd.f32 0.0, %v2273
    %v2275 = vpop.f32.mrb[0].mxu0
    %2276 = vdwg.mxu0
    %v2277 = vadd.f32 %v1888, %v2271
    %v2278 = vadd.f32 %v1891, %v2274
    %v2279 = vxor.u32 %v2277, 2147483648
    %v2280 = vxor.u32 %v2278, 2147483648
    %v2281 = vmul.f32 %v2279, 1.442695
    %v2282 = vpow.pop %v2281
    %v2283 = vmul.f32 %v2280, 1.442695
    %v2284 = vpow.pop %v2283
    %v2285 = vadd.f32 %v2282, 1.0
    %v2286 = vadd.f32 %v2284, 1.0
    %v2287 = vrcp.pop %v2285
    %v2288 = vmul.f32 1.0, %v2287
    %v2289 = vrcp.pop %v2286
    %v2290 = vmul.f32 1.0, %v2289
    %v2291 = vtanh.pop %v2277
    %v2292 = vtanh.pop %v2278
    %v2293 = vmul.f32 %v2288, %v2215
    %v2294 = vmul.f32 %v2290, %v2216
    %2297 = vrot.lane.b32.xlu0 %v2291, 64
    %v2298 = vpop.permute.xlu0 %2297
    %2299 = vrot.lane.b32.xlu0 %v2292, 64
    %v2300 = vpop.permute.xlu0 %2299
    %v2303 = vmul.f32 %v2288, %v2298
    %v2304 = vmul.f32 %v2290, %v2300
    %2307 = vrot.lane.b32.xlu0 %v2303, 32
    %v2308 = vpop.permute.xlu0 %2307
    %2309 = vrot.lane.b32.xlu0 %v2304, 32
    %v2310 = vpop.permute.xlu0 %2309
    %v2313 = vadd.f32 %v2293, %v2308
    %v2314 = vadd.f32 %v2294, %v2310
    %v2315 = vtanh.pop %v2313
    %v2316 = vtanh.pop %v2314
    %2319 = vrot.lane.b32.xlu0 %v2315, 64
    %v2320 = vpop.permute.xlu0 %2319
    %2321 = vrot.lane.b32.xlu0 %v2316, 64
    %v2322 = vpop.permute.xlu0 %2321
    %v2325 = vmul.f32 %v2288, %v2320
    %v2326 = vmul.f32 %v2290, %v2322
    %v2327 = vpack.c.bf16 %v2326, %v2325
    %2329 = vrot.lane.b32.xlu0 %v2327, 32
    %v2330 = vpop.permute.xlu0 %2329
    %v2332 = vsel %vm494, %v2330, 0
    %2334 = vmatprep.subr.bf16.mxu0 0
    %2335 = vmatpush1.bf16.msra.mxu0 %v1938
    %2336 = vmatprep.subr.bf16.mxu0 0
    %2337 = vmatpush1.bf16.msra.mxu0 %v1939
    %2338 = vmatprep.subr.bf16.mxu0 0
    %2339 = vmatpush1.bf16.msra.mxu0 0
    %2340 = vmatprep.subr.bf16.mxu0 0
    %2341 = vmatpush1.bf16.msra.mxu0 0
    %2342 = vmatprep.subr.bf16.mxu0 0
    %2343 = vmatpush1.bf16.msra.mxu0 0
    %2344 = vmatprep.subr.bf16.mxu0 0
    %2345 = vmatpush1.bf16.msra.mxu0 0
    %2346 = vmatprep.subr.bf16.mxu0 0
    %2347 = vmatpush1.bf16.msra.mxu0 0
    %2348 = vmatprep.subr.bf16.mxu0 0
    %2349 = vmatpush1.bf16.msra.mxu0 0
    %2350 = vmatprep.subr.bf16.mxu0 0
    %2351 = vmatpush1.bf16.msra.mxu0 0
    %2352 = vmatprep.subr.bf16.mxu0 0
    %2353 = vmatpush1.bf16.msra.mxu0 0
    %2354 = vmatprep.subr.bf16.mxu0 0
    %2355 = vmatpush1.bf16.msra.mxu0 0
    %2356 = vmatprep.subr.bf16.mxu0 0
    %2357 = vmatpush1.bf16.msra.mxu0 0
    %2358 = vmatprep.subr.bf16.mxu0 0
    %2359 = vmatpush1.bf16.msra.mxu0 0
    %2360 = vmatprep.subr.bf16.mxu0 0
    %2361 = vmatpush1.bf16.msra.mxu0 0
    %2362 = vmatprep.subr.bf16.mxu0 0
    %2363 = vmatpush1.bf16.msra.mxu0 0
    %2364 = vmatprep.subr.bf16.mxu0 0
    %2365 = vmatpush1.bf16.msra.mxu0 0
    %2366 = vmatprep.mubr.bf16.mxu0 0
    %2367 = vmatmul.mubr.bf16.gmra.mrb[0].mxu0 %v2332
    %v2368 = vpop.f32.mrb[0].mxu0
    %v2369 = vadd.f32 0.0, %v2368
    %v2370 = vpop.f32.mrb[0].mxu0
    %v2371 = vpop.f32.mrb[0].mxu0
    %v2372 = vadd.f32 0.0, %v2371
    %v2373 = vpop.f32.mrb[0].mxu0
    %2374 = vdwg.mxu0
    %v2375 = vadd.f32 %v1896, %v2369
    %v2376 = vadd.f32 %v1899, %v2372
    %v2377 = vxor.u32 %v2375, 2147483648
    %v2378 = vxor.u32 %v2376, 2147483648
    %v2379 = vmul.f32 %v2377, 1.442695
    %v2380 = vpow.pop %v2379
    %v2381 = vmul.f32 %v2378, 1.442695
    %v2382 = vpow.pop %v2381
    %v2383 = vadd.f32 %v2380, 1.0
    %v2384 = vadd.f32 %v2382, 1.0
    %v2385 = vrcp.pop %v2383
    %v2386 = vmul.f32 1.0, %v2385
    %v2387 = vrcp.pop %v2384
    %v2388 = vmul.f32 1.0, %v2387
    %v2389 = vtanh.pop %v2375
    %v2390 = vtanh.pop %v2376
    %v2391 = vmul.f32 %v2386, %v2313
    %v2392 = vmul.f32 %v2388, %v2314
    %2395 = vrot.lane.b32.xlu0 %v2389, 64
    %v2396 = vpop.permute.xlu0 %2395
    %2397 = vrot.lane.b32.xlu0 %v2390, 64
    %v2398 = vpop.permute.xlu0 %2397
    %v2401 = vmul.f32 %v2386, %v2396
    %v2402 = vmul.f32 %v2388, %v2398
    %2405 = vrot.lane.b32.xlu0 %v2401, 32
    %v2406 = vpop.permute.xlu0 %2405
    %2407 = vrot.lane.b32.xlu0 %v2402, 32
    %v2408 = vpop.permute.xlu0 %2407
    %v2411 = vadd.f32 %v2391, %v2406
    %v2412 = vadd.f32 %v2392, %v2408
    %v2413 = vtanh.pop %v2411
    %v2414 = vtanh.pop %v2412
    %2417 = vrot.lane.b32.xlu0 %v2413, 64
    %v2418 = vpop.permute.xlu0 %2417
    %2419 = vrot.lane.b32.xlu0 %v2414, 64
    %v2420 = vpop.permute.xlu0 %2419
    %v2423 = vmul.f32 %v2386, %v2418
    %v2424 = vmul.f32 %v2388, %v2420
    %v2425 = vpack.c.bf16 %v2424, %v2423
    %2427 = vrot.lane.b32.xlu0 %v2425, 32
    %v2428 = vpop.permute.xlu0 %2427
    %v2430 = vsel %vm494, %v2428, 0
    %2432 = vmatprep.subr.bf16.mxu0 0
    %2433 = vmatpush1.bf16.msra.mxu0 %v1938
    %2434 = vmatprep.subr.bf16.mxu0 0
    %2435 = vmatpush1.bf16.msra.mxu0 %v1939
    %2436 = vmatprep.subr.bf16.mxu0 0
    %2437 = vmatpush1.bf16.msra.mxu0 0
    %2438 = vmatprep.subr.bf16.mxu0 0
    %2439 = vmatpush1.bf16.msra.mxu0 0
    %2440 = vmatprep.subr.bf16.mxu0 0
    %2441 = vmatpush1.bf16.msra.mxu0 0
    %2442 = vmatprep.subr.bf16.mxu0 0
    %2443 = vmatpush1.bf16.msra.mxu0 0
    %2444 = vmatprep.subr.bf16.mxu0 0
    %2445 = vmatpush1.bf16.msra.mxu0 0
    %2446 = vmatprep.subr.bf16.mxu0 0
    %2447 = vmatpush1.bf16.msra.mxu0 0
    %2448 = vmatprep.subr.bf16.mxu0 0
    %2449 = vmatpush1.bf16.msra.mxu0 0
    %2450 = vmatprep.subr.bf16.mxu0 0
    %2451 = vmatpush1.bf16.msra.mxu0 0
    %2452 = vmatprep.subr.bf16.mxu0 0
    %2453 = vmatpush1.bf16.msra.mxu0 0
    %2454 = vmatprep.subr.bf16.mxu0 0
    %2455 = vmatpush1.bf16.msra.mxu0 0
    %2456 = vmatprep.subr.bf16.mxu0 0
    %2457 = vmatpush1.bf16.msra.mxu0 0
    %2458 = vmatprep.subr.bf16.mxu0 0
    %2459 = vmatpush1.bf16.msra.mxu0 0
    %2460 = vmatprep.subr.bf16.mxu0 0
    %2461 = vmatpush1.bf16.msra.mxu0 0
    %2462 = vmatprep.subr.bf16.mxu0 0
    %2463 = vmatpush1.bf16.msra.mxu0 0
    %2464 = vmatprep.mubr.bf16.mxu0 0
    %2465 = vmatmul.mubr.bf16.gmra.mrb[0].mxu0 %v2430
    %v2466 = vpop.f32.mrb[0].mxu0
    %v2467 = vadd.f32 0.0, %v2466
    %v2468 = vpop.f32.mrb[0].mxu0
    %v2469 = vpop.f32.mrb[0].mxu0
    %v2470 = vadd.f32 0.0, %v2469
    %v2471 = vpop.f32.mrb[0].mxu0
    %2472 = vdwg.mxu0
    %v2473 = vadd.f32 %v1904, %v2467
    %v2474 = vadd.f32 %v1907, %v2470
    %v2475 = vxor.u32 %v2473, 2147483648
    %v2476 = vxor.u32 %v2474, 2147483648
    %v2477 = vmul.f32 %v2475, 1.442695
    %v2478 = vpow.pop %v2477
    %v2479 = vmul.f32 %v2476, 1.442695
    %v2480 = vpow.pop %v2479
    %v2481 = vadd.f32 %v2478, 1.0
    %v2482 = vadd.f32 %v2480, 1.0
    %v2483 = vrcp.pop %v2481
    %v2484 = vmul.f32 1.0, %v2483
    %v2485 = vrcp.pop %v2482
    %v2486 = vmul.f32 1.0, %v2485
    %v2487 = vtanh.pop %v2473
    %v2488 = vtanh.pop %v2474
    %v2489 = vmul.f32 %v2484, %v2411
    %v2490 = vmul.f32 %v2486, %v2412
    %2493 = vrot.lane.b32.xlu0 %v2487, 64
    %v2494 = vpop.permute.xlu0 %2493
    %2495 = vrot.lane.b32.xlu0 %v2488, 64
    %v2496 = vpop.permute.xlu0 %2495
    %v2499 = vmul.f32 %v2484, %v2494
    %v2500 = vmul.f32 %v2486, %v2496
    %2503 = vrot.lane.b32.xlu0 %v2499, 32
    %v2504 = vpop.permute.xlu0 %2503
    %2505 = vrot.lane.b32.xlu0 %v2500, 32
    %v2506 = vpop.permute.xlu0 %2505
    %v2509 = vadd.f32 %v2489, %v2504
    %v2510 = vadd.f32 %v2490, %v2506
    %v2511 = vtanh.pop %v2509
    %v2512 = vtanh.pop %v2510
    %2515 = vrot.lane.b32.xlu0 %v2511, 64
    %v2516 = vpop.permute.xlu0 %2515
    %2517 = vrot.lane.b32.xlu0 %v2512, 64
    %v2518 = vpop.permute.xlu0 %2517
    %v2521 = vmul.f32 %v2484, %v2516
    %v2522 = vmul.f32 %v2486, %v2518
    %v2523 = vpack.c.bf16 %v2522, %v2521
    %2525 = vrot.lane.b32.xlu0 %v2523, 32
    %v2526 = vpop.permute.xlu0 %2525
    %v2528 = vsel %vm494, %v2526, 0
    %2530 = vmatprep.subr.bf16.mxu0 0
    %2531 = vmatpush1.bf16.msra.mxu0 %v1938
    %2532 = vmatprep.subr.bf16.mxu0 0
    %2533 = vmatpush1.bf16.msra.mxu0 %v1939
    %2534 = vmatprep.subr.bf16.mxu0 0
    %2535 = vmatpush1.bf16.msra.mxu0 0
    %2536 = vmatprep.subr.bf16.mxu0 0
    %2537 = vmatpush1.bf16.msra.mxu0 0
    %2538 = vmatprep.subr.bf16.mxu0 0
    %2539 = vmatpush1.bf16.msra.mxu0 0
    %2540 = vmatprep.subr.bf16.mxu0 0
    %2541 = vmatpush1.bf16.msra.mxu0 0
    %2542 = vmatprep.subr.bf16.mxu0 0
    %2543 = vmatpush1.bf16.msra.mxu0 0
    %2544 = vmatprep.subr.bf16.mxu0 0
    %2545 = vmatpush1.bf16.msra.mxu0 0
    %2546 = vmatprep.subr.bf16.mxu0 0
    %2547 = vmatpush1.bf16.msra.mxu0 0
    %2548 = vmatprep.subr.bf16.mxu0 0
    %2549 = vmatpush1.bf16.msra.mxu0 0
    %2550 = vmatprep.subr.bf16.mxu0 0
    %2551 = vmatpush1.bf16.msra.mxu0 0
    %2552 = vmatprep.subr.bf16.mxu0 0
    %2553 = vmatpush1.bf16.msra.mxu0 0
    %2554 = vmatprep.subr.bf16.mxu0 0
    %2555 = vmatpush1.bf16.msra.mxu0 0
    %2556 = vmatprep.subr.bf16.mxu0 0
    %2557 = vmatpush1.bf16.msra.mxu0 0
    %2558 = vmatprep.subr.bf16.mxu0 0
    %2559 = vmatpush1.bf16.msra.mxu0 0
    %2560 = vmatprep.subr.bf16.mxu0 0
    %2561 = vmatpush1.bf16.msra.mxu0 0
    %2562 = vmatprep.mubr.bf16.mxu0 0
    %2563 = vmatmul.mubr.bf16.gmra.mrb[0].mxu0 %v2528
    %v2564 = vpop.f32.mrb[0].mxu0
    %v2565 = vadd.f32 0.0, %v2564
    %v2566 = vpop.f32.mrb[0].mxu0
    %v2567 = vpop.f32.mrb[0].mxu0
    %v2568 = vadd.f32 0.0, %v2567
    %v2569 = vpop.f32.mrb[0].mxu0
    %2570 = vdwg.mxu0
    %v2571 = vadd.f32 %v1912, %v2565
    %v2572 = vadd.f32 %v1915, %v2568
    %v2573 = vxor.u32 %v2571, 2147483648
    %v2574 = vxor.u32 %v2572, 2147483648
    %v2575 = vmul.f32 %v2573, 1.442695
    %v2576 = vpow.pop %v2575
    %v2577 = vmul.f32 %v2574, 1.442695
    %v2578 = vpow.pop %v2577
    %v2579 = vadd.f32 %v2576, 1.0
    %v2580 = vadd.f32 %v2578, 1.0
    %v2581 = vrcp.pop %v2579
    %v2582 = vmul.f32 1.0, %v2581
    %v2583 = vrcp.pop %v2580
    %v2584 = vmul.f32 1.0, %v2583
    %v2585 = vtanh.pop %v2571
    %v2586 = vtanh.pop %v2572
    %v2587 = vmul.f32 %v2582, %v2509
    %v2588 = vmul.f32 %v2584, %v2510
    %2591 = vrot.lane.b32.xlu0 %v2585, 64
    %v2592 = vpop.permute.xlu0 %2591
    %2593 = vrot.lane.b32.xlu0 %v2586, 64
    %v2594 = vpop.permute.xlu0 %2593
    %v2597 = vmul.f32 %v2582, %v2592
    %v2598 = vmul.f32 %v2584, %v2594
    %2601 = vrot.lane.b32.xlu0 %v2597, 32
    %v2602 = vpop.permute.xlu0 %2601
    %2603 = vrot.lane.b32.xlu0 %v2598, 32
    %v2604 = vpop.permute.xlu0 %2603
    %v2607 = vadd.f32 %v2587, %v2602
    %v2608 = vadd.f32 %v2588, %v2604
    %v2609 = vtanh.pop %v2607
    %v2610 = vtanh.pop %v2608
    %2613 = vrot.lane.b32.xlu0 %v2609, 64
    %v2614 = vpop.permute.xlu0 %2613
    %2615 = vrot.lane.b32.xlu0 %v2610, 64
    %v2616 = vpop.permute.xlu0 %2615
    %v2619 = vmul.f32 %v2582, %v2614
    %v2620 = vmul.f32 %v2584, %v2616
    %v2621 = vpack.c.bf16 %v2620, %v2619
    %2623 = vrot.lane.b32.xlu0 %v2621, 32
    %v2624 = vpop.permute.xlu0 %2623
    %v2626 = vsel %vm494, %v2624, 0
    %2628 = vmatprep.subr.bf16.mxu0 0
    %2629 = vmatpush1.bf16.msra.mxu0 %v1938
    %2630 = vmatprep.subr.bf16.mxu0 0
    %2631 = vmatpush1.bf16.msra.mxu0 %v1939
    %2632 = vmatprep.subr.bf16.mxu0 0
    %2633 = vmatpush1.bf16.msra.mxu0 0
    %2634 = vmatprep.subr.bf16.mxu0 0
    %2635 = vmatpush1.bf16.msra.mxu0 0
    %2636 = vmatprep.subr.bf16.mxu0 0
    %2637 = vmatpush1.bf16.msra.mxu0 0
    %2638 = vmatprep.subr.bf16.mxu0 0
    %2639 = vmatpush1.bf16.msra.mxu0 0
    %2640 = vmatprep.subr.bf16.mxu0 0
    %2641 = vmatpush1.bf16.msra.mxu0 0
    %2642 = vmatprep.subr.bf16.mxu0 0
    %2643 = vmatpush1.bf16.msra.mxu0 0
    %2644 = vmatprep.subr.bf16.mxu0 0
    %2645 = vmatpush1.bf16.msra.mxu0 0
    %2646 = vmatprep.subr.bf16.mxu0 0
    %2647 = vmatpush1.bf16.msra.mxu0 0
    %2648 = vmatprep.subr.bf16.mxu0 0
    %2649 = vmatpush1.bf16.msra.mxu0 0
    %2650 = vmatprep.subr.bf16.mxu0 0
    %2651 = vmatpush1.bf16.msra.mxu0 0
    %2652 = vmatprep.subr.bf16.mxu0 0
    %2653 = vmatpush1.bf16.msra.mxu0 0
    %2654 = vmatprep.subr.bf16.mxu0 0
    %2655 = vmatpush1.bf16.msra.mxu0 0
    %2656 = vmatprep.subr.bf16.mxu0 0
    %2657 = vmatpush1.bf16.msra.mxu0 0
    %2658 = vmatprep.subr.bf16.mxu0 0
    %2659 = vmatpush1.bf16.msra.mxu0 0
    %2660 = vmatprep.mubr.bf16.mxu0 0
    %2661 = vmatmul.mubr.bf16.gmra.mrb[0].mxu0 %v2626
    %v2662 = vpop.f32.mrb[0].mxu0
    %v2663 = vadd.f32 0.0, %v2662
    %v2664 = vpop.f32.mrb[0].mxu0
    %v2665 = vpop.f32.mrb[0].mxu0
    %v2666 = vadd.f32 0.0, %v2665
    %v2667 = vpop.f32.mrb[0].mxu0
    %2668 = vdwg.mxu0
    %v2669 = vadd.f32 %v1920, %v2663
    %v2670 = vadd.f32 %v1923, %v2666
    %v2671 = vxor.u32 %v2669, 2147483648
    %v2672 = vxor.u32 %v2670, 2147483648
    %v2673 = vmul.f32 %v2671, 1.442695
    %v2674 = vpow.pop %v2673
    %v2675 = vmul.f32 %v2672, 1.442695
    %v2676 = vpow.pop %v2675
    %v2677 = vadd.f32 %v2674, 1.0
    %v2678 = vadd.f32 %v2676, 1.0
    %v2679 = vrcp.pop %v2677
    %v2680 = vmul.f32 1.0, %v2679
    %v2681 = vrcp.pop %v2678
    %v2682 = vmul.f32 1.0, %v2681
    %v2683 = vtanh.pop %v2669
    %v2684 = vtanh.pop %v2670
    %v2685 = vmul.f32 %v2680, %v2607
    %v2686 = vmul.f32 %v2682, %v2608
    %2689 = vrot.lane.b32.xlu0 %v2683, 64
    %v2690 = vpop.permute.xlu0 %2689
    %2691 = vrot.lane.b32.xlu0 %v2684, 64
    %v2692 = vpop.permute.xlu0 %2691
    %v2695 = vmul.f32 %v2680, %v2690
    %v2696 = vmul.f32 %v2682, %v2692
    %2699 = vrot.lane.b32.xlu0 %v2695, 32
    %v2700 = vpop.permute.xlu0 %2699
    %2701 = vrot.lane.b32.xlu0 %v2696, 32
    %v2702 = vpop.permute.xlu0 %2701
    %v2705 = vadd.f32 %v2685, %v2700
    %v2706 = vadd.f32 %v2686, %v2702
    %v2707 = vtanh.pop %v2705
    %v2708 = vtanh.pop %v2706
    %2711 = vrot.lane.b32.xlu0 %v2707, 64
    %v2712 = vpop.permute.xlu0 %2711
    %2713 = vrot.lane.b32.xlu0 %v2708, 64
    %v2714 = vpop.permute.xlu0 %2713
    %v2717 = vmul.f32 %v2680, %v2712
    %v2718 = vmul.f32 %v2682, %v2714
    %2721 = vrot.lane.b32.xlu0 %v2717, 32
    %v2722 = vpop.permute.xlu0 %2721
    %2723 = vrot.lane.b32.xlu0 %v2718, 32
    %v2724 = vpop.permute.xlu0 %2723
    %2727 = vst.msk [vmem:[#allocation11] sm:$0xff] %vm494, %v2722
    %2728 = vst.msk [vmem:[#allocation11 + $0x8] sm:$0xff] %vm494, %v2724
    // Predicated region
    $region58: #{tpu_custom_call.1} parent=1 // pred_check
      _
    $region59: #{tpu_custom_call.1} parent=1 // pred_check_branch
      %2730 = sbr.rel (0) target = $region61
    $region60: #{tpu_custom_call.1} parent=1 // pred_region
      %s2732 = ssub.s32 256, 256
      %2733 = vsyncadd [#allocation5], %s2732
      %s2734 = sshll.u32 [#allocation11], 4
      %s2735 = int_to_ptr.vmem [resolvable:$true] %s2734
      %2740 = dma.vmem_to_hbm [thread:$0]  %s2735, 256, %s10, [#allocation5], 128, 128, 8
    $region61: #{tpu_custom_call.1} parent=1 // pred_fallthru
      _
    // Predicated region
    $region62: #{tpu_custom_call.1} parent=1 // pred_check
      _
    $region63: #{tpu_custom_call.1} parent=1 // pred_check_branch
      %2742 = sbr.rel (0) target = $region65
    $region64: #{tpu_custom_call.1} parent=1 // pred_region
      %2743 = dma.done [#allocation5], 256
    $region65: #{tpu_custom_call.1} parent=1 // pred_fallthru
      _
    %2744 = vsyncpa [#allocation4], 1
    %2745 = vsyncpa [#allocation7], 1
    %2746 = vsyncpa [#allocation10], 1
    %2747 = vsyncpa [#allocation5], 1

</llo_original>
